<compile_context>
chip_gen: v7x
topology: tpu7x:2x2x1
jax: 0.10.0
libtpu: 0.0.40
codegen_flags: <defaults>
</compile_context>

<pallas_src>
import jax
import jax.numpy as jnp
from jax import lax
from jax.experimental import pallas as pl


def _make_rnn_decoder_kernel(S, BP):
    """Build the kernel for a fixed (static) sequence length S and padded batch BP."""

    def kernel(x_ref, h0_ref, wih_ref, whh_ref, b_ref, wlin_ref, blin_ref,
               out_ref, hout_ref):
        hi = lax.Precision.HIGHEST  # exact f32 matmuls; free at (8..64, 32) shapes

        # --- Hoisted input projection: all time steps in one MXU matmul ------------------
        # x_ref: (S*BP, I) time-major-flattened input; b_ref: (1, H) = b_ih + b_hh.
        x_proj = (jnp.dot(x_ref[...], wih_ref[...],
                          preferred_element_type=jnp.float32, precision=hi)
                  + b_ref[...])                                   # (S*BP, H)

        # --- Serial recurrence (statically unrolled, S is small & known) -----------------
        # W_hh loaded once; h and the accumulated hidden states stay in vregs (no VMEM
        # scratch round trip).
        w_hh = whh_ref[...]                                       # (H, H)
        h = h0_ref[...]                                           # (BP, H)
        hs = []
        for t in range(S):
            h = jnp.tanh(
                jnp.dot(h, w_hh, preferred_element_type=jnp.float32, precision=hi)
                + x_proj[t * BP:(t + 1) * BP, :])
            hs.append(h)

        # Final hidden state (written unconditionally after the loop).
        hout_ref[...] = h

        # --- Deferred output Linear: one batched matmul over all steps -------------------
        hs_all = jnp.concatenate(hs, axis=0)                      # (S*BP, H), vreg-resident
        out_ref[...] = (jnp.dot(hs_all, wlin_ref[...],
                                preferred_element_type=jnp.float32, precision=hi)
                        + blin_ref[...])                          # (S*BP, O)

    return kernel


def prepare_params(params):
    """One-time parameter re-layout (transposed weights, pre-summed bias, f32).
    Call once; reuse the result for every decode step."""
    H = params["w_hh"].shape[0]
    O = params["w_lin"].shape[0]
    return {
        "w_ih_t": jnp.asarray(params["w_ih"].T, jnp.float32),                       # (I, H)
        "w_hh_t": jnp.asarray(params["w_hh"].T, jnp.float32),                       # (H, H)
        "b": jnp.asarray((params["b_ih"] + params["b_hh"]).reshape(1, H), jnp.float32),
        "w_lin_t": jnp.asarray(params["w_lin"].T, jnp.float32),                     # (H, O)
        "b_lin": jnp.asarray(params["b_lin"].reshape(1, O), jnp.float32),
    }


@jax.jit
def rnn_decoder_forward(x, hidden_prev, prepped):
    """x: (B, S, I=output_size), hidden_prev: (1, B, H), prepped: prepare_params() output.
    Returns (out, hidden) matching the PyTorch module: out (1, B*S, O), hidden (1, B, H)."""
    B, S, I = x.shape
    H = prepped["w_hh_t"].shape[0]
    O = prepped["w_lin_t"].shape[1]

    # Pad batch to a multiple of 8 (f32 sublane count) -> all in-kernel slices are aligned.
    BP = ((B + 7) // 8) * 8

    # Per-call layout glue (fused by the surrounding jit): time-major, flattened, padded.
    x_tm = jnp.transpose(x, (1, 0, 2)).astype(jnp.float32)            # (S, B, I)
    x_tm = jnp.pad(x_tm, ((0, 0), (0, BP - B), (0, 0)))               # (S, BP, I)
    x_flat = x_tm.reshape(S * BP, I)                                  # (S*BP, I)
    h0 = jnp.pad(hidden_prev[0].astype(jnp.float32),
                 ((0, BP - B), (0, 0)))                               # (BP, H)

    kernel = _make_rnn_decoder_kernel(S, BP)
    out_flat, h_last = pl.pallas_call(
        kernel,
        out_shape=(
            jax.ShapeDtypeStruct((S * BP, O), jnp.float32),
            jax.ShapeDtypeStruct((BP, H), jnp.float32),
        ),
        # Single invocation, whole arrays resident in VMEM (working set is < 0.1 MiB, so the
        # v7x 64 MiB / 32 MiB-scoped VMEM limits are a non-issue at these shapes).
    )(x_flat, h0, prepped["w_ih_t"], prepped["w_hh_t"], prepped["b"],
      prepped["w_lin_t"], prepped["b_lin"])

    # Reorder time-major -> batch-major flat (matches torch: reshape(-1, H) then Linear);
    # padded batch rows are dropped here and never reduced over inside the kernel.
    out = out_flat.reshape(S, BP, O)[:, :B, :]
    out = jnp.transpose(out, (1, 0, 2)).reshape(B * S, O)[None]       # (1, B*S, O)
    hidden = h_last[:B][None]                                         # (1, B, H)
    return out, hidden


def _reference_forward(x, hidden_prev, params):
    """Pure-JAX reference matching torch nn.RNN(tanh) + nn.Linear semantics.
    Uses HIGHEST matmul precision so the comparison is against exact-f32 math."""
    hi = lax.Precision.HIGHEST
    B, S, I = x.shape
    H = params["w_hh"].shape[0]
    h = hidden_prev[0]
    outs = []
    for t in range(S):
        pre = (jnp.dot(x[:, t, :], params["w_ih"].T, precision=hi) + params["b_ih"]
               + jnp.dot(h, params["w_hh"].T, precision=hi) + params["b_hh"])
        h = jnp.tanh(pre)
        outs.append(h)
    rnn_out = jnp.stack(outs, axis=1)                       # (B, S, H)
    flat = rnn_out.reshape(-1, H)
    y = jnp.dot(flat, params["w_lin"].T, precision=hi) + params["b_lin"]
    return y[None], h[None]


def make_params(key, hidden_size, output_size):
    """Deterministic init mirroring PyTorch's U(-1/sqrt(H), 1/sqrt(H))."""
    k = jax.random.split(key, 6)
    bound = 1.0 / jnp.sqrt(hidden_size)
    u = lambda kk, shape: jax.random.uniform(kk, shape, jnp.float32, -bound, bound)
    return {
        "w_ih": u(k[0], (hidden_size, output_size)),
        "w_hh": u(k[1], (hidden_size, hidden_size)),
        "b_ih": u(k[2], (hidden_size,)),
        "b_hh": u(k[3], (hidden_size,)),
        "w_lin": u(k[4], (output_size, hidden_size)),
        "b_lin": u(k[5], (output_size,)),
    }


if __name__ == "__main__":
    hidden_size = 32
    output_size = 4   # RNN input_size == output_size per the module
    B, S = 2, 8

    key = jax.random.PRNGKey(0)
    kp, kx, kh = jax.random.split(key, 3)
    params = make_params(kp, hidden_size, output_size)
    x = jax.random.normal(kx, (B, S, output_size), jnp.float32)
    hidden_prev = jax.random.normal(kh, (1, B, hidden_size), jnp.float32)

    # One-time parameter re-layout, reused for every decode step.
    prepped = prepare_params(params)

    out, hidden = rnn_decoder_forward(x, hidden_prev, prepped)
    out = jax.block_until_ready(out)
    hidden = jax.block_until_ready(hidden)

    ref_out, ref_hidden = _reference_forward(x, hidden_prev, params)
    assert out.shape == (1, B * S, output_size)
    assert hidden.shape == (1, B, hidden_size)
    # HIGHEST-precision matmuls on both sides -> only tanh/rounding differences remain.
    assert jnp.allclose(out, ref_out, atol=1e-4, rtol=1e-4), \
        float(jnp.max(jnp.abs(out - ref_out)))
    assert jnp.allclose(hidden, ref_hidden, atol=1e-4, rtol=1e-4), \
        float(jnp.max(jnp.abs(hidden - ref_hidden)))

    print("KERNEL_OK")
</pallas_src>

<mosaic_0001>
module attributes {stable_mosaic.version = 11 : i64} {
  func.func @kernel(%arg0: memref<64x4xf32, #tpu.memory_space<vmem>>, %arg1: memref<8x32xf32, #tpu.memory_space<vmem>>, %arg2: memref<4x32xf32, #tpu.memory_space<vmem>>, %arg3: memref<32x32xf32, #tpu.memory_space<vmem>>, %arg4: memref<1x32xf32, #tpu.memory_space<vmem>>, %arg5: memref<32x4xf32, #tpu.memory_space<vmem>>, %arg6: memref<1x4xf32, #tpu.memory_space<vmem>>, %arg7: memref<64x4xf32, #tpu.memory_space<vmem>>, %arg8: memref<8x32xf32, #tpu.memory_space<vmem>>) attributes {dimension_semantics = [], scalar_prefetch = 0 : i64, scratch_operands = 0 : i64, tpu.core_type = #tpu.core_type<tc>} {
    %c0 = arith.constant 0 : index
    %c0_0 = arith.constant 0 : index
    %0 = vector.load %arg0[%c0, %c0_0] : memref<64x4xf32, #tpu.memory_space<vmem>>, vector<64x4xf32>
    %c0_1 = arith.constant 0 : index
    %c0_2 = arith.constant 0 : index
    %1 = vector.load %arg2[%c0_1, %c0_2] : memref<4x32xf32, #tpu.memory_space<vmem>>, vector<4x32xf32>
    %cst = arith.constant dense<0.000000e+00> : vector<64x32xf32>
    %2 = tpu.matmul %0, %1, %cst {dimension_numbers = #tpu.dot_dimension_numbers<[1], [0], [0], [1], [0, 0, 1, 1], [], []>, precision = #tpu.contract_precision<fp32>} : vector<64x4xf32>, vector<4x32xf32>, vector<64x32xf32> -> vector<64x32xf32>
    %c0_3 = arith.constant 0 : index
    %c0_4 = arith.constant 0 : index
    %3 = vector.load %arg4[%c0_3, %c0_4] : memref<1x32xf32, #tpu.memory_space<vmem>>, vector<1x32xf32>
    %4 = vector.broadcast %3 : vector<1x32xf32> to vector<64x32xf32>
    %5 = arith.addf %2, %4 : vector<64x32xf32>
    %c0_5 = arith.constant 0 : index
    %c0_6 = arith.constant 0 : index
    %6 = vector.load %arg3[%c0_5, %c0_6] : memref<32x32xf32, #tpu.memory_space<vmem>>, vector<32x32xf32>
    %c0_7 = arith.constant 0 : index
    %c0_8 = arith.constant 0 : index
    %7 = vector.load %arg1[%c0_7, %c0_8] : memref<8x32xf32, #tpu.memory_space<vmem>>, vector<8x32xf32>
    %cst_9 = arith.constant dense<0.000000e+00> : vector<8x32xf32>
    %8 = tpu.matmul %7, %6, %cst_9 {dimension_numbers = #tpu.dot_dimension_numbers<[1], [0], [0], [1], [0, 0, 1, 1], [], []>, precision = #tpu.contract_precision<fp32>} : vector<8x32xf32>, vector<32x32xf32>, vector<8x32xf32> -> vector<8x32xf32>
    %9 = vector.extract_strided_slice %5 {offsets = [0, 0], sizes = [8, 32], strides = [1, 1]} : vector<64x32xf32> to vector<8x32xf32>
    %10 = arith.addf %8, %9 : vector<8x32xf32>
    %11 = math.tanh %10 : vector<8x32xf32>
    %cst_10 = arith.constant dense<0.000000e+00> : vector<8x32xf32>
    %12 = tpu.matmul %11, %6, %cst_10 {dimension_numbers = #tpu.dot_dimension_numbers<[1], [0], [0], [1], [0, 0, 1, 1], [], []>, precision = #tpu.contract_precision<fp32>} : vector<8x32xf32>, vector<32x32xf32>, vector<8x32xf32> -> vector<8x32xf32>
    %13 = vector.extract_strided_slice %5 {offsets = [8, 0], sizes = [8, 32], strides = [1, 1]} : vector<64x32xf32> to vector<8x32xf32>
    %14 = arith.addf %12, %13 : vector<8x32xf32>
    %15 = math.tanh %14 : vector<8x32xf32>
    %cst_11 = arith.constant dense<0.000000e+00> : vector<8x32xf32>
    %16 = tpu.matmul %15, %6, %cst_11 {dimension_numbers = #tpu.dot_dimension_numbers<[1], [0], [0], [1], [0, 0, 1, 1], [], []>, precision = #tpu.contract_precision<fp32>} : vector<8x32xf32>, vector<32x32xf32>, vector<8x32xf32> -> vector<8x32xf32>
    %17 = vector.extract_strided_slice %5 {offsets = [16, 0], sizes = [8, 32], strides = [1, 1]} : vector<64x32xf32> to vector<8x32xf32>
    %18 = arith.addf %16, %17 : vector<8x32xf32>
    %19 = math.tanh %18 : vector<8x32xf32>
    %cst_12 = arith.constant dense<0.000000e+00> : vector<8x32xf32>
    %20 = tpu.matmul %19, %6, %cst_12 {dimension_numbers = #tpu.dot_dimension_numbers<[1], [0], [0], [1], [0, 0, 1, 1], [], []>, precision = #tpu.contract_precision<fp32>} : vector<8x32xf32>, vector<32x32xf32>, vector<8x32xf32> -> vector<8x32xf32>
    %21 = vector.extract_strided_slice %5 {offsets = [24, 0], sizes = [8, 32], strides = [1, 1]} : vector<64x32xf32> to vector<8x32xf32>
    %22 = arith.addf %20, %21 : vector<8x32xf32>
    %23 = math.tanh %22 : vector<8x32xf32>
    %cst_13 = arith.constant dense<0.000000e+00> : vector<8x32xf32>
    %24 = tpu.matmul %23, %6, %cst_13 {dimension_numbers = #tpu.dot_dimension_numbers<[1], [0], [0], [1], [0, 0, 1, 1], [], []>, precision = #tpu.contract_precision<fp32>} : vector<8x32xf32>, vector<32x32xf32>, vector<8x32xf32> -> vector<8x32xf32>
    %25 = vector.extract_strided_slice %5 {offsets = [32, 0], sizes = [8, 32], strides = [1, 1]} : vector<64x32xf32> to vector<8x32xf32>
    %26 = arith.addf %24, %25 : vector<8x32xf32>
    %27 = math.tanh %26 : vector<8x32xf32>
    %cst_14 = arith.constant dense<0.000000e+00> : vector<8x32xf32>
    %28 = tpu.matmul %27, %6, %cst_14 {dimension_numbers = #tpu.dot_dimension_numbers<[1], [0], [0], [1], [0, 0, 1, 1], [], []>, precision = #tpu.contract_precision<fp32>} : vector<8x32xf32>, vector<32x32xf32>, vector<8x32xf32> -> vector<8x32xf32>
    %29 = vector.extract_strided_slice %5 {offsets = [40, 0], sizes = [8, 32], strides = [1, 1]} : vector<64x32xf32> to vector<8x32xf32>
    %30 = arith.addf %28, %29 : vector<8x32xf32>
    %31 = math.tanh %30 : vector<8x32xf32>
    %cst_15 = arith.constant dense<0.000000e+00> : vector<8x32xf32>
    %32 = tpu.matmul %31, %6, %cst_15 {dimension_numbers = #tpu.dot_dimension_numbers<[1], [0], [0], [1], [0, 0, 1, 1], [], []>, precision = #tpu.contract_precision<fp32>} : vector<8x32xf32>, vector<32x32xf32>, vector<8x32xf32> -> vector<8x32xf32>
    %33 = vector.extract_strided_slice %5 {offsets = [48, 0], sizes = [8, 32], strides = [1, 1]} : vector<64x32xf32> to vector<8x32xf32>
    %34 = arith.addf %32, %33 : vector<8x32xf32>
    %35 = math.tanh %34 : vector<8x32xf32>
    %cst_16 = arith.constant dense<0.000000e+00> : vector<8x32xf32>
    %36 = tpu.matmul %35, %6, %cst_16 {dimension_numbers = #tpu.dot_dimension_numbers<[1], [0], [0], [1], [0, 0, 1, 1], [], []>, precision = #tpu.contract_precision<fp32>} : vector<8x32xf32>, vector<32x32xf32>, vector<8x32xf32> -> vector<8x32xf32>
    %37 = vector.extract_strided_slice %5 {offsets = [56, 0], sizes = [8, 32], strides = [1, 1]} : vector<64x32xf32> to vector<8x32xf32>
    %38 = arith.addf %36, %37 : vector<8x32xf32>
    %39 = math.tanh %38 : vector<8x32xf32>
    %c0_17 = arith.constant 0 : index
    %c0_18 = arith.constant 0 : index
    %40 = vector.load %arg8[%c0_17, %c0_18] : memref<8x32xf32, #tpu.memory_space<vmem>>, vector<8x32xf32>
    tpu.vector_store %arg8[%c0_17, %c0_18], %39 {strides = array<i32>} : memref<8x32xf32, #tpu.memory_space<vmem>>, vector<8x32xf32>,
    %41 = tpu.concatenate %11, %15, %19, %23, %27, %31, %35, %39 in 0 : vector<8x32xf32>, vector<8x32xf32>, vector<8x32xf32>, vector<8x32xf32>, vector<8x32xf32>, vector<8x32xf32>, vector<8x32xf32>, vector<8x32xf32> -> vector<64x32xf32>
    %c0_19 = arith.constant 0 : index
    %c0_20 = arith.constant 0 : index
    %42 = vector.load %arg5[%c0_19, %c0_20] : memref<32x4xf32, #tpu.memory_space<vmem>>, vector<32x4xf32>
    %cst_21 = arith.constant dense<0.000000e+00> : vector<64x4xf32>
    %43 = tpu.matmul %41, %42, %cst_21 {dimension_numbers = #tpu.dot_dimension_numbers<[1], [0], [0], [1], [0, 0, 1, 1], [], []>, precision = #tpu.contract_precision<fp32>} : vector<64x32xf32>, vector<32x4xf32>, vector<64x4xf32> -> vector<64x4xf32>
    %c0_22 = arith.constant 0 : index
    %c0_23 = arith.constant 0 : index
    %44 = vector.load %arg6[%c0_22, %c0_23] : memref<1x4xf32, #tpu.memory_space<vmem>>, vector<1x4xf32>
    %45 = vector.broadcast %44 : vector<1x4xf32> to vector<64x4xf32>
    %46 = arith.addf %43, %45 : vector<64x4xf32>
    %c0_24 = arith.constant 0 : index
    %c0_25 = arith.constant 0 : index
    %47 = vector.load %arg7[%c0_24, %c0_25] : memref<64x4xf32, #tpu.memory_space<vmem>>, vector<64x4xf32>
    tpu.vector_store %arg7[%c0_24, %c0_25], %46 {strides = array<i32>} : memref<64x4xf32, #tpu.memory_space<vmem>>, vector<64x4xf32>,
    return
  }
}

</mosaic_0001>

<llo_original>
// kernel: rnn_decoder_forward.1
$region0: #{rnn_decoder_forward.1}
  #allocation0 [shape = 'u32[]', space=smem, size = 0x4, offset = 0x4, fixed_abs, tag = 'smem constant byte address 0x4 - core index']
  #allocation1 [shape = 'u32[144,128]{1,0:T(1,128)}', space=vmem, size = 0x12000, scoped, tag = 'internal scratch']
  %s0 = inlined_call_operand.vmem [shape: f32[64,4], index: 0, kind: input, shape index: {}]
  %s1 = inlined_call_operand.vmem [shape: f32[8,32], index: 1, kind: input, shape index: {}]
  %s2 = inlined_call_operand.vmem [shape: f32[4,32], index: 2, kind: input, shape index: {}]
  %s3 = inlined_call_operand.vmem [shape: f32[32,32], index: 3, kind: input, shape index: {}]
  %s4 = inlined_call_operand.vmem [shape: f32[1,32], index: 4, kind: input, shape index: {}]
  %s5 = inlined_call_operand.vmem [shape: f32[32,4], index: 5, kind: input, shape index: {}]
  %s6 = inlined_call_operand.vmem [shape: f32[1,4], index: 6, kind: input, shape index: {}]
  %s7 = inlined_call_operand.vmem [shape: f32[64,4], index: 7, kind: output, shape index: {0}]
  %s8 = inlined_call_operand.vmem [shape: f32[8,32], index: 8, kind: output, shape index: {1}]
  %9 = xla_tuple %s7, %s8
  %s10 = sld [smem:[#allocation0]]
  $region46: #{rnn_decoder_forward.1} parent=0
    _
  %s12 = ssub.s32 1, %s10
  %s13 = scalar_select 0, %s12, %s10
  // Predicated region
  $region2: #{rnn_decoder_forward.1} parent=0 // pred_check
    _
  $region3: #{rnn_decoder_forward.1} parent=0 // pred_check_branch
    %15 = sbr.rel (0) target = $region5
  $region4: #{rnn_decoder_forward.1} parent=0 // pred_region
    _
  $region5: #{rnn_decoder_forward.1} parent=0 // pred_fallthru
    _
  // Predicated region
  $region6: #{rnn_decoder_forward.1} parent=0 // pred_check
    _
  $region7: #{rnn_decoder_forward.1} parent=0 // pred_check_branch
    %17 = sbr.rel (0) target = $region9
  $region8: #{rnn_decoder_forward.1} parent=0 // pred_region
    _
  $region9: #{rnn_decoder_forward.1} parent=0 // pred_fallthru
    _
  // Predicated region
  $region10: #{rnn_decoder_forward.1} parent=0 // pred_check
    _
  $region11: #{rnn_decoder_forward.1} parent=0 // pred_check_branch
    %19 = sbr.rel (0) target = $region13
  $region12: #{rnn_decoder_forward.1} parent=0 // pred_region
    _
  $region13: #{rnn_decoder_forward.1} parent=0 // pred_fallthru
    _
  // Predicated region
  $region14: #{rnn_decoder_forward.1} parent=0 // pred_check
    _
  $region15: #{rnn_decoder_forward.1} parent=0 // pred_check_branch
    %21 = sbr.rel (0) target = $region17
  $region16: #{rnn_decoder_forward.1} parent=0 // pred_region
    _
  $region17: #{rnn_decoder_forward.1} parent=0 // pred_fallthru
    _
  // Predicated region
  $region18: #{rnn_decoder_forward.1} parent=0 // pred_check
    _
  $region19: #{rnn_decoder_forward.1} parent=0 // pred_check_branch
    %23 = sbr.rel (0) target = $region21
  $region20: #{rnn_decoder_forward.1} parent=0 // pred_region
    _
  $region21: #{rnn_decoder_forward.1} parent=0 // pred_fallthru
    _
  // Predicated region
  $region22: #{rnn_decoder_forward.1} parent=0 // pred_check
    _
  $region23: #{rnn_decoder_forward.1} parent=0 // pred_check_branch
    %25 = sbr.rel (0) target = $region25
  $region24: #{rnn_decoder_forward.1} parent=0 // pred_region
    _
  $region25: #{rnn_decoder_forward.1} parent=0 // pred_fallthru
    _
  // Predicated region
  $region26: #{rnn_decoder_forward.1} parent=0 // pred_check
    _
  $region27: #{rnn_decoder_forward.1} parent=0 // pred_check_branch
    %27 = sbr.rel (0) target = $region29
  $region28: #{rnn_decoder_forward.1} parent=0 // pred_region
    _
  $region29: #{rnn_decoder_forward.1} parent=0 // pred_fallthru
    _
  %v28 = vld [vmem:[%s0] sm:$0xff]
  %v29 = vld [vmem:[%s0 + $0x8] sm:$0xff]
  %v30 = vld [vmem:[%s0 + $0x10] sm:$0xff]
  %v31 = vld [vmem:[%s0 + $0x18] sm:$0xff]
  %v32 = vld [vmem:[%s0 + $0x20] sm:$0xff]
  %v33 = vld [vmem:[%s0 + $0x28] sm:$0xff]
  %v34 = vld [vmem:[%s0 + $0x30] sm:$0xff]
  %v35 = vld [vmem:[%s0 + $0x38] sm:$0xff]
  %v36 = vld [vmem:[%s2] sm:$0xf]
  %v37 = vld [vmem:[%s4] sm:$0x1]
  %v39 = vlaneseq
  %v40 = vshrl.u32 %v39, 7
  %v41 = vsub.s32 0, %v40
  %v42 = vrot.slane %v37, %v41
  %vm44 = vcmask 31744
  %v46 = vsel %vm44, %v28, 0
  %v49 = vsel %vm44, %v29, 0
  %v52 = vsel %vm44, %v30, 0
  %v55 = vsel %vm44, %v31, 0
  %v58 = vsel %vm44, %v32, 0
  %v61 = vsel %vm44, %v33, 0
  %v64 = vsel %vm44, %v34, 0
  %v67 = vsel %vm44, %v35, 0
  %vm69 = vcmask 1043456
  %v71 = vsel %vm69, %v36, 0
  %73 = vmatprep.subr.mxu0 0.0
  %v74 = vand.u32 %v71, 4294901760
  %75 = vmatpush1.msra.mxu0 %v74
  %76 = vmatprep.subr.mxu0 0.0
  %77 = vmatpush1.msra.mxu0 0.0
  %78 = vmatprep.subr.mxu0 0.0
  %79 = vmatpush1.msra.mxu0 0.0
  %80 = vmatprep.subr.mxu0 0.0
  %81 = vmatpush1.msra.mxu0 0.0
  %82 = vmatprep.subr.mxu0 0.0
  %83 = vmatpush1.msra.mxu0 0.0
  %84 = vmatprep.subr.mxu0 0.0
  %85 = vmatpush1.msra.mxu0 0.0
  %86 = vmatprep.subr.mxu0 0.0
  %87 = vmatpush1.msra.mxu0 0.0
  %88 = vmatprep.subr.mxu0 0.0
  %89 = vmatpush1.msra.mxu0 0.0
  %90 = vmatprep.subr.mxu0 0.0
  %91 = vmatpush1.msra.mxu0 0.0
  %92 = vmatprep.subr.mxu0 0.0
  %93 = vmatpush1.msra.mxu0 0.0
  %94 = vmatprep.subr.mxu0 0.0
  %95 = vmatpush1.msra.mxu0 0.0
  %96 = vmatprep.subr.mxu0 0.0
  %97 = vmatpush1.msra.mxu0 0.0
  %98 = vmatprep.subr.mxu0 0.0
  %99 = vmatpush1.msra.mxu0 0.0
  %100 = vmatprep.subr.mxu0 0.0
  %101 = vmatpush1.msra.mxu0 0.0
  %102 = vmatprep.subr.mxu0 0.0
  %103 = vmatpush1.msra.mxu0 0.0
  %104 = vmatprep.subr.mxu0 0.0
  %105 = vmatpush1.msra.mxu0 0.0
  %106 = vmatprep.subr.mxu0 0.0
  %107 = vmatpush1.msra.mxu0 0.0
  %108 = vmatprep.subr.mxu0 0.0
  %109 = vmatpush1.msra.mxu0 0.0
  %110 = vmatprep.subr.mxu0 0.0
  %111 = vmatpush1.msra.mxu0 0.0
  %112 = vmatprep.subr.mxu0 0.0
  %113 = vmatpush1.msra.mxu0 0.0
  %114 = vmatprep.subr.mxu0 0.0
  %115 = vmatpush1.msra.mxu0 0.0
  %116 = vmatprep.subr.mxu0 0.0
  %117 = vmatpush1.msra.mxu0 0.0
  %118 = vmatprep.subr.mxu0 0.0
  %119 = vmatpush1.msra.mxu0 0.0
  %120 = vmatprep.subr.mxu0 0.0
  %121 = vmatpush1.msra.mxu0 0.0
  %122 = vmatprep.subr.mxu0 0.0
  %123 = vmatpush1.msra.mxu0 0.0
  %124 = vmatprep.subr.mxu0 0.0
  %125 = vmatpush1.msra.mxu0 0.0
  %126 = vmatprep.subr.mxu0 0.0
  %127 = vmatpush1.msra.mxu0 0.0
  %128 = vmatprep.subr.mxu0 0.0
  %129 = vmatpush1.msra.mxu0 0.0
  %130 = vmatprep.subr.mxu0 0.0
  %131 = vmatpush1.msra.mxu0 0.0
  %132 = vmatprep.subr.mxu0 0.0
  %133 = vmatpush1.msra.mxu0 0.0
  %134 = vmatprep.subr.mxu0 0.0
  %135 = vmatpush1.msra.mxu0 0.0
  %136 = vmatprep.subr.mxu0 0.0
  %137 = vmatpush1.msra.mxu0 0.0
  %138 = vmatprep.mubr.f32.mxu0 0.0
  %v139 = vand.u32 %v46, 4294901760
  %v140 = vsub.f32 %v46, %v139
  %v141 = vand.u32 %v140, 4294901760
  %v142 = vsub.f32 %v140, %v141
  %v143 = vand.u32 %v142, 4294901760
  %144 = vmatmul.mubr.f32.gmra.mrb[0].mxu0 %v143
  %v145 = vpop.f32.mrb[0].mxu0
  %v146 = vadd.f32 %v42, %v145
  %v147 = vpop.f32.mrb[0].mxu0
  %148 = vmatprep.mubr.f32.mxu0 0.0
  %v149 = vand.u32 %v49, 4294901760
  %v150 = vsub.f32 %v49, %v149
  %v151 = vand.u32 %v150, 4294901760
  %v152 = vsub.f32 %v150, %v151
  %v153 = vand.u32 %v152, 4294901760
  %154 = vmatmul.mubr.f32.gmra.mrb[0].mxu0 %v153
  %v155 = vpop.f32.mrb[0].mxu0
  %v156 = vadd.f32 %v42, %v155
  %v157 = vpop.f32.mrb[0].mxu0
  %158 = vmatprep.mubr.f32.mxu0 0.0
  %v159 = vand.u32 %v52, 4294901760
  %v160 = vsub.f32 %v52, %v159
  %v161 = vand.u32 %v160, 4294901760
  %v162 = vsub.f32 %v160, %v161
  %v163 = vand.u32 %v162, 4294901760
  %164 = vmatmul.mubr.f32.gmra.mrb[0].mxu0 %v163
  %v165 = vpop.f32.mrb[0].mxu0
  %v166 = vadd.f32 %v42, %v165
  %v167 = vpop.f32.mrb[0].mxu0
  %168 = vmatprep.mubr.f32.mxu0 0.0
  %v169 = vand.u32 %v55, 4294901760
  %v170 = vsub.f32 %v55, %v169
  %v171 = vand.u32 %v170, 4294901760
  %v172 = vsub.f32 %v170, %v171
  %v173 = vand.u32 %v172, 4294901760
  %174 = vmatmul.mubr.f32.gmra.mrb[0].mxu0 %v173
  %v175 = vpop.f32.mrb[0].mxu0
  %v176 = vadd.f32 %v42, %v175
  %v177 = vpop.f32.mrb[0].mxu0
  %178 = vmatprep.mubr.f32.mxu0 0.0
  %v179 = vand.u32 %v58, 4294901760
  %v180 = vsub.f32 %v58, %v179
  %v181 = vand.u32 %v180, 4294901760
  %v182 = vsub.f32 %v180, %v181
  %v183 = vand.u32 %v182, 4294901760
  %184 = vmatmul.mubr.f32.gmra.mrb[0].mxu0 %v183
  %v185 = vpop.f32.mrb[0].mxu0
  %v186 = vadd.f32 %v42, %v185
  %v187 = vpop.f32.mrb[0].mxu0
  %188 = vmatprep.mubr.f32.mxu0 0.0
  %v189 = vand.u32 %v61, 4294901760
  %v190 = vsub.f32 %v61, %v189
  %v191 = vand.u32 %v190, 4294901760
  %v192 = vsub.f32 %v190, %v191
  %v193 = vand.u32 %v192, 4294901760
  %194 = vmatmul.mubr.f32.gmra.mrb[0].mxu0 %v193
  %v195 = vpop.f32.mrb[0].mxu0
  %v196 = vadd.f32 %v42, %v195
  %v197 = vpop.f32.mrb[0].mxu0
  %198 = vmatprep.mubr.f32.mxu0 0.0
  %v199 = vand.u32 %v64, 4294901760
  %v200 = vsub.f32 %v64, %v199
  %v201 = vand.u32 %v200, 4294901760
  %v202 = vsub.f32 %v200, %v201
  %v203 = vand.u32 %v202, 4294901760
  %204 = vmatmul.mubr.f32.gmra.mrb[0].mxu0 %v203
  %v205 = vpop.f32.mrb[0].mxu0
  %v206 = vadd.f32 %v42, %v205
  %v207 = vpop.f32.mrb[0].mxu0
  %208 = vmatprep.mubr.f32.mxu0 0.0
  %v209 = vand.u32 %v67, 4294901760
  %v210 = vsub.f32 %v67, %v209
  %v211 = vand.u32 %v210, 4294901760
  %v212 = vsub.f32 %v210, %v211
  %v213 = vand.u32 %v212, 4294901760
  %214 = vmatmul.mubr.f32.gmra.mrb[0].mxu0 %v213
  %v215 = vpop.f32.mrb[0].mxu0
  %v216 = vadd.f32 %v42, %v215
  %v217 = vpop.f32.mrb[0].mxu0
  %218 = vdwg.mxu0
  %219 = vmatprep.subr.mxu0 0.0
  %v220 = vand.u32 %v71, 4294901760
  %v221 = vsub.f32 %v71, %v220
  %v222 = vand.u32 %v221, 4294901760
  %v223 = vsub.f32 %v221, %v222
  %v224 = vand.u32 %v223, 4294901760
  %225 = vmatpush1.msra.mxu0 %v224
  %226 = vmatprep.subr.mxu0 0.0
  %227 = vmatpush1.msra.mxu0 0.0
  %228 = vmatprep.subr.mxu0 0.0
  %229 = vmatpush1.msra.mxu0 0.0
  %230 = vmatprep.subr.mxu0 0.0
  %231 = vmatpush1.msra.mxu0 0.0
  %232 = vmatprep.subr.mxu0 0.0
  %233 = vmatpush1.msra.mxu0 0.0
  %234 = vmatprep.subr.mxu0 0.0
  %235 = vmatpush1.msra.mxu0 0.0
  %236 = vmatprep.subr.mxu0 0.0
  %237 = vmatpush1.msra.mxu0 0.0
  %238 = vmatprep.subr.mxu0 0.0
  %239 = vmatpush1.msra.mxu0 0.0
  %240 = vmatprep.subr.mxu0 0.0
  %241 = vmatpush1.msra.mxu0 0.0
  %242 = vmatprep.subr.mxu0 0.0
  %243 = vmatpush1.msra.mxu0 0.0
  %244 = vmatprep.subr.mxu0 0.0
  %245 = vmatpush1.msra.mxu0 0.0
  %246 = vmatprep.subr.mxu0 0.0
  %247 = vmatpush1.msra.mxu0 0.0
  %248 = vmatprep.subr.mxu0 0.0
  %249 = vmatpush1.msra.mxu0 0.0
  %250 = vmatprep.subr.mxu0 0.0
  %251 = vmatpush1.msra.mxu0 0.0
  %252 = vmatprep.subr.mxu0 0.0
  %253 = vmatpush1.msra.mxu0 0.0
  %254 = vmatprep.subr.mxu0 0.0
  %255 = vmatpush1.msra.mxu0 0.0
  %256 = vmatprep.subr.mxu0 0.0
  %257 = vmatpush1.msra.mxu0 0.0
  %258 = vmatprep.subr.mxu0 0.0
  %259 = vmatpush1.msra.mxu0 0.0
  %260 = vmatprep.subr.mxu0 0.0
  %261 = vmatpush1.msra.mxu0 0.0
  %262 = vmatprep.subr.mxu0 0.0
  %263 = vmatpush1.msra.mxu0 0.0
  %264 = vmatprep.subr.mxu0 0.0
  %265 = vmatpush1.msra.mxu0 0.0
  %266 = vmatprep.subr.mxu0 0.0
  %267 = vmatpush1.msra.mxu0 0.0
  %268 = vmatprep.subr.mxu0 0.0
  %269 = vmatpush1.msra.mxu0 0.0
  %270 = vmatprep.subr.mxu0 0.0
  %271 = vmatpush1.msra.mxu0 0.0
  %272 = vmatprep.subr.mxu0 0.0
  %273 = vmatpush1.msra.mxu0 0.0
  %274 = vmatprep.subr.mxu0 0.0
  %275 = vmatpush1.msra.mxu0 0.0
  %276 = vmatprep.subr.mxu0 0.0
  %277 = vmatpush1.msra.mxu0 0.0
  %278 = vmatprep.subr.mxu0 0.0
  %279 = vmatpush1.msra.mxu0 0.0
  %280 = vmatprep.subr.mxu0 0.0
  %281 = vmatpush1.msra.mxu0 0.0
  %282 = vmatprep.subr.mxu0 0.0
  %283 = vmatpush1.msra.mxu0 0.0
  %284 = vmatprep.subr.mxu0 0.0
  %285 = vmatpush1.msra.mxu0 0.0
  %286 = vmatprep.subr.mxu0 0.0
  %287 = vmatpush1.msra.mxu0 0.0
  %288 = vmatprep.mubr.f32.mxu0 0.0
  %v289 = vand.u32 %v46, 4294901760
  %290 = vmatmul.mubr.f32.gmra.mrb[0].mxu0 %v289
  %v291 = vpop.f32.mrb[0].mxu0
  %v292 = vadd.f32 %v146, %v291
  %v293 = vpop.f32.mrb[0].mxu0
  %294 = vmatprep.mubr.f32.mxu0 0.0
  %v295 = vand.u32 %v49, 4294901760
  %296 = vmatmul.mubr.f32.gmra.mrb[0].mxu0 %v295
  %v297 = vpop.f32.mrb[0].mxu0
  %v298 = vadd.f32 %v156, %v297
  %v299 = vpop.f32.mrb[0].mxu0
  %300 = vmatprep.mubr.f32.mxu0 0.0
  %v301 = vand.u32 %v52, 4294901760
  %302 = vmatmul.mubr.f32.gmra.mrb[0].mxu0 %v301
  %v303 = vpop.f32.mrb[0].mxu0
  %v304 = vadd.f32 %v166, %v303
  %v305 = vpop.f32.mrb[0].mxu0
  %306 = vmatprep.mubr.f32.mxu0 0.0
  %v307 = vand.u32 %v55, 4294901760
  %308 = vmatmul.mubr.f32.gmra.mrb[0].mxu0 %v307
  %v309 = vpop.f32.mrb[0].mxu0
  %v310 = vadd.f32 %v176, %v309
  %v311 = vpop.f32.mrb[0].mxu0
  %312 = vmatprep.mubr.f32.mxu0 0.0
  %v313 = vand.u32 %v58, 4294901760
  %314 = vmatmul.mubr.f32.gmra.mrb[0].mxu0 %v313
  %v315 = vpop.f32.mrb[0].mxu0
  %v316 = vadd.f32 %v186, %v315
  %v317 = vpop.f32.mrb[0].mxu0
  %318 = vmatprep.mubr.f32.mxu0 0.0
  %v319 = vand.u32 %v61, 4294901760
  %320 = vmatmul.mubr.f32.gmra.mrb[0].mxu0 %v319
  %v321 = vpop.f32.mrb[0].mxu0
  %v322 = vadd.f32 %v196, %v321
  %v323 = vpop.f32.mrb[0].mxu0
  %324 = vmatprep.mubr.f32.mxu0 0.0
  %v325 = vand.u32 %v64, 4294901760
  %326 = vmatmul.mubr.f32.gmra.mrb[0].mxu0 %v325
  %v327 = vpop.f32.mrb[0].mxu0
  %v328 = vadd.f32 %v206, %v327
  %v329 = vpop.f32.mrb[0].mxu0
  %330 = vmatprep.mubr.f32.mxu0 0.0
  %v331 = vand.u32 %v67, 4294901760
  %332 = vmatmul.mubr.f32.gmra.mrb[0].mxu0 %v331
  %v333 = vpop.f32.mrb[0].mxu0
  %v334 = vadd.f32 %v216, %v333
  %v335 = vpop.f32.mrb[0].mxu0
  %336 = vdwg.mxu0
  %337 = vmatprep.subr.mxu0 0.0
  %v338 = vand.u32 %v71, 4294901760
  %v339 = vsub.f32 %v71, %v338
  %340 = vmatpush1.msra.mxu0 %v339
  %341 = vmatprep.subr.mxu0 0.0
  %342 = vmatpush1.msra.mxu0 0.0
  %343 = vmatprep.subr.mxu0 0.0
  %344 = vmatpush1.msra.mxu0 0.0
  %345 = vmatprep.subr.mxu0 0.0
  %346 = vmatpush1.msra.mxu0 0.0
  %347 = vmatprep.subr.mxu0 0.0
  %348 = vmatpush1.msra.mxu0 0.0
  %349 = vmatprep.subr.mxu0 0.0
  %350 = vmatpush1.msra.mxu0 0.0
  %351 = vmatprep.subr.mxu0 0.0
  %352 = vmatpush1.msra.mxu0 0.0
  %353 = vmatprep.subr.mxu0 0.0
  %354 = vmatpush1.msra.mxu0 0.0
  %355 = vmatprep.subr.mxu0 0.0
  %356 = vmatpush1.msra.mxu0 0.0
  %357 = vmatprep.subr.mxu0 0.0
  %358 = vmatpush1.msra.mxu0 0.0
  %359 = vmatprep.subr.mxu0 0.0
  %360 = vmatpush1.msra.mxu0 0.0
  %361 = vmatprep.subr.mxu0 0.0
  %362 = vmatpush1.msra.mxu0 0.0
  %363 = vmatprep.subr.mxu0 0.0
  %364 = vmatpush1.msra.mxu0 0.0
  %365 = vmatprep.subr.mxu0 0.0
  %366 = vmatpush1.msra.mxu0 0.0
  %367 = vmatprep.subr.mxu0 0.0
  %368 = vmatpush1.msra.mxu0 0.0
  %369 = vmatprep.subr.mxu0 0.0
  %370 = vmatpush1.msra.mxu0 0.0
  %371 = vmatprep.subr.mxu0 0.0
  %372 = vmatpush1.msra.mxu0 0.0
  %373 = vmatprep.subr.mxu0 0.0
  %374 = vmatpush1.msra.mxu0 0.0
  %375 = vmatprep.subr.mxu0 0.0
  %376 = vmatpush1.msra.mxu0 0.0
  %377 = vmatprep.subr.mxu0 0.0
  %378 = vmatpush1.msra.mxu0 0.0
  %379 = vmatprep.subr.mxu0 0.0
  %380 = vmatpush1.msra.mxu0 0.0
  %381 = vmatprep.subr.mxu0 0.0
  %382 = vmatpush1.msra.mxu0 0.0
  %383 = vmatprep.subr.mxu0 0.0
  %384 = vmatpush1.msra.mxu0 0.0
  %385 = vmatprep.subr.mxu0 0.0
  %386 = vmatpush1.msra.mxu0 0.0
  %387 = vmatprep.subr.mxu0 0.0
  %388 = vmatpush1.msra.mxu0 0.0
  %389 = vmatprep.subr.mxu0 0.0
  %390 = vmatpush1.msra.mxu0 0.0
  %391 = vmatprep.subr.mxu0 0.0
  %392 = vmatpush1.msra.mxu0 0.0
  %393 = vmatprep.subr.mxu0 0.0
  %394 = vmatpush1.msra.mxu0 0.0
  %395 = vmatprep.subr.mxu0 0.0
  %396 = vmatpush1.msra.mxu0 0.0
  %397 = vmatprep.subr.mxu0 0.0
  %398 = vmatpush1.msra.mxu0 0.0
  %399 = vmatprep.subr.mxu0 0.0
  %400 = vmatpush1.msra.mxu0 0.0
  %401 = vmatprep.subr.mxu0 0.0
  %402 = vmatpush1.msra.mxu0 0.0
  %403 = vmatprep.mubr.f32.mxu0 0.0
  %v404 = vand.u32 %v46, 4294901760
  %v405 = vsub.f32 %v46, %v404
  %406 = vmatmul.mubr.f32.gmra.mrb[0].mxu0 %v405
  %v407 = vpop.f32.mrb[0].mxu0
  %v408 = vadd.f32 %v292, %v407
  %v409 = vpop.f32.mrb[0].mxu0
  %410 = vmatprep.mubr.f32.mxu0 0.0
  %v411 = vand.u32 %v49, 4294901760
  %v412 = vsub.f32 %v49, %v411
  %413 = vmatmul.mubr.f32.gmra.mrb[0].mxu0 %v412
  %v414 = vpop.f32.mrb[0].mxu0
  %v415 = vadd.f32 %v298, %v414
  %v416 = vpop.f32.mrb[0].mxu0
  %417 = vmatprep.mubr.f32.mxu0 0.0
  %v418 = vand.u32 %v52, 4294901760
  %v419 = vsub.f32 %v52, %v418
  %420 = vmatmul.mubr.f32.gmra.mrb[0].mxu0 %v419
  %v421 = vpop.f32.mrb[0].mxu0
  %v422 = vadd.f32 %v304, %v421
  %v423 = vpop.f32.mrb[0].mxu0
  %424 = vmatprep.mubr.f32.mxu0 0.0
  %v425 = vand.u32 %v55, 4294901760
  %v426 = vsub.f32 %v55, %v425
  %427 = vmatmul.mubr.f32.gmra.mrb[0].mxu0 %v426
  %v428 = vpop.f32.mrb[0].mxu0
  %v429 = vadd.f32 %v310, %v428
  %v430 = vpop.f32.mrb[0].mxu0
  %431 = vmatprep.mubr.f32.mxu0 0.0
  %v432 = vand.u32 %v58, 4294901760
  %v433 = vsub.f32 %v58, %v432
  %434 = vmatmul.mubr.f32.gmra.mrb[0].mxu0 %v433
  %v435 = vpop.f32.mrb[0].mxu0
  %v436 = vadd.f32 %v316, %v435
  %v437 = vpop.f32.mrb[0].mxu0
  %438 = vmatprep.mubr.f32.mxu0 0.0
  %v439 = vand.u32 %v61, 4294901760
  %v440 = vsub.f32 %v61, %v439
  %441 = vmatmul.mubr.f32.gmra.mrb[0].mxu0 %v440
  %v442 = vpop.f32.mrb[0].mxu0
  %v443 = vadd.f32 %v322, %v442
  %v444 = vpop.f32.mrb[0].mxu0
  %445 = vmatprep.mubr.f32.mxu0 0.0
  %v446 = vand.u32 %v64, 4294901760
  %v447 = vsub.f32 %v64, %v446
  %448 = vmatmul.mubr.f32.gmra.mrb[0].mxu0 %v447
  %v449 = vpop.f32.mrb[0].mxu0
  %v450 = vadd.f32 %v328, %v449
  %v451 = vpop.f32.mrb[0].mxu0
  %452 = vmatprep.mubr.f32.mxu0 0.0
  %v453 = vand.u32 %v67, 4294901760
  %v454 = vsub.f32 %v67, %v453
  %455 = vmatmul.mubr.f32.gmra.mrb[0].mxu0 %v454
  %v456 = vpop.f32.mrb[0].mxu0
  %v457 = vadd.f32 %v334, %v456
  %v458 = vpop.f32.mrb[0].mxu0
  %459 = vdwg.mxu0
  %460 = vmatprep.subr.mxu0 0.0
  %v461 = vand.u32 %v71, 4294901760
  %462 = vmatpush1.msra.mxu0 %v461
  %463 = vmatprep.subr.mxu0 0.0
  %464 = vmatpush1.msra.mxu0 0.0
  %465 = vmatprep.subr.mxu0 0.0
  %466 = vmatpush1.msra.mxu0 0.0
  %467 = vmatprep.subr.mxu0 0.0
  %468 = vmatpush1.msra.mxu0 0.0
  %469 = vmatprep.subr.mxu0 0.0
  %470 = vmatpush1.msra.mxu0 0.0
  %471 = vmatprep.subr.mxu0 0.0
  %472 = vmatpush1.msra.mxu0 0.0
  %473 = vmatprep.subr.mxu0 0.0
  %474 = vmatpush1.msra.mxu0 0.0
  %475 = vmatprep.subr.mxu0 0.0
  %476 = vmatpush1.msra.mxu0 0.0
  %477 = vmatprep.subr.mxu0 0.0
  %478 = vmatpush1.msra.mxu0 0.0
  %479 = vmatprep.subr.mxu0 0.0
  %480 = vmatpush1.msra.mxu0 0.0
  %481 = vmatprep.subr.mxu0 0.0
  %482 = vmatpush1.msra.mxu0 0.0
  %483 = vmatprep.subr.mxu0 0.0
  %484 = vmatpush1.msra.mxu0 0.0
  %485 = vmatprep.subr.mxu0 0.0
  %486 = vmatpush1.msra.mxu0 0.0
  %487 = vmatprep.subr.mxu0 0.0
  %488 = vmatpush1.msra.mxu0 0.0
  %489 = vmatprep.subr.mxu0 0.0
  %490 = vmatpush1.msra.mxu0 0.0
  %491 = vmatprep.subr.mxu0 0.0
  %492 = vmatpush1.msra.mxu0 0.0
  %493 = vmatprep.subr.mxu0 0.0
  %494 = vmatpush1.msra.mxu0 0.0
  %495 = vmatprep.subr.mxu0 0.0
  %496 = vmatpush1.msra.mxu0 0.0
  %497 = vmatprep.subr.mxu0 0.0
  %498 = vmatpush1.msra.mxu0 0.0
  %499 = vmatprep.subr.mxu0 0.0
  %500 = vmatpush1.msra.mxu0 0.0
  %501 = vmatprep.subr.mxu0 0.0
  %502 = vmatpush1.msra.mxu0 0.0
  %503 = vmatprep.subr.mxu0 0.0
  %504 = vmatpush1.msra.mxu0 0.0
  %505 = vmatprep.subr.mxu0 0.0
  %506 = vmatpush1.msra.mxu0 0.0
  %507 = vmatprep.subr.mxu0 0.0
  %508 = vmatpush1.msra.mxu0 0.0
  %509 = vmatprep.subr.mxu0 0.0
  %510 = vmatpush1.msra.mxu0 0.0
  %511 = vmatprep.subr.mxu0 0.0
  %512 = vmatpush1.msra.mxu0 0.0
  %513 = vmatprep.subr.mxu0 0.0
  %514 = vmatpush1.msra.mxu0 0.0
  %515 = vmatprep.subr.mxu0 0.0
  %516 = vmatpush1.msra.mxu0 0.0
  %517 = vmatprep.subr.mxu0 0.0
  %518 = vmatpush1.msra.mxu0 0.0
  %519 = vmatprep.subr.mxu0 0.0
  %520 = vmatpush1.msra.mxu0 0.0
  %521 = vmatprep.subr.mxu0 0.0
  %522 = vmatpush1.msra.mxu0 0.0
  %523 = vmatprep.subr.mxu0 0.0
  %524 = vmatpush1.msra.mxu0 0.0
  %525 = vmatprep.mubr.f32.mxu0 0.0
  %v526 = vand.u32 %v46, 4294901760
  %v527 = vsub.f32 %v46, %v526
  %v528 = vand.u32 %v527, 4294901760
  %529 = vmatmul.mubr.f32.gmra.mrb[0].mxu0 %v528
  %v530 = vpop.f32.mrb[0].mxu0
  %v531 = vadd.f32 %v408, %v530
  %v532 = vpop.f32.mrb[0].mxu0
  %533 = vmatprep.mubr.f32.mxu0 0.0
  %v534 = vand.u32 %v49, 4294901760
  %v535 = vsub.f32 %v49, %v534
  %v536 = vand.u32 %v535, 4294901760
  %537 = vmatmul.mubr.f32.gmra.mrb[0].mxu0 %v536
  %v538 = vpop.f32.mrb[0].mxu0
  %v539 = vadd.f32 %v415, %v538
  %v540 = vpop.f32.mrb[0].mxu0
  %541 = vmatprep.mubr.f32.mxu0 0.0
  %v542 = vand.u32 %v52, 4294901760
  %v543 = vsub.f32 %v52, %v542
  %v544 = vand.u32 %v543, 4294901760
  %545 = vmatmul.mubr.f32.gmra.mrb[0].mxu0 %v544
  %v546 = vpop.f32.mrb[0].mxu0
  %v547 = vadd.f32 %v422, %v546
  %v548 = vpop.f32.mrb[0].mxu0
  %549 = vmatprep.mubr.f32.mxu0 0.0
  %v550 = vand.u32 %v55, 4294901760
  %v551 = vsub.f32 %v55, %v550
  %v552 = vand.u32 %v551, 4294901760
  %553 = vmatmul.mubr.f32.gmra.mrb[0].mxu0 %v552
  %v554 = vpop.f32.mrb[0].mxu0
  %v555 = vadd.f32 %v429, %v554
  %v556 = vpop.f32.mrb[0].mxu0
  %557 = vmatprep.mubr.f32.mxu0 0.0
  %v558 = vand.u32 %v58, 4294901760
  %v559 = vsub.f32 %v58, %v558
  %v560 = vand.u32 %v559, 4294901760
  %561 = vmatmul.mubr.f32.gmra.mrb[0].mxu0 %v560
  %v562 = vpop.f32.mrb[0].mxu0
  %v563 = vadd.f32 %v436, %v562
  %v564 = vpop.f32.mrb[0].mxu0
  %565 = vmatprep.mubr.f32.mxu0 0.0
  %v566 = vand.u32 %v61, 4294901760
  %v567 = vsub.f32 %v61, %v566
  %v568 = vand.u32 %v567, 4294901760
  %569 = vmatmul.mubr.f32.gmra.mrb[0].mxu0 %v568
  %v570 = vpop.f32.mrb[0].mxu0
  %v571 = vadd.f32 %v443, %v570
  %v572 = vpop.f32.mrb[0].mxu0
  %573 = vmatprep.mubr.f32.mxu0 0.0
  %v574 = vand.u32 %v64, 4294901760
  %v575 = vsub.f32 %v64, %v574
  %v576 = vand.u32 %v575, 4294901760
  %577 = vmatmul.mubr.f32.gmra.mrb[0].mxu0 %v576
  %v578 = vpop.f32.mrb[0].mxu0
  %v579 = vadd.f32 %v450, %v578
  %v580 = vpop.f32.mrb[0].mxu0
  %581 = vmatprep.mubr.f32.mxu0 0.0
  %v582 = vand.u32 %v67, 4294901760
  %v583 = vsub.f32 %v67, %v582
  %v584 = vand.u32 %v583, 4294901760
  %585 = vmatmul.mubr.f32.gmra.mrb[0].mxu0 %v584
  %v586 = vpop.f32.mrb[0].mxu0
  %v587 = vadd.f32 %v457, %v586
  %v588 = vpop.f32.mrb[0].mxu0
  %589 = vdwg.mxu0
  %590 = vmatprep.subr.mxu0 0.0
  %v591 = vand.u32 %v71, 4294901760
  %v592 = vsub.f32 %v71, %v591
  %v593 = vand.u32 %v592, 4294901760
  %594 = vmatpush1.msra.mxu0 %v593
  %595 = vmatprep.subr.mxu0 0.0
  %596 = vmatpush1.msra.mxu0 0.0
  %597 = vmatprep.subr.mxu0 0.0
  %598 = vmatpush1.msra.mxu0 0.0
  %599 = vmatprep.subr.mxu0 0.0
  %600 = vmatpush1.msra.mxu0 0.0
  %601 = vmatprep.subr.mxu0 0.0
  %602 = vmatpush1.msra.mxu0 0.0
  %603 = vmatprep.subr.mxu0 0.0
  %604 = vmatpush1.msra.mxu0 0.0
  %605 = vmatprep.subr.mxu0 0.0
  %606 = vmatpush1.msra.mxu0 0.0
  %607 = vmatprep.subr.mxu0 0.0
  %608 = vmatpush1.msra.mxu0 0.0
  %609 = vmatprep.subr.mxu0 0.0
  %610 = vmatpush1.msra.mxu0 0.0
  %611 = vmatprep.subr.mxu0 0.0
  %612 = vmatpush1.msra.mxu0 0.0
  %613 = vmatprep.subr.mxu0 0.0
  %614 = vmatpush1.msra.mxu0 0.0
  %615 = vmatprep.subr.mxu0 0.0
  %616 = vmatpush1.msra.mxu0 0.0
  %617 = vmatprep.subr.mxu0 0.0
  %618 = vmatpush1.msra.mxu0 0.0
  %619 = vmatprep.subr.mxu0 0.0
  %620 = vmatpush1.msra.mxu0 0.0
  %621 = vmatprep.subr.mxu0 0.0
  %622 = vmatpush1.msra.mxu0 0.0
  %623 = vmatprep.subr.mxu0 0.0
  %624 = vmatpush1.msra.mxu0 0.0
  %625 = vmatprep.subr.mxu0 0.0
  %626 = vmatpush1.msra.mxu0 0.0
  %627 = vmatprep.subr.mxu0 0.0
  %628 = vmatpush1.msra.mxu0 0.0
  %629 = vmatprep.subr.mxu0 0.0
  %630 = vmatpush1.msra.mxu0 0.0
  %631 = vmatprep.subr.mxu0 0.0
  %632 = vmatpush1.msra.mxu0 0.0
  %633 = vmatprep.subr.mxu0 0.0
  %634 = vmatpush1.msra.mxu0 0.0
  %635 = vmatprep.subr.mxu0 0.0
  %636 = vmatpush1.msra.mxu0 0.0
  %637 = vmatprep.subr.mxu0 0.0
  %638 = vmatpush1.msra.mxu0 0.0
  %639 = vmatprep.subr.mxu0 0.0
  %640 = vmatpush1.msra.mxu0 0.0
  %641 = vmatprep.subr.mxu0 0.0
  %642 = vmatpush1.msra.mxu0 0.0
  %643 = vmatprep.subr.mxu0 0.0
  %644 = vmatpush1.msra.mxu0 0.0
  %645 = vmatprep.subr.mxu0 0.0
  %646 = vmatpush1.msra.mxu0 0.0
  %647 = vmatprep.subr.mxu0 0.0
  %648 = vmatpush1.msra.mxu0 0.0
  %649 = vmatprep.subr.mxu0 0.0
  %650 = vmatpush1.msra.mxu0 0.0
  %651 = vmatprep.subr.mxu0 0.0
  %652 = vmatpush1.msra.mxu0 0.0
  %653 = vmatprep.subr.mxu0 0.0
  %654 = vmatpush1.msra.mxu0 0.0
  %655 = vmatprep.subr.mxu0 0.0
  %656 = vmatpush1.msra.mxu0 0.0
  %657 = vmatprep.mubr.f32.mxu0 0.0
  %v658 = vand.u32 %v46, 4294901760
  %659 = vmatmul.mubr.f32.gmra.mrb[0].mxu0 %v658
  %v660 = vpop.f32.mrb[0].mxu0
  %v661 = vadd.f32 %v531, %v660
  %v662 = vpop.f32.mrb[0].mxu0
  %663 = vmatprep.mubr.f32.mxu0 0.0
  %v664 = vand.u32 %v49, 4294901760
  %665 = vmatmul.mubr.f32.gmra.mrb[0].mxu0 %v664
  %v666 = vpop.f32.mrb[0].mxu0
  %v667 = vadd.f32 %v539, %v666
  %v668 = vpop.f32.mrb[0].mxu0
  %669 = vmatprep.mubr.f32.mxu0 0.0
  %v670 = vand.u32 %v52, 4294901760
  %671 = vmatmul.mubr.f32.gmra.mrb[0].mxu0 %v670
  %v672 = vpop.f32.mrb[0].mxu0
  %v673 = vadd.f32 %v547, %v672
  %v674 = vpop.f32.mrb[0].mxu0
  %675 = vmatprep.mubr.f32.mxu0 0.0
  %v676 = vand.u32 %v55, 4294901760
  %677 = vmatmul.mubr.f32.gmra.mrb[0].mxu0 %v676
  %v678 = vpop.f32.mrb[0].mxu0
  %v679 = vadd.f32 %v555, %v678
  %v680 = vpop.f32.mrb[0].mxu0
  %681 = vmatprep.mubr.f32.mxu0 0.0
  %v682 = vand.u32 %v58, 4294901760
  %683 = vmatmul.mubr.f32.gmra.mrb[0].mxu0 %v682
  %v684 = vpop.f32.mrb[0].mxu0
  %v685 = vadd.f32 %v563, %v684
  %v686 = vpop.f32.mrb[0].mxu0
  %687 = vmatprep.mubr.f32.mxu0 0.0
  %v688 = vand.u32 %v61, 4294901760
  %689 = vmatmul.mubr.f32.gmra.mrb[0].mxu0 %v688
  %v690 = vpop.f32.mrb[0].mxu0
  %v691 = vadd.f32 %v571, %v690
  %v692 = vpop.f32.mrb[0].mxu0
  %693 = vmatprep.mubr.f32.mxu0 0.0
  %v694 = vand.u32 %v64, 4294901760
  %695 = vmatmul.mubr.f32.gmra.mrb[0].mxu0 %v694
  %v696 = vpop.f32.mrb[0].mxu0
  %v697 = vadd.f32 %v579, %v696
  %v698 = vpop.f32.mrb[0].mxu0
  %699 = vmatprep.mubr.f32.mxu0 0.0
  %v700 = vand.u32 %v67, 4294901760
  %701 = vmatmul.mubr.f32.gmra.mrb[0].mxu0 %v700
  %v702 = vpop.f32.mrb[0].mxu0
  %v703 = vadd.f32 %v587, %v702
  %v704 = vpop.f32.mrb[0].mxu0
  %705 = vdwg.mxu0
  %706 = vmatprep.subr.mxu0 0.0
  %v707 = vand.u32 %v71, 4294901760
  %708 = vmatpush1.msra.mxu0 %v707
  %709 = vmatprep.subr.mxu0 0.0
  %710 = vmatpush1.msra.mxu0 0.0
  %711 = vmatprep.subr.mxu0 0.0
  %712 = vmatpush1.msra.mxu0 0.0
  %713 = vmatprep.subr.mxu0 0.0
  %714 = vmatpush1.msra.mxu0 0.0
  %715 = vmatprep.subr.mxu0 0.0
  %716 = vmatpush1.msra.mxu0 0.0
  %717 = vmatprep.subr.mxu0 0.0
  %718 = vmatpush1.msra.mxu0 0.0
  %719 = vmatprep.subr.mxu0 0.0
  %720 = vmatpush1.msra.mxu0 0.0
  %721 = vmatprep.subr.mxu0 0.0
  %722 = vmatpush1.msra.mxu0 0.0
  %723 = vmatprep.subr.mxu0 0.0
  %724 = vmatpush1.msra.mxu0 0.0
  %725 = vmatprep.subr.mxu0 0.0
  %726 = vmatpush1.msra.mxu0 0.0
  %727 = vmatprep.subr.mxu0 0.0
  %728 = vmatpush1.msra.mxu0 0.0
  %729 = vmatprep.subr.mxu0 0.0
  %730 = vmatpush1.msra.mxu0 0.0
  %731 = vmatprep.subr.mxu0 0.0
  %732 = vmatpush1.msra.mxu0 0.0
  %733 = vmatprep.subr.mxu0 0.0
  %734 = vmatpush1.msra.mxu0 0.0
  %735 = vmatprep.subr.mxu0 0.0
  %736 = vmatpush1.msra.mxu0 0.0
  %737 = vmatprep.subr.mxu0 0.0
  %738 = vmatpush1.msra.mxu0 0.0
  %739 = vmatprep.subr.mxu0 0.0
  %740 = vmatpush1.msra.mxu0 0.0
  %741 = vmatprep.subr.mxu0 0.0
  %742 = vmatpush1.msra.mxu0 0.0
  %743 = vmatprep.subr.mxu0 0.0
  %744 = vmatpush1.msra.mxu0 0.0
  %745 = vmatprep.subr.mxu0 0.0
  %746 = vmatpush1.msra.mxu0 0.0
  %747 = vmatprep.subr.mxu0 0.0
  %748 = vmatpush1.msra.mxu0 0.0
  %749 = vmatprep.subr.mxu0 0.0
  %750 = vmatpush1.msra.mxu0 0.0
  %751 = vmatprep.subr.mxu0 0.0
  %752 = vmatpush1.msra.mxu0 0.0
  %753 = vmatprep.subr.mxu0 0.0
  %754 = vmatpush1.msra.mxu0 0.0
  %755 = vmatprep.subr.mxu0 0.0
  %756 = vmatpush1.msra.mxu0 0.0
  %757 = vmatprep.subr.mxu0 0.0
  %758 = vmatpush1.msra.mxu0 0.0
  %759 = vmatprep.subr.mxu0 0.0
  %760 = vmatpush1.msra.mxu0 0.0
  %761 = vmatprep.subr.mxu0 0.0
  %762 = vmatpush1.msra.mxu0 0.0
  %763 = vmatprep.subr.mxu0 0.0
  %764 = vmatpush1.msra.mxu0 0.0
  %765 = vmatprep.subr.mxu0 0.0
  %766 = vmatpush1.msra.mxu0 0.0
  %767 = vmatprep.subr.mxu0 0.0
  %768 = vmatpush1.msra.mxu0 0.0
  %769 = vmatprep.subr.mxu0 0.0
  %770 = vmatpush1.msra.mxu0 0.0
  %771 = vmatprep.mubr.f32.mxu0 0.0
  %v772 = vand.u32 %v46, 4294901760
  %773 = vmatmul.mubr.f32.gmra.mrb[0].mxu0 %v772
  %v774 = vpop.f32.mrb[0].mxu0
  %v775 = vadd.f32 %v661, %v774
  %v776 = vpop.f32.mrb[0].mxu0
  %777 = vmatprep.mubr.f32.mxu0 0.0
  %v778 = vand.u32 %v49, 4294901760
  %779 = vmatmul.mubr.f32.gmra.mrb[0].mxu0 %v778
  %v780 = vpop.f32.mrb[0].mxu0
  %v781 = vadd.f32 %v667, %v780
  %v782 = vpop.f32.mrb[0].mxu0
  %783 = vmatprep.mubr.f32.mxu0 0.0
  %v784 = vand.u32 %v52, 4294901760
  %785 = vmatmul.mubr.f32.gmra.mrb[0].mxu0 %v784
  %v786 = vpop.f32.mrb[0].mxu0
  %v787 = vadd.f32 %v673, %v786
  %v788 = vpop.f32.mrb[0].mxu0
  %789 = vmatprep.mubr.f32.mxu0 0.0
  %v790 = vand.u32 %v55, 4294901760
  %791 = vmatmul.mubr.f32.gmra.mrb[0].mxu0 %v790
  %v792 = vpop.f32.mrb[0].mxu0
  %v793 = vadd.f32 %v679, %v792
  %v794 = vpop.f32.mrb[0].mxu0
  %795 = vmatprep.mubr.f32.mxu0 0.0
  %v796 = vand.u32 %v58, 4294901760
  %797 = vmatmul.mubr.f32.gmra.mrb[0].mxu0 %v796
  %v798 = vpop.f32.mrb[0].mxu0
  %v799 = vadd.f32 %v685, %v798
  %v800 = vpop.f32.mrb[0].mxu0
  %801 = vmatprep.mubr.f32.mxu0 0.0
  %v802 = vand.u32 %v61, 4294901760
  %803 = vmatmul.mubr.f32.gmra.mrb[0].mxu0 %v802
  %v804 = vpop.f32.mrb[0].mxu0
  %v805 = vadd.f32 %v691, %v804
  %v806 = vpop.f32.mrb[0].mxu0
  %807 = vmatprep.mubr.f32.mxu0 0.0
  %v808 = vand.u32 %v64, 4294901760
  %809 = vmatmul.mubr.f32.gmra.mrb[0].mxu0 %v808
  %v810 = vpop.f32.mrb[0].mxu0
  %v811 = vadd.f32 %v697, %v810
  %v812 = vpop.f32.mrb[0].mxu0
  %813 = vmatprep.mubr.f32.mxu0 0.0
  %v814 = vand.u32 %v67, 4294901760
  %815 = vmatmul.mubr.f32.gmra.mrb[0].mxu0 %v814
  %v816 = vpop.f32.mrb[0].mxu0
  %v817 = vadd.f32 %v703, %v816
  %v818 = vpop.f32.mrb[0].mxu0
  %819 = vdwg.mxu0
  %v820 = vld [vmem:[%s3] sm:$0xff]
  %v821 = vld [vmem:[%s3 + $0x8] sm:$0xff]
  %v822 = vld [vmem:[%s3 + $0x10] sm:$0xff]
  %v823 = vld [vmem:[%s3 + $0x18] sm:$0xff]
  %v824 = vld [vmem:[%s1] sm:$0xff]
  %vm825 = vcmask 261120
  %v827 = vsel %vm825, %v824, 0
  %829 = vmatprep.subr.mxu0 0.0
  %v830 = vand.u32 %v820, 4294901760
  %831 = vmatpush1.msra.mxu0 %v830
  %832 = vmatprep.subr.mxu0 0.0
  %v833 = vand.u32 %v821, 4294901760
  %834 = vmatpush1.msra.mxu0 %v833
  %835 = vmatprep.subr.mxu0 0.0
  %v836 = vand.u32 %v822, 4294901760
  %837 = vmatpush1.msra.mxu0 %v836
  %838 = vmatprep.subr.mxu0 0.0
  %v839 = vand.u32 %v823, 4294901760
  %840 = vmatpush1.msra.mxu0 %v839
  %841 = vmatprep.subr.mxu0 0.0
  %842 = vmatpush1.msra.mxu0 0.0
  %843 = vmatprep.subr.mxu0 0.0
  %844 = vmatpush1.msra.mxu0 0.0
  %845 = vmatprep.subr.mxu0 0.0
  %846 = vmatpush1.msra.mxu0 0.0
  %847 = vmatprep.subr.mxu0 0.0
  %848 = vmatpush1.msra.mxu0 0.0
  %849 = vmatprep.subr.mxu0 0.0
  %850 = vmatpush1.msra.mxu0 0.0
  %851 = vmatprep.subr.mxu0 0.0
  %852 = vmatpush1.msra.mxu0 0.0
  %853 = vmatprep.subr.mxu0 0.0
  %854 = vmatpush1.msra.mxu0 0.0
  %855 = vmatprep.subr.mxu0 0.0
  %856 = vmatpush1.msra.mxu0 0.0
  %857 = vmatprep.subr.mxu0 0.0
  %858 = vmatpush1.msra.mxu0 0.0
  %859 = vmatprep.subr.mxu0 0.0
  %860 = vmatpush1.msra.mxu0 0.0
  %861 = vmatprep.subr.mxu0 0.0
  %862 = vmatpush1.msra.mxu0 0.0
  %863 = vmatprep.subr.mxu0 0.0
  %864 = vmatpush1.msra.mxu0 0.0
  %865 = vmatprep.subr.mxu0 0.0
  %866 = vmatpush1.msra.mxu0 0.0
  %867 = vmatprep.subr.mxu0 0.0
  %868 = vmatpush1.msra.mxu0 0.0
  %869 = vmatprep.subr.mxu0 0.0
  %870 = vmatpush1.msra.mxu0 0.0
  %871 = vmatprep.subr.mxu0 0.0
  %872 = vmatpush1.msra.mxu0 0.0
  %873 = vmatprep.subr.mxu0 0.0
  %874 = vmatpush1.msra.mxu0 0.0
  %875 = vmatprep.subr.mxu0 0.0
  %876 = vmatpush1.msra.mxu0 0.0
  %877 = vmatprep.subr.mxu0 0.0
  %878 = vmatpush1.msra.mxu0 0.0
  %879 = vmatprep.subr.mxu0 0.0
  %880 = vmatpush1.msra.mxu0 0.0
  %881 = vmatprep.subr.mxu0 0.0
  %882 = vmatpush1.msra.mxu0 0.0
  %883 = vmatprep.subr.mxu0 0.0
  %884 = vmatpush1.msra.mxu0 0.0
  %885 = vmatprep.subr.mxu0 0.0
  %886 = vmatpush1.msra.mxu0 0.0
  %887 = vmatprep.subr.mxu0 0.0
  %888 = vmatpush1.msra.mxu0 0.0
  %889 = vmatprep.subr.mxu0 0.0
  %890 = vmatpush1.msra.mxu0 0.0
  %891 = vmatprep.subr.mxu0 0.0
  %892 = vmatpush1.msra.mxu0 0.0
  %893 = vmatprep.subr.mxu0 0.0
  %894 = vmatpush1.msra.mxu0 0.0
  %895 = vmatprep.subr.mxu0 0.0
  %896 = vmatpush1.msra.mxu0 0.0
  %897 = vmatprep.mubr.f32.mxu0 0.0
  %v898 = vand.u32 %v827, 4294901760
  %v899 = vsub.f32 %v827, %v898
  %v900 = vand.u32 %v899, 4294901760
  %v901 = vsub.f32 %v899, %v900
  %v902 = vand.u32 %v901, 4294901760
  %903 = vmatmul.mubr.f32.gmra.mrb[0].mxu0 %v902
  %v904 = vpop.f32.mrb[0].mxu0
  %v905 = vadd.f32 %v775, %v904
  %v906 = vpop.f32.mrb[0].mxu0
  %907 = vdwg.mxu0
  %908 = vmatprep.subr.mxu0 0.0
  %v909 = vand.u32 %v820, 4294901760
  %v910 = vsub.f32 %v820, %v909
  %v911 = vand.u32 %v910, 4294901760
  %v912 = vsub.f32 %v910, %v911
  %v913 = vand.u32 %v912, 4294901760
  %914 = vmatpush1.msra.mxu0 %v913
  %915 = vmatprep.subr.mxu0 0.0
  %v916 = vand.u32 %v821, 4294901760
  %v917 = vsub.f32 %v821, %v916
  %v918 = vand.u32 %v917, 4294901760
  %v919 = vsub.f32 %v917, %v918
  %v920 = vand.u32 %v919, 4294901760
  %921 = vmatpush1.msra.mxu0 %v920
  %922 = vmatprep.subr.mxu0 0.0
  %v923 = vand.u32 %v822, 4294901760
  %v924 = vsub.f32 %v822, %v923
  %v925 = vand.u32 %v924, 4294901760
  %v926 = vsub.f32 %v924, %v925
  %v927 = vand.u32 %v926, 4294901760
  %928 = vmatpush1.msra.mxu0 %v927
  %929 = vmatprep.subr.mxu0 0.0
  %v930 = vand.u32 %v823, 4294901760
  %v931 = vsub.f32 %v823, %v930
  %v932 = vand.u32 %v931, 4294901760
  %v933 = vsub.f32 %v931, %v932
  %v934 = vand.u32 %v933, 4294901760
  %935 = vmatpush1.msra.mxu0 %v934
  %936 = vmatprep.subr.mxu0 0.0
  %937 = vmatpush1.msra.mxu0 0.0
  %938 = vmatprep.subr.mxu0 0.0
  %939 = vmatpush1.msra.mxu0 0.0
  %940 = vmatprep.subr.mxu0 0.0
  %941 = vmatpush1.msra.mxu0 0.0
  %942 = vmatprep.subr.mxu0 0.0
  %943 = vmatpush1.msra.mxu0 0.0
  %944 = vmatprep.subr.mxu0 0.0
  %945 = vmatpush1.msra.mxu0 0.0
  %946 = vmatprep.subr.mxu0 0.0
  %947 = vmatpush1.msra.mxu0 0.0
  %948 = vmatprep.subr.mxu0 0.0
  %949 = vmatpush1.msra.mxu0 0.0
  %950 = vmatprep.subr.mxu0 0.0
  %951 = vmatpush1.msra.mxu0 0.0
  %952 = vmatprep.subr.mxu0 0.0
  %953 = vmatpush1.msra.mxu0 0.0
  %954 = vmatprep.subr.mxu0 0.0
  %955 = vmatpush1.msra.mxu0 0.0
  %956 = vmatprep.subr.mxu0 0.0
  %957 = vmatpush1.msra.mxu0 0.0
  %958 = vmatprep.subr.mxu0 0.0
  %959 = vmatpush1.msra.mxu0 0.0
  %960 = vmatprep.subr.mxu0 0.0
  %961 = vmatpush1.msra.mxu0 0.0
  %962 = vmatprep.subr.mxu0 0.0
  %963 = vmatpush1.msra.mxu0 0.0
  %964 = vmatprep.subr.mxu0 0.0
  %965 = vmatpush1.msra.mxu0 0.0
  %966 = vmatprep.subr.mxu0 0.0
  %967 = vmatpush1.msra.mxu0 0.0
  %968 = vmatprep.subr.mxu0 0.0
  %969 = vmatpush1.msra.mxu0 0.0
  %970 = vmatprep.subr.mxu0 0.0
  %971 = vmatpush1.msra.mxu0 0.0
  %972 = vmatprep.subr.mxu0 0.0
  %973 = vmatpush1.msra.mxu0 0.0
  %974 = vmatprep.subr.mxu0 0.0
  %975 = vmatpush1.msra.mxu0 0.0
  %976 = vmatprep.subr.mxu0 0.0
  %977 = vmatpush1.msra.mxu0 0.0
  %978 = vmatprep.subr.mxu0 0.0
  %979 = vmatpush1.msra.mxu0 0.0
  %980 = vmatprep.subr.mxu0 0.0
  %981 = vmatpush1.msra.mxu0 0.0
  %982 = vmatprep.subr.mxu0 0.0
  %983 = vmatpush1.msra.mxu0 0.0
  %984 = vmatprep.subr.mxu0 0.0
  %985 = vmatpush1.msra.mxu0 0.0
  %986 = vmatprep.subr.mxu0 0.0
  %987 = vmatpush1.msra.mxu0 0.0
  %988 = vmatprep.subr.mxu0 0.0
  %989 = vmatpush1.msra.mxu0 0.0
  %990 = vmatprep.subr.mxu0 0.0
  %991 = vmatpush1.msra.mxu0 0.0
  %992 = vmatprep.mubr.f32.mxu0 0.0
  %v993 = vand.u32 %v827, 4294901760
  %994 = vmatmul.mubr.f32.gmra.mrb[0].mxu0 %v993
  %v995 = vpop.f32.mrb[0].mxu0
  %v996 = vadd.f32 %v905, %v995
  %v997 = vpop.f32.mrb[0].mxu0
  %998 = vdwg.mxu0
  %999 = vmatprep.subr.mxu0 0.0
  %v1000 = vand.u32 %v820, 4294901760
  %v1001 = vsub.f32 %v820, %v1000
  %1002 = vmatpush1.msra.mxu0 %v1001
  %1003 = vmatprep.subr.mxu0 0.0
  %v1004 = vand.u32 %v821, 4294901760
  %v1005 = vsub.f32 %v821, %v1004
  %1006 = vmatpush1.msra.mxu0 %v1005
  %1007 = vmatprep.subr.mxu0 0.0
  %v1008 = vand.u32 %v822, 4294901760
  %v1009 = vsub.f32 %v822, %v1008
  %1010 = vmatpush1.msra.mxu0 %v1009
  %1011 = vmatprep.subr.mxu0 0.0
  %v1012 = vand.u32 %v823, 4294901760
  %v1013 = vsub.f32 %v823, %v1012
  %1014 = vmatpush1.msra.mxu0 %v1013
  %1015 = vmatprep.subr.mxu0 0.0
  %1016 = vmatpush1.msra.mxu0 0.0
  %1017 = vmatprep.subr.mxu0 0.0
  %1018 = vmatpush1.msra.mxu0 0.0
  %1019 = vmatprep.subr.mxu0 0.0
  %1020 = vmatpush1.msra.mxu0 0.0
  %1021 = vmatprep.subr.mxu0 0.0
  %1022 = vmatpush1.msra.mxu0 0.0
  %1023 = vmatprep.subr.mxu0 0.0
  %1024 = vmatpush1.msra.mxu0 0.0
  %1025 = vmatprep.subr.mxu0 0.0
  %1026 = vmatpush1.msra.mxu0 0.0
  %1027 = vmatprep.subr.mxu0 0.0
  %1028 = vmatpush1.msra.mxu0 0.0
  %1029 = vmatprep.subr.mxu0 0.0
  %1030 = vmatpush1.msra.mxu0 0.0
  %1031 = vmatprep.subr.mxu0 0.0
  %1032 = vmatpush1.msra.mxu0 0.0
  %1033 = vmatprep.subr.mxu0 0.0
  %1034 = vmatpush1.msra.mxu0 0.0
  %1035 = vmatprep.subr.mxu0 0.0
  %1036 = vmatpush1.msra.mxu0 0.0
  %1037 = vmatprep.subr.mxu0 0.0
  %1038 = vmatpush1.msra.mxu0 0.0
  %1039 = vmatprep.subr.mxu0 0.0
  %1040 = vmatpush1.msra.mxu0 0.0
  %1041 = vmatprep.subr.mxu0 0.0
  %1042 = vmatpush1.msra.mxu0 0.0
  %1043 = vmatprep.subr.mxu0 0.0
  %1044 = vmatpush1.msra.mxu0 0.0
  %1045 = vmatprep.subr.mxu0 0.0
  %1046 = vmatpush1.msra.mxu0 0.0
  %1047 = vmatprep.subr.mxu0 0.0
  %1048 = vmatpush1.msra.mxu0 0.0
  %1049 = vmatprep.subr.mxu0 0.0
  %1050 = vmatpush1.msra.mxu0 0.0
  %1051 = vmatprep.subr.mxu0 0.0
  %1052 = vmatpush1.msra.mxu0 0.0
  %1053 = vmatprep.subr.mxu0 0.0
  %1054 = vmatpush1.msra.mxu0 0.0
  %1055 = vmatprep.subr.mxu0 0.0
  %1056 = vmatpush1.msra.mxu0 0.0
  %1057 = vmatprep.subr.mxu0 0.0
  %1058 = vmatpush1.msra.mxu0 0.0
  %1059 = vmatprep.subr.mxu0 0.0
  %1060 = vmatpush1.msra.mxu0 0.0
  %1061 = vmatprep.subr.mxu0 0.0
  %1062 = vmatpush1.msra.mxu0 0.0
  %1063 = vmatprep.subr.mxu0 0.0
  %1064 = vmatpush1.msra.mxu0 0.0
  %1065 = vmatprep.subr.mxu0 0.0
  %1066 = vmatpush1.msra.mxu0 0.0
  %1067 = vmatprep.subr.mxu0 0.0
  %1068 = vmatpush1.msra.mxu0 0.0
  %1069 = vmatprep.subr.mxu0 0.0
  %1070 = vmatpush1.msra.mxu0 0.0
  %1071 = vmatprep.mubr.f32.mxu0 0.0
  %v1072 = vand.u32 %v827, 4294901760
  %v1073 = vsub.f32 %v827, %v1072
  %1074 = vmatmul.mubr.f32.gmra.mrb[0].mxu0 %v1073
  %v1075 = vpop.f32.mrb[0].mxu0
  %v1076 = vadd.f32 %v996, %v1075
  %v1077 = vpop.f32.mrb[0].mxu0
  %1078 = vdwg.mxu0
  %1079 = vmatprep.subr.mxu0 0.0
  %v1080 = vand.u32 %v820, 4294901760
  %1081 = vmatpush1.msra.mxu0 %v1080
  %1082 = vmatprep.subr.mxu0 0.0
  %v1083 = vand.u32 %v821, 4294901760
  %1084 = vmatpush1.msra.mxu0 %v1083
  %1085 = vmatprep.subr.mxu0 0.0
  %v1086 = vand.u32 %v822, 4294901760
  %1087 = vmatpush1.msra.mxu0 %v1086
  %1088 = vmatprep.subr.mxu0 0.0
  %v1089 = vand.u32 %v823, 4294901760
  %1090 = vmatpush1.msra.mxu0 %v1089
  %1091 = vmatprep.subr.mxu0 0.0
  %1092 = vmatpush1.msra.mxu0 0.0
  %1093 = vmatprep.subr.mxu0 0.0
  %1094 = vmatpush1.msra.mxu0 0.0
  %1095 = vmatprep.subr.mxu0 0.0
  %1096 = vmatpush1.msra.mxu0 0.0
  %1097 = vmatprep.subr.mxu0 0.0
  %1098 = vmatpush1.msra.mxu0 0.0
  %1099 = vmatprep.subr.mxu0 0.0
  %1100 = vmatpush1.msra.mxu0 0.0
  %1101 = vmatprep.subr.mxu0 0.0
  %1102 = vmatpush1.msra.mxu0 0.0
  %1103 = vmatprep.subr.mxu0 0.0
  %1104 = vmatpush1.msra.mxu0 0.0
  %1105 = vmatprep.subr.mxu0 0.0
  %1106 = vmatpush1.msra.mxu0 0.0
  %1107 = vmatprep.subr.mxu0 0.0
  %1108 = vmatpush1.msra.mxu0 0.0
  %1109 = vmatprep.subr.mxu0 0.0
  %1110 = vmatpush1.msra.mxu0 0.0
  %1111 = vmatprep.subr.mxu0 0.0
  %1112 = vmatpush1.msra.mxu0 0.0
  %1113 = vmatprep.subr.mxu0 0.0
  %1114 = vmatpush1.msra.mxu0 0.0
  %1115 = vmatprep.subr.mxu0 0.0
  %1116 = vmatpush1.msra.mxu0 0.0
  %1117 = vmatprep.subr.mxu0 0.0
  %1118 = vmatpush1.msra.mxu0 0.0
  %1119 = vmatprep.subr.mxu0 0.0
  %1120 = vmatpush1.msra.mxu0 0.0
  %1121 = vmatprep.subr.mxu0 0.0
  %1122 = vmatpush1.msra.mxu0 0.0
  %1123 = vmatprep.subr.mxu0 0.0
  %1124 = vmatpush1.msra.mxu0 0.0
  %1125 = vmatprep.subr.mxu0 0.0
  %1126 = vmatpush1.msra.mxu0 0.0
  %1127 = vmatprep.subr.mxu0 0.0
  %1128 = vmatpush1.msra.mxu0 0.0
  %1129 = vmatprep.subr.mxu0 0.0
  %1130 = vmatpush1.msra.mxu0 0.0
  %1131 = vmatprep.subr.mxu0 0.0
  %1132 = vmatpush1.msra.mxu0 0.0
  %1133 = vmatprep.subr.mxu0 0.0
  %1134 = vmatpush1.msra.mxu0 0.0
  %1135 = vmatprep.subr.mxu0 0.0
  %1136 = vmatpush1.msra.mxu0 0.0
  %1137 = vmatprep.subr.mxu0 0.0
  %1138 = vmatpush1.msra.mxu0 0.0
  %1139 = vmatprep.subr.mxu0 0.0
  %1140 = vmatpush1.msra.mxu0 0.0
  %1141 = vmatprep.subr.mxu0 0.0
  %1142 = vmatpush1.msra.mxu0 0.0
  %1143 = vmatprep.subr.mxu0 0.0
  %1144 = vmatpush1.msra.mxu0 0.0
  %1145 = vmatprep.subr.mxu0 0.0
  %1146 = vmatpush1.msra.mxu0 0.0
  %1147 = vmatprep.mubr.f32.mxu0 0.0
  %v1148 = vand.u32 %v827, 4294901760
  %v1149 = vsub.f32 %v827, %v1148
  %v1150 = vand.u32 %v1149, 4294901760
  %1151 = vmatmul.mubr.f32.gmra.mrb[0].mxu0 %v1150
  %v1152 = vpop.f32.mrb[0].mxu0
  %v1153 = vadd.f32 %v1076, %v1152
  %v1154 = vpop.f32.mrb[0].mxu0
  %1155 = vdwg.mxu0
  %1156 = vmatprep.subr.mxu0 0.0
  %v1157 = vand.u32 %v820, 4294901760
  %v1158 = vsub.f32 %v820, %v1157
  %v1159 = vand.u32 %v1158, 4294901760
  %1160 = vmatpush1.msra.mxu0 %v1159
  %1161 = vmatprep.subr.mxu0 0.0
  %v1162 = vand.u32 %v821, 4294901760
  %v1163 = vsub.f32 %v821, %v1162
  %v1164 = vand.u32 %v1163, 4294901760
  %1165 = vmatpush1.msra.mxu0 %v1164
  %1166 = vmatprep.subr.mxu0 0.0
  %v1167 = vand.u32 %v822, 4294901760
  %v1168 = vsub.f32 %v822, %v1167
  %v1169 = vand.u32 %v1168, 4294901760
  %1170 = vmatpush1.msra.mxu0 %v1169
  %1171 = vmatprep.subr.mxu0 0.0
  %v1172 = vand.u32 %v823, 4294901760
  %v1173 = vsub.f32 %v823, %v1172
  %v1174 = vand.u32 %v1173, 4294901760
  %1175 = vmatpush1.msra.mxu0 %v1174
  %1176 = vmatprep.subr.mxu0 0.0
  %1177 = vmatpush1.msra.mxu0 0.0
  %1178 = vmatprep.subr.mxu0 0.0
  %1179 = vmatpush1.msra.mxu0 0.0
  %1180 = vmatprep.subr.mxu0 0.0
  %1181 = vmatpush1.msra.mxu0 0.0
  %1182 = vmatprep.subr.mxu0 0.0
  %1183 = vmatpush1.msra.mxu0 0.0
  %1184 = vmatprep.subr.mxu0 0.0
  %1185 = vmatpush1.msra.mxu0 0.0
  %1186 = vmatprep.subr.mxu0 0.0
  %1187 = vmatpush1.msra.mxu0 0.0
  %1188 = vmatprep.subr.mxu0 0.0
  %1189 = vmatpush1.msra.mxu0 0.0
  %1190 = vmatprep.subr.mxu0 0.0
  %1191 = vmatpush1.msra.mxu0 0.0
  %1192 = vmatprep.subr.mxu0 0.0
  %1193 = vmatpush1.msra.mxu0 0.0
  %1194 = vmatprep.subr.mxu0 0.0
  %1195 = vmatpush1.msra.mxu0 0.0
  %1196 = vmatprep.subr.mxu0 0.0
  %1197 = vmatpush1.msra.mxu0 0.0
  %1198 = vmatprep.subr.mxu0 0.0
  %1199 = vmatpush1.msra.mxu0 0.0
  %1200 = vmatprep.subr.mxu0 0.0
  %1201 = vmatpush1.msra.mxu0 0.0
  %1202 = vmatprep.subr.mxu0 0.0
  %1203 = vmatpush1.msra.mxu0 0.0
  %1204 = vmatprep.subr.mxu0 0.0
  %1205 = vmatpush1.msra.mxu0 0.0
  %1206 = vmatprep.subr.mxu0 0.0
  %1207 = vmatpush1.msra.mxu0 0.0
  %1208 = vmatprep.subr.mxu0 0.0
  %1209 = vmatpush1.msra.mxu0 0.0
  %1210 = vmatprep.subr.mxu0 0.0
  %1211 = vmatpush1.msra.mxu0 0.0
  %1212 = vmatprep.subr.mxu0 0.0
  %1213 = vmatpush1.msra.mxu0 0.0
  %1214 = vmatprep.subr.mxu0 0.0
  %1215 = vmatpush1.msra.mxu0 0.0
  %1216 = vmatprep.subr.mxu0 0.0
  %1217 = vmatpush1.msra.mxu0 0.0
  %1218 = vmatprep.subr.mxu0 0.0
  %1219 = vmatpush1.msra.mxu0 0.0
  %1220 = vmatprep.subr.mxu0 0.0
  %1221 = vmatpush1.msra.mxu0 0.0
  %1222 = vmatprep.subr.mxu0 0.0
  %1223 = vmatpush1.msra.mxu0 0.0
  %1224 = vmatprep.subr.mxu0 0.0
  %1225 = vmatpush1.msra.mxu0 0.0
  %1226 = vmatprep.subr.mxu0 0.0
  %1227 = vmatpush1.msra.mxu0 0.0
  %1228 = vmatprep.subr.mxu0 0.0
  %1229 = vmatpush1.msra.mxu0 0.0
  %1230 = vmatprep.subr.mxu0 0.0
  %1231 = vmatpush1.msra.mxu0 0.0
  %1232 = vmatprep.mubr.f32.mxu0 0.0
  %v1233 = vand.u32 %v827, 4294901760
  %1234 = vmatmul.mubr.f32.gmra.mrb[0].mxu0 %v1233
  %v1235 = vpop.f32.mrb[0].mxu0
  %v1236 = vadd.f32 %v1153, %v1235
  %v1237 = vpop.f32.mrb[0].mxu0
  %1238 = vdwg.mxu0
  %1239 = vmatprep.subr.mxu0 0.0
  %v1240 = vand.u32 %v820, 4294901760
  %1241 = vmatpush1.msra.mxu0 %v1240
  %1242 = vmatprep.subr.mxu0 0.0
  %v1243 = vand.u32 %v821, 4294901760
  %1244 = vmatpush1.msra.mxu0 %v1243
  %1245 = vmatprep.subr.mxu0 0.0
  %v1246 = vand.u32 %v822, 4294901760
  %1247 = vmatpush1.msra.mxu0 %v1246
  %1248 = vmatprep.subr.mxu0 0.0
  %v1249 = vand.u32 %v823, 4294901760
  %1250 = vmatpush1.msra.mxu0 %v1249
  %1251 = vmatprep.subr.mxu0 0.0
  %1252 = vmatpush1.msra.mxu0 0.0
  %1253 = vmatprep.subr.mxu0 0.0
  %1254 = vmatpush1.msra.mxu0 0.0
  %1255 = vmatprep.subr.mxu0 0.0
  %1256 = vmatpush1.msra.mxu0 0.0
  %1257 = vmatprep.subr.mxu0 0.0
  %1258 = vmatpush1.msra.mxu0 0.0
  %1259 = vmatprep.subr.mxu0 0.0
  %1260 = vmatpush1.msra.mxu0 0.0
  %1261 = vmatprep.subr.mxu0 0.0
  %1262 = vmatpush1.msra.mxu0 0.0
  %1263 = vmatprep.subr.mxu0 0.0
  %1264 = vmatpush1.msra.mxu0 0.0
  %1265 = vmatprep.subr.mxu0 0.0
  %1266 = vmatpush1.msra.mxu0 0.0
  %1267 = vmatprep.subr.mxu0 0.0
  %1268 = vmatpush1.msra.mxu0 0.0
  %1269 = vmatprep.subr.mxu0 0.0
  %1270 = vmatpush1.msra.mxu0 0.0
  %1271 = vmatprep.subr.mxu0 0.0
  %1272 = vmatpush1.msra.mxu0 0.0
  %1273 = vmatprep.subr.mxu0 0.0
  %1274 = vmatpush1.msra.mxu0 0.0
  %1275 = vmatprep.subr.mxu0 0.0
  %1276 = vmatpush1.msra.mxu0 0.0
  %1277 = vmatprep.subr.mxu0 0.0
  %1278 = vmatpush1.msra.mxu0 0.0
  %1279 = vmatprep.subr.mxu0 0.0
  %1280 = vmatpush1.msra.mxu0 0.0
  %1281 = vmatprep.subr.mxu0 0.0
  %1282 = vmatpush1.msra.mxu0 0.0
  %1283 = vmatprep.subr.mxu0 0.0
  %1284 = vmatpush1.msra.mxu0 0.0
  %1285 = vmatprep.subr.mxu0 0.0
  %1286 = vmatpush1.msra.mxu0 0.0
  %1287 = vmatprep.subr.mxu0 0.0
  %1288 = vmatpush1.msra.mxu0 0.0
  %1289 = vmatprep.subr.mxu0 0.0
  %1290 = vmatpush1.msra.mxu0 0.0
  %1291 = vmatprep.subr.mxu0 0.0
  %1292 = vmatpush1.msra.mxu0 0.0
  %1293 = vmatprep.subr.mxu0 0.0
  %1294 = vmatpush1.msra.mxu0 0.0
  %1295 = vmatprep.subr.mxu0 0.0
  %1296 = vmatpush1.msra.mxu0 0.0
  %1297 = vmatprep.subr.mxu0 0.0
  %1298 = vmatpush1.msra.mxu0 0.0
  %1299 = vmatprep.subr.mxu0 0.0
  %1300 = vmatpush1.msra.mxu0 0.0
  %1301 = vmatprep.subr.mxu0 0.0
  %1302 = vmatpush1.msra.mxu0 0.0
  %1303 = vmatprep.subr.mxu0 0.0
  %1304 = vmatpush1.msra.mxu0 0.0
  %1305 = vmatprep.subr.mxu0 0.0
  %1306 = vmatpush1.msra.mxu0 0.0
  %1307 = vmatprep.mubr.f32.mxu0 0.0
  %v1308 = vand.u32 %v827, 4294901760
  %1309 = vmatmul.mubr.f32.gmra.mrb[0].mxu0 %v1308
  %v1310 = vpop.f32.mrb[0].mxu0
  %v1311 = vadd.f32 %v1236, %v1310
  %v1312 = vpop.f32.mrb[0].mxu0
  %1313 = vdwg.mxu0
  %v1314 = vtanh.pop %v1311
  %v1316 = vsel %vm825, %v1314, 0
  %1318 = vmatprep.subr.mxu0 0.0
  %v1319 = vand.u32 %v820, 4294901760
  %1320 = vmatpush1.msra.mxu0 %v1319
  %1321 = vmatprep.subr.mxu0 0.0
  %v1322 = vand.u32 %v821, 4294901760
  %1323 = vmatpush1.msra.mxu0 %v1322
  %1324 = vmatprep.subr.mxu0 0.0
  %v1325 = vand.u32 %v822, 4294901760
  %1326 = vmatpush1.msra.mxu0 %v1325
  %1327 = vmatprep.subr.mxu0 0.0
  %v1328 = vand.u32 %v823, 4294901760
  %1329 = vmatpush1.msra.mxu0 %v1328
  %1330 = vmatprep.subr.mxu0 0.0
  %1331 = vmatpush1.msra.mxu0 0.0
  %1332 = vmatprep.subr.mxu0 0.0
  %1333 = vmatpush1.msra.mxu0 0.0
  %1334 = vmatprep.subr.mxu0 0.0
  %1335 = vmatpush1.msra.mxu0 0.0
  %1336 = vmatprep.subr.mxu0 0.0
  %1337 = vmatpush1.msra.mxu0 0.0
  %1338 = vmatprep.subr.mxu0 0.0
  %1339 = vmatpush1.msra.mxu0 0.0
  %1340 = vmatprep.subr.mxu0 0.0
  %1341 = vmatpush1.msra.mxu0 0.0
  %1342 = vmatprep.subr.mxu0 0.0
  %1343 = vmatpush1.msra.mxu0 0.0
  %1344 = vmatprep.subr.mxu0 0.0
  %1345 = vmatpush1.msra.mxu0 0.0
  %1346 = vmatprep.subr.mxu0 0.0
  %1347 = vmatpush1.msra.mxu0 0.0
  %1348 = vmatprep.subr.mxu0 0.0
  %1349 = vmatpush1.msra.mxu0 0.0
  %1350 = vmatprep.subr.mxu0 0.0
  %1351 = vmatpush1.msra.mxu0 0.0
  %1352 = vmatprep.subr.mxu0 0.0
  %1353 = vmatpush1.msra.mxu0 0.0
  %1354 = vmatprep.subr.mxu0 0.0
  %1355 = vmatpush1.msra.mxu0 0.0
  %1356 = vmatprep.subr.mxu0 0.0
  %1357 = vmatpush1.msra.mxu0 0.0
  %1358 = vmatprep.subr.mxu0 0.0
  %1359 = vmatpush1.msra.mxu0 0.0
  %1360 = vmatprep.subr.mxu0 0.0
  %1361 = vmatpush1.msra.mxu0 0.0
  %1362 = vmatprep.subr.mxu0 0.0
  %1363 = vmatpush1.msra.mxu0 0.0
  %1364 = vmatprep.subr.mxu0 0.0
  %1365 = vmatpush1.msra.mxu0 0.0
  %1366 = vmatprep.subr.mxu0 0.0
  %1367 = vmatpush1.msra.mxu0 0.0
  %1368 = vmatprep.subr.mxu0 0.0
  %1369 = vmatpush1.msra.mxu0 0.0
  %1370 = vmatprep.subr.mxu0 0.0
  %1371 = vmatpush1.msra.mxu0 0.0
  %1372 = vmatprep.subr.mxu0 0.0
  %1373 = vmatpush1.msra.mxu0 0.0
  %1374 = vmatprep.subr.mxu0 0.0
  %1375 = vmatpush1.msra.mxu0 0.0
  %1376 = vmatprep.subr.mxu0 0.0
  %1377 = vmatpush1.msra.mxu0 0.0
  %1378 = vmatprep.subr.mxu0 0.0
  %1379 = vmatpush1.msra.mxu0 0.0
  %1380 = vmatprep.subr.mxu0 0.0
  %1381 = vmatpush1.msra.mxu0 0.0
  %1382 = vmatprep.subr.mxu0 0.0
  %1383 = vmatpush1.msra.mxu0 0.0
  %1384 = vmatprep.subr.mxu0 0.0
  %1385 = vmatpush1.msra.mxu0 0.0
  %1386 = vmatprep.mubr.f32.mxu0 0.0
  %v1387 = vand.u32 %v1316, 4294901760
  %v1388 = vsub.f32 %v1316, %v1387
  %v1389 = vand.u32 %v1388, 4294901760
  %v1390 = vsub.f32 %v1388, %v1389
  %v1391 = vand.u32 %v1390, 4294901760
  %1392 = vmatmul.mubr.f32.gmra.mrb[0].mxu0 %v1391
  %v1393 = vpop.f32.mrb[0].mxu0
  %v1394 = vadd.f32 %v781, %v1393
  %v1395 = vpop.f32.mrb[0].mxu0
  %1396 = vdwg.mxu0
  %1397 = vmatprep.subr.mxu0 0.0
  %v1398 = vand.u32 %v820, 4294901760
  %v1399 = vsub.f32 %v820, %v1398
  %v1400 = vand.u32 %v1399, 4294901760
  %v1401 = vsub.f32 %v1399, %v1400
  %v1402 = vand.u32 %v1401, 4294901760
  %1403 = vmatpush1.msra.mxu0 %v1402
  %1404 = vmatprep.subr.mxu0 0.0
  %v1405 = vand.u32 %v821, 4294901760
  %v1406 = vsub.f32 %v821, %v1405
  %v1407 = vand.u32 %v1406, 4294901760
  %v1408 = vsub.f32 %v1406, %v1407
  %v1409 = vand.u32 %v1408, 4294901760
  %1410 = vmatpush1.msra.mxu0 %v1409
  %1411 = vmatprep.subr.mxu0 0.0
  %v1412 = vand.u32 %v822, 4294901760
  %v1413 = vsub.f32 %v822, %v1412
  %v1414 = vand.u32 %v1413, 4294901760
  %v1415 = vsub.f32 %v1413, %v1414
  %v1416 = vand.u32 %v1415, 4294901760
  %1417 = vmatpush1.msra.mxu0 %v1416
  %1418 = vmatprep.subr.mxu0 0.0
  %v1419 = vand.u32 %v823, 4294901760
  %v1420 = vsub.f32 %v823, %v1419
  %v1421 = vand.u32 %v1420, 4294901760
  %v1422 = vsub.f32 %v1420, %v1421
  %v1423 = vand.u32 %v1422, 4294901760
  %1424 = vmatpush1.msra.mxu0 %v1423
  %1425 = vmatprep.subr.mxu0 0.0
  %1426 = vmatpush1.msra.mxu0 0.0
  %1427 = vmatprep.subr.mxu0 0.0
  %1428 = vmatpush1.msra.mxu0 0.0
  %1429 = vmatprep.subr.mxu0 0.0
  %1430 = vmatpush1.msra.mxu0 0.0
  %1431 = vmatprep.subr.mxu0 0.0
  %1432 = vmatpush1.msra.mxu0 0.0
  %1433 = vmatprep.subr.mxu0 0.0
  %1434 = vmatpush1.msra.mxu0 0.0
  %1435 = vmatprep.subr.mxu0 0.0
  %1436 = vmatpush1.msra.mxu0 0.0
  %1437 = vmatprep.subr.mxu0 0.0
  %1438 = vmatpush1.msra.mxu0 0.0
  %1439 = vmatprep.subr.mxu0 0.0
  %1440 = vmatpush1.msra.mxu0 0.0
  %1441 = vmatprep.subr.mxu0 0.0
  %1442 = vmatpush1.msra.mxu0 0.0
  %1443 = vmatprep.subr.mxu0 0.0
  %1444 = vmatpush1.msra.mxu0 0.0
  %1445 = vmatprep.subr.mxu0 0.0
  %1446 = vmatpush1.msra.mxu0 0.0
  %1447 = vmatprep.subr.mxu0 0.0
  %1448 = vmatpush1.msra.mxu0 0.0
  %1449 = vmatprep.subr.mxu0 0.0
  %1450 = vmatpush1.msra.mxu0 0.0
  %1451 = vmatprep.subr.mxu0 0.0
  %1452 = vmatpush1.msra.mxu0 0.0
  %1453 = vmatprep.subr.mxu0 0.0
  %1454 = vmatpush1.msra.mxu0 0.0
  %1455 = vmatprep.subr.mxu0 0.0
  %1456 = vmatpush1.msra.mxu0 0.0
  %1457 = vmatprep.subr.mxu0 0.0
  %1458 = vmatpush1.msra.mxu0 0.0
  %1459 = vmatprep.subr.mxu0 0.0
  %1460 = vmatpush1.msra.mxu0 0.0
  %1461 = vmatprep.subr.mxu0 0.0
  %1462 = vmatpush1.msra.mxu0 0.0
  %1463 = vmatprep.subr.mxu0 0.0
  %1464 = vmatpush1.msra.mxu0 0.0
  %1465 = vmatprep.subr.mxu0 0.0
  %1466 = vmatpush1.msra.mxu0 0.0
  %1467 = vmatprep.subr.mxu0 0.0
  %1468 = vmatpush1.msra.mxu0 0.0
  %1469 = vmatprep.subr.mxu0 0.0
  %1470 = vmatpush1.msra.mxu0 0.0
  %1471 = vmatprep.subr.mxu0 0.0
  %1472 = vmatpush1.msra.mxu0 0.0
  %1473 = vmatprep.subr.mxu0 0.0
  %1474 = vmatpush1.msra.mxu0 0.0
  %1475 = vmatprep.subr.mxu0 0.0
  %1476 = vmatpush1.msra.mxu0 0.0
  %1477 = vmatprep.subr.mxu0 0.0
  %1478 = vmatpush1.msra.mxu0 0.0
  %1479 = vmatprep.subr.mxu0 0.0
  %1480 = vmatpush1.msra.mxu0 0.0
  %1481 = vmatprep.mubr.f32.mxu0 0.0
  %v1482 = vand.u32 %v1316, 4294901760
  %1483 = vmatmul.mubr.f32.gmra.mrb[0].mxu0 %v1482
  %v1484 = vpop.f32.mrb[0].mxu0
  %v1485 = vadd.f32 %v1394, %v1484
  %v1486 = vpop.f32.mrb[0].mxu0
  %1487 = vdwg.mxu0
  %1488 = vmatprep.subr.mxu0 0.0
  %v1489 = vand.u32 %v820, 4294901760
  %v1490 = vsub.f32 %v820, %v1489
  %1491 = vmatpush1.msra.mxu0 %v1490
  %1492 = vmatprep.subr.mxu0 0.0
  %v1493 = vand.u32 %v821, 4294901760
  %v1494 = vsub.f32 %v821, %v1493
  %1495 = vmatpush1.msra.mxu0 %v1494
  %1496 = vmatprep.subr.mxu0 0.0
  %v1497 = vand.u32 %v822, 4294901760
  %v1498 = vsub.f32 %v822, %v1497
  %1499 = vmatpush1.msra.mxu0 %v1498
  %1500 = vmatprep.subr.mxu0 0.0
  %v1501 = vand.u32 %v823, 4294901760
  %v1502 = vsub.f32 %v823, %v1501
  %1503 = vmatpush1.msra.mxu0 %v1502
  %1504 = vmatprep.subr.mxu0 0.0
  %1505 = vmatpush1.msra.mxu0 0.0
  %1506 = vmatprep.subr.mxu0 0.0
  %1507 = vmatpush1.msra.mxu0 0.0
  %1508 = vmatprep.subr.mxu0 0.0
  %1509 = vmatpush1.msra.mxu0 0.0
  %1510 = vmatprep.subr.mxu0 0.0
  %1511 = vmatpush1.msra.mxu0 0.0
  %1512 = vmatprep.subr.mxu0 0.0
  %1513 = vmatpush1.msra.mxu0 0.0
  %1514 = vmatprep.subr.mxu0 0.0
  %1515 = vmatpush1.msra.mxu0 0.0
  %1516 = vmatprep.subr.mxu0 0.0
  %1517 = vmatpush1.msra.mxu0 0.0
  %1518 = vmatprep.subr.mxu0 0.0
  %1519 = vmatpush1.msra.mxu0 0.0
  %1520 = vmatprep.subr.mxu0 0.0
  %1521 = vmatpush1.msra.mxu0 0.0
  %1522 = vmatprep.subr.mxu0 0.0
  %1523 = vmatpush1.msra.mxu0 0.0
  %1524 = vmatprep.subr.mxu0 0.0
  %1525 = vmatpush1.msra.mxu0 0.0
  %1526 = vmatprep.subr.mxu0 0.0
  %1527 = vmatpush1.msra.mxu0 0.0
  %1528 = vmatprep.subr.mxu0 0.0
  %1529 = vmatpush1.msra.mxu0 0.0
  %1530 = vmatprep.subr.mxu0 0.0
  %1531 = vmatpush1.msra.mxu0 0.0
  %1532 = vmatprep.subr.mxu0 0.0
  %1533 = vmatpush1.msra.mxu0 0.0
  %1534 = vmatprep.subr.mxu0 0.0
  %1535 = vmatpush1.msra.mxu0 0.0
  %1536 = vmatprep.subr.mxu0 0.0
  %1537 = vmatpush1.msra.mxu0 0.0
  %1538 = vmatprep.subr.mxu0 0.0
  %1539 = vmatpush1.msra.mxu0 0.0
  %1540 = vmatprep.subr.mxu0 0.0
  %1541 = vmatpush1.msra.mxu0 0.0
  %1542 = vmatprep.subr.mxu0 0.0
  %1543 = vmatpush1.msra.mxu0 0.0
  %1544 = vmatprep.subr.mxu0 0.0
  %1545 = vmatpush1.msra.mxu0 0.0
  %1546 = vmatprep.subr.mxu0 0.0
  %1547 = vmatpush1.msra.mxu0 0.0
  %1548 = vmatprep.subr.mxu0 0.0
  %1549 = vmatpush1.msra.mxu0 0.0
  %1550 = vmatprep.subr.mxu0 0.0
  %1551 = vmatpush1.msra.mxu0 0.0
  %1552 = vmatprep.subr.mxu0 0.0
  %1553 = vmatpush1.msra.mxu0 0.0
  %1554 = vmatprep.subr.mxu0 0.0
  %1555 = vmatpush1.msra.mxu0 0.0
  %1556 = vmatprep.subr.mxu0 0.0
  %1557 = vmatpush1.msra.mxu0 0.0
  %1558 = vmatprep.subr.mxu0 0.0
  %1559 = vmatpush1.msra.mxu0 0.0
  %1560 = vmatprep.mubr.f32.mxu0 0.0
  %v1561 = vand.u32 %v1316, 4294901760
  %v1562 = vsub.f32 %v1316, %v1561
  %1563 = vmatmul.mubr.f32.gmra.mrb[0].mxu0 %v1562
  %v1564 = vpop.f32.mrb[0].mxu0
  %v1565 = vadd.f32 %v1485, %v1564
  %v1566 = vpop.f32.mrb[0].mxu0
  %1567 = vdwg.mxu0
  %1568 = vmatprep.subr.mxu0 0.0
  %v1569 = vand.u32 %v820, 4294901760
  %1570 = vmatpush1.msra.mxu0 %v1569
  %1571 = vmatprep.subr.mxu0 0.0
  %v1572 = vand.u32 %v821, 4294901760
  %1573 = vmatpush1.msra.mxu0 %v1572
  %1574 = vmatprep.subr.mxu0 0.0
  %v1575 = vand.u32 %v822, 4294901760
  %1576 = vmatpush1.msra.mxu0 %v1575
  %1577 = vmatprep.subr.mxu0 0.0
  %v1578 = vand.u32 %v823, 4294901760
  %1579 = vmatpush1.msra.mxu0 %v1578
  %1580 = vmatprep.subr.mxu0 0.0
  %1581 = vmatpush1.msra.mxu0 0.0
  %1582 = vmatprep.subr.mxu0 0.0
  %1583 = vmatpush1.msra.mxu0 0.0
  %1584 = vmatprep.subr.mxu0 0.0
  %1585 = vmatpush1.msra.mxu0 0.0
  %1586 = vmatprep.subr.mxu0 0.0
  %1587 = vmatpush1.msra.mxu0 0.0
  %1588 = vmatprep.subr.mxu0 0.0
  %1589 = vmatpush1.msra.mxu0 0.0
  %1590 = vmatprep.subr.mxu0 0.0
  %1591 = vmatpush1.msra.mxu0 0.0
  %1592 = vmatprep.subr.mxu0 0.0
  %1593 = vmatpush1.msra.mxu0 0.0
  %1594 = vmatprep.subr.mxu0 0.0
  %1595 = vmatpush1.msra.mxu0 0.0
  %1596 = vmatprep.subr.mxu0 0.0
  %1597 = vmatpush1.msra.mxu0 0.0
  %1598 = vmatprep.subr.mxu0 0.0
  %1599 = vmatpush1.msra.mxu0 0.0
  %1600 = vmatprep.subr.mxu0 0.0
  %1601 = vmatpush1.msra.mxu0 0.0
  %1602 = vmatprep.subr.mxu0 0.0
  %1603 = vmatpush1.msra.mxu0 0.0
  %1604 = vmatprep.subr.mxu0 0.0
  %1605 = vmatpush1.msra.mxu0 0.0
  %1606 = vmatprep.subr.mxu0 0.0
  %1607 = vmatpush1.msra.mxu0 0.0
  %1608 = vmatprep.subr.mxu0 0.0
  %1609 = vmatpush1.msra.mxu0 0.0
  %1610 = vmatprep.subr.mxu0 0.0
  %1611 = vmatpush1.msra.mxu0 0.0
  %1612 = vmatprep.subr.mxu0 0.0
  %1613 = vmatpush1.msra.mxu0 0.0
  %1614 = vmatprep.subr.mxu0 0.0
  %1615 = vmatpush1.msra.mxu0 0.0
  %1616 = vmatprep.subr.mxu0 0.0
  %1617 = vmatpush1.msra.mxu0 0.0
  %1618 = vmatprep.subr.mxu0 0.0
  %1619 = vmatpush1.msra.mxu0 0.0
  %1620 = vmatprep.subr.mxu0 0.0
  %1621 = vmatpush1.msra.mxu0 0.0
  %1622 = vmatprep.subr.mxu0 0.0
  %1623 = vmatpush1.msra.mxu0 0.0
  %1624 = vmatprep.subr.mxu0 0.0
  %1625 = vmatpush1.msra.mxu0 0.0
  %1626 = vmatprep.subr.mxu0 0.0
  %1627 = vmatpush1.msra.mxu0 0.0
  %1628 = vmatprep.subr.mxu0 0.0
  %1629 = vmatpush1.msra.mxu0 0.0
  %1630 = vmatprep.subr.mxu0 0.0
  %1631 = vmatpush1.msra.mxu0 0.0
  %1632 = vmatprep.subr.mxu0 0.0
  %1633 = vmatpush1.msra.mxu0 0.0
  %1634 = vmatprep.subr.mxu0 0.0
  %1635 = vmatpush1.msra.mxu0 0.0
  %1636 = vmatprep.mubr.f32.mxu0 0.0
  %v1637 = vand.u32 %v1316, 4294901760
  %v1638 = vsub.f32 %v1316, %v1637
  %v1639 = vand.u32 %v1638, 4294901760
  %1640 = vmatmul.mubr.f32.gmra.mrb[0].mxu0 %v1639
  %v1641 = vpop.f32.mrb[0].mxu0
  %v1642 = vadd.f32 %v1565, %v1641
  %v1643 = vpop.f32.mrb[0].mxu0
  %1644 = vdwg.mxu0
  %1645 = vmatprep.subr.mxu0 0.0
  %v1646 = vand.u32 %v820, 4294901760
  %v1647 = vsub.f32 %v820, %v1646
  %v1648 = vand.u32 %v1647, 4294901760
  %1649 = vmatpush1.msra.mxu0 %v1648
  %1650 = vmatprep.subr.mxu0 0.0
  %v1651 = vand.u32 %v821, 4294901760
  %v1652 = vsub.f32 %v821, %v1651
  %v1653 = vand.u32 %v1652, 4294901760
  %1654 = vmatpush1.msra.mxu0 %v1653
  %1655 = vmatprep.subr.mxu0 0.0
  %v1656 = vand.u32 %v822, 4294901760
  %v1657 = vsub.f32 %v822, %v1656
  %v1658 = vand.u32 %v1657, 4294901760
  %1659 = vmatpush1.msra.mxu0 %v1658
  %1660 = vmatprep.subr.mxu0 0.0
  %v1661 = vand.u32 %v823, 4294901760
  %v1662 = vsub.f32 %v823, %v1661
  %v1663 = vand.u32 %v1662, 4294901760
  %1664 = vmatpush1.msra.mxu0 %v1663
  %1665 = vmatprep.subr.mxu0 0.0
  %1666 = vmatpush1.msra.mxu0 0.0
  %1667 = vmatprep.subr.mxu0 0.0
  %1668 = vmatpush1.msra.mxu0 0.0
  %1669 = vmatprep.subr.mxu0 0.0
  %1670 = vmatpush1.msra.mxu0 0.0
  %1671 = vmatprep.subr.mxu0 0.0
  %1672 = vmatpush1.msra.mxu0 0.0
  %1673 = vmatprep.subr.mxu0 0.0
  %1674 = vmatpush1.msra.mxu0 0.0
  %1675 = vmatprep.subr.mxu0 0.0
  %1676 = vmatpush1.msra.mxu0 0.0
  %1677 = vmatprep.subr.mxu0 0.0
  %1678 = vmatpush1.msra.mxu0 0.0
  %1679 = vmatprep.subr.mxu0 0.0
  %1680 = vmatpush1.msra.mxu0 0.0
  %1681 = vmatprep.subr.mxu0 0.0
  %1682 = vmatpush1.msra.mxu0 0.0
  %1683 = vmatprep.subr.mxu0 0.0
  %1684 = vmatpush1.msra.mxu0 0.0
  %1685 = vmatprep.subr.mxu0 0.0
  %1686 = vmatpush1.msra.mxu0 0.0
  %1687 = vmatprep.subr.mxu0 0.0
  %1688 = vmatpush1.msra.mxu0 0.0
  %1689 = vmatprep.subr.mxu0 0.0
  %1690 = vmatpush1.msra.mxu0 0.0
  %1691 = vmatprep.subr.mxu0 0.0
  %1692 = vmatpush1.msra.mxu0 0.0
  %1693 = vmatprep.subr.mxu0 0.0
  %1694 = vmatpush1.msra.mxu0 0.0
  %1695 = vmatprep.subr.mxu0 0.0
  %1696 = vmatpush1.msra.mxu0 0.0
  %1697 = vmatprep.subr.mxu0 0.0
  %1698 = vmatpush1.msra.mxu0 0.0
  %1699 = vmatprep.subr.mxu0 0.0
  %1700 = vmatpush1.msra.mxu0 0.0
  %1701 = vmatprep.subr.mxu0 0.0
  %1702 = vmatpush1.msra.mxu0 0.0
  %1703 = vmatprep.subr.mxu0 0.0
  %1704 = vmatpush1.msra.mxu0 0.0
  %1705 = vmatprep.subr.mxu0 0.0
  %1706 = vmatpush1.msra.mxu0 0.0
  %1707 = vmatprep.subr.mxu0 0.0
  %1708 = vmatpush1.msra.mxu0 0.0
  %1709 = vmatprep.subr.mxu0 0.0
  %1710 = vmatpush1.msra.mxu0 0.0
  %1711 = vmatprep.subr.mxu0 0.0
  %1712 = vmatpush1.msra.mxu0 0.0
  %1713 = vmatprep.subr.mxu0 0.0
  %1714 = vmatpush1.msra.mxu0 0.0
  %1715 = vmatprep.subr.mxu0 0.0
  %1716 = vmatpush1.msra.mxu0 0.0
  %1717 = vmatprep.subr.mxu0 0.0
  %1718 = vmatpush1.msra.mxu0 0.0
  %1719 = vmatprep.subr.mxu0 0.0
  %1720 = vmatpush1.msra.mxu0 0.0
  %1721 = vmatprep.mubr.f32.mxu0 0.0
  %v1722 = vand.u32 %v1316, 4294901760
  %1723 = vmatmul.mubr.f32.gmra.mrb[0].mxu0 %v1722
  %v1724 = vpop.f32.mrb[0].mxu0
  %v1725 = vadd.f32 %v1642, %v1724
  %v1726 = vpop.f32.mrb[0].mxu0
  %1727 = vdwg.mxu0
  %1728 = vmatprep.subr.mxu0 0.0
  %v1729 = vand.u32 %v820, 4294901760
  %1730 = vmatpush1.msra.mxu0 %v1729
  %1731 = vmatprep.subr.mxu0 0.0
  %v1732 = vand.u32 %v821, 4294901760
  %1733 = vmatpush1.msra.mxu0 %v1732
  %1734 = vmatprep.subr.mxu0 0.0
  %v1735 = vand.u32 %v822, 4294901760
  %1736 = vmatpush1.msra.mxu0 %v1735
  %1737 = vmatprep.subr.mxu0 0.0
  %v1738 = vand.u32 %v823, 4294901760
  %1739 = vmatpush1.msra.mxu0 %v1738
  %1740 = vmatprep.subr.mxu0 0.0
  %1741 = vmatpush1.msra.mxu0 0.0
  %1742 = vmatprep.subr.mxu0 0.0
  %1743 = vmatpush1.msra.mxu0 0.0
  %1744 = vmatprep.subr.mxu0 0.0
  %1745 = vmatpush1.msra.mxu0 0.0
  %1746 = vmatprep.subr.mxu0 0.0
  %1747 = vmatpush1.msra.mxu0 0.0
  %1748 = vmatprep.subr.mxu0 0.0
  %1749 = vmatpush1.msra.mxu0 0.0
  %1750 = vmatprep.subr.mxu0 0.0
  %1751 = vmatpush1.msra.mxu0 0.0
  %1752 = vmatprep.subr.mxu0 0.0
  %1753 = vmatpush1.msra.mxu0 0.0
  %1754 = vmatprep.subr.mxu0 0.0
  %1755 = vmatpush1.msra.mxu0 0.0
  %1756 = vmatprep.subr.mxu0 0.0
  %1757 = vmatpush1.msra.mxu0 0.0
  %1758 = vmatprep.subr.mxu0 0.0
  %1759 = vmatpush1.msra.mxu0 0.0
  %1760 = vmatprep.subr.mxu0 0.0
  %1761 = vmatpush1.msra.mxu0 0.0
  %1762 = vmatprep.subr.mxu0 0.0
  %1763 = vmatpush1.msra.mxu0 0.0
  %1764 = vmatprep.subr.mxu0 0.0
  %1765 = vmatpush1.msra.mxu0 0.0
  %1766 = vmatprep.subr.mxu0 0.0
  %1767 = vmatpush1.msra.mxu0 0.0
  %1768 = vmatprep.subr.mxu0 0.0
  %1769 = vmatpush1.msra.mxu0 0.0
  %1770 = vmatprep.subr.mxu0 0.0
  %1771 = vmatpush1.msra.mxu0 0.0
  %1772 = vmatprep.subr.mxu0 0.0
  %1773 = vmatpush1.msra.mxu0 0.0
  %1774 = vmatprep.subr.mxu0 0.0
  %1775 = vmatpush1.msra.mxu0 0.0
  %1776 = vmatprep.subr.mxu0 0.0
  %1777 = vmatpush1.msra.mxu0 0.0
  %1778 = vmatprep.subr.mxu0 0.0
  %1779 = vmatpush1.msra.mxu0 0.0
  %1780 = vmatprep.subr.mxu0 0.0
  %1781 = vmatpush1.msra.mxu0 0.0
  %1782 = vmatprep.subr.mxu0 0.0
  %1783 = vmatpush1.msra.mxu0 0.0
  %1784 = vmatprep.subr.mxu0 0.0
  %1785 = vmatpush1.msra.mxu0 0.0
  %1786 = vmatprep.subr.mxu0 0.0
  %1787 = vmatpush1.msra.mxu0 0.0
  %1788 = vmatprep.subr.mxu0 0.0
  %1789 = vmatpush1.msra.mxu0 0.0
  %1790 = vmatprep.subr.mxu0 0.0
  %1791 = vmatpush1.msra.mxu0 0.0
  %1792 = vmatprep.subr.mxu0 0.0
  %1793 = vmatpush1.msra.mxu0 0.0
  %1794 = vmatprep.subr.mxu0 0.0
  %1795 = vmatpush1.msra.mxu0 0.0
  %1796 = vmatprep.mubr.f32.mxu0 0.0
  %v1797 = vand.u32 %v1316, 4294901760
  %1798 = vmatmul.mubr.f32.gmra.mrb[0].mxu0 %v1797
  %v1799 = vpop.f32.mrb[0].mxu0
  %v1800 = vadd.f32 %v1725, %v1799
  %v1801 = vpop.f32.mrb[0].mxu0
  %1802 = vdwg.mxu0
  %v1803 = vtanh.pop %v1800
  %v1805 = vsel %vm825, %v1803, 0
  %1807 = vmatprep.subr.mxu0 0.0
  %v1808 = vand.u32 %v820, 4294901760
  %1809 = vmatpush1.msra.mxu0 %v1808
  %1810 = vmatprep.subr.mxu0 0.0
  %v1811 = vand.u32 %v821, 4294901760
  %1812 = vmatpush1.msra.mxu0 %v1811
  %1813 = vmatprep.subr.mxu0 0.0
  %v1814 = vand.u32 %v822, 4294901760
  %1815 = vmatpush1.msra.mxu0 %v1814
  %1816 = vmatprep.subr.mxu0 0.0
  %v1817 = vand.u32 %v823, 4294901760
  %1818 = vmatpush1.msra.mxu0 %v1817
  %1819 = vmatprep.subr.mxu0 0.0
  %1820 = vmatpush1.msra.mxu0 0.0
  %1821 = vmatprep.subr.mxu0 0.0
  %1822 = vmatpush1.msra.mxu0 0.0
  %1823 = vmatprep.subr.mxu0 0.0
  %1824 = vmatpush1.msra.mxu0 0.0
  %1825 = vmatprep.subr.mxu0 0.0
  %1826 = vmatpush1.msra.mxu0 0.0
  %1827 = vmatprep.subr.mxu0 0.0
  %1828 = vmatpush1.msra.mxu0 0.0
  %1829 = vmatprep.subr.mxu0 0.0
  %1830 = vmatpush1.msra.mxu0 0.0
  %1831 = vmatprep.subr.mxu0 0.0
  %1832 = vmatpush1.msra.mxu0 0.0
  %1833 = vmatprep.subr.mxu0 0.0
  %1834 = vmatpush1.msra.mxu0 0.0
  %1835 = vmatprep.subr.mxu0 0.0
  %1836 = vmatpush1.msra.mxu0 0.0
  %1837 = vmatprep.subr.mxu0 0.0
  %1838 = vmatpush1.msra.mxu0 0.0
  %1839 = vmatprep.subr.mxu0 0.0
  %1840 = vmatpush1.msra.mxu0 0.0
  %1841 = vmatprep.subr.mxu0 0.0
  %1842 = vmatpush1.msra.mxu0 0.0
  %1843 = vmatprep.subr.mxu0 0.0
  %1844 = vmatpush1.msra.mxu0 0.0
  %1845 = vmatprep.subr.mxu0 0.0
  %1846 = vmatpush1.msra.mxu0 0.0
  %1847 = vmatprep.subr.mxu0 0.0
  %1848 = vmatpush1.msra.mxu0 0.0
  %1849 = vmatprep.subr.mxu0 0.0
  %1850 = vmatpush1.msra.mxu0 0.0
  %1851 = vmatprep.subr.mxu0 0.0
  %1852 = vmatpush1.msra.mxu0 0.0
  %1853 = vmatprep.subr.mxu0 0.0
  %1854 = vmatpush1.msra.mxu0 0.0
  %1855 = vmatprep.subr.mxu0 0.0
  %1856 = vmatpush1.msra.mxu0 0.0
  %1857 = vmatprep.subr.mxu0 0.0
  %1858 = vmatpush1.msra.mxu0 0.0
  %1859 = vmatprep.subr.mxu0 0.0
  %1860 = vmatpush1.msra.mxu0 0.0
  %1861 = vmatprep.subr.mxu0 0.0
  %1862 = vmatpush1.msra.mxu0 0.0
  %1863 = vmatprep.subr.mxu0 0.0
  %1864 = vmatpush1.msra.mxu0 0.0
  %1865 = vmatprep.subr.mxu0 0.0
  %1866 = vmatpush1.msra.mxu0 0.0
  %1867 = vmatprep.subr.mxu0 0.0
  %1868 = vmatpush1.msra.mxu0 0.0
  %1869 = vmatprep.subr.mxu0 0.0
  %1870 = vmatpush1.msra.mxu0 0.0
  %1871 = vmatprep.subr.mxu0 0.0
  %1872 = vmatpush1.msra.mxu0 0.0
  %1873 = vmatprep.subr.mxu0 0.0
  %1874 = vmatpush1.msra.mxu0 0.0
  %1875 = vmatprep.mubr.f32.mxu0 0.0
  %v1876 = vand.u32 %v1805, 4294901760
  %v1877 = vsub.f32 %v1805, %v1876
  %v1878 = vand.u32 %v1877, 4294901760
  %v1879 = vsub.f32 %v1877, %v1878
  %v1880 = vand.u32 %v1879, 4294901760
  %1881 = vmatmul.mubr.f32.gmra.mrb[0].mxu0 %v1880
  %v1882 = vpop.f32.mrb[0].mxu0
  %v1883 = vadd.f32 %v787, %v1882
  %v1884 = vpop.f32.mrb[0].mxu0
  %1885 = vdwg.mxu0
  %1886 = vmatprep.subr.mxu0 0.0
  %v1887 = vand.u32 %v820, 4294901760
  %v1888 = vsub.f32 %v820, %v1887
  %v1889 = vand.u32 %v1888, 4294901760
  %v1890 = vsub.f32 %v1888, %v1889
  %v1891 = vand.u32 %v1890, 4294901760
  %1892 = vmatpush1.msra.mxu0 %v1891
  %1893 = vmatprep.subr.mxu0 0.0
  %v1894 = vand.u32 %v821, 4294901760
  %v1895 = vsub.f32 %v821, %v1894
  %v1896 = vand.u32 %v1895, 4294901760
  %v1897 = vsub.f32 %v1895, %v1896
  %v1898 = vand.u32 %v1897, 4294901760
  %1899 = vmatpush1.msra.mxu0 %v1898
  %1900 = vmatprep.subr.mxu0 0.0
  %v1901 = vand.u32 %v822, 4294901760
  %v1902 = vsub.f32 %v822, %v1901
  %v1903 = vand.u32 %v1902, 4294901760
  %v1904 = vsub.f32 %v1902, %v1903
  %v1905 = vand.u32 %v1904, 4294901760
  %1906 = vmatpush1.msra.mxu0 %v1905
  %1907 = vmatprep.subr.mxu0 0.0
  %v1908 = vand.u32 %v823, 4294901760
  %v1909 = vsub.f32 %v823, %v1908
  %v1910 = vand.u32 %v1909, 4294901760
  %v1911 = vsub.f32 %v1909, %v1910
  %v1912 = vand.u32 %v1911, 4294901760
  %1913 = vmatpush1.msra.mxu0 %v1912
  %1914 = vmatprep.subr.mxu0 0.0
  %1915 = vmatpush1.msra.mxu0 0.0
  %1916 = vmatprep.subr.mxu0 0.0
  %1917 = vmatpush1.msra.mxu0 0.0
  %1918 = vmatprep.subr.mxu0 0.0
  %1919 = vmatpush1.msra.mxu0 0.0
  %1920 = vmatprep.subr.mxu0 0.0
  %1921 = vmatpush1.msra.mxu0 0.0
  %1922 = vmatprep.subr.mxu0 0.0
  %1923 = vmatpush1.msra.mxu0 0.0
  %1924 = vmatprep.subr.mxu0 0.0
  %1925 = vmatpush1.msra.mxu0 0.0
  %1926 = vmatprep.subr.mxu0 0.0
  %1927 = vmatpush1.msra.mxu0 0.0
  %1928 = vmatprep.subr.mxu0 0.0
  %1929 = vmatpush1.msra.mxu0 0.0
  %1930 = vmatprep.subr.mxu0 0.0
  %1931 = vmatpush1.msra.mxu0 0.0
  %1932 = vmatprep.subr.mxu0 0.0
  %1933 = vmatpush1.msra.mxu0 0.0
  %1934 = vmatprep.subr.mxu0 0.0
  %1935 = vmatpush1.msra.mxu0 0.0
  %1936 = vmatprep.subr.mxu0 0.0
  %1937 = vmatpush1.msra.mxu0 0.0
  %1938 = vmatprep.subr.mxu0 0.0
  %1939 = vmatpush1.msra.mxu0 0.0
  %1940 = vmatprep.subr.mxu0 0.0
  %1941 = vmatpush1.msra.mxu0 0.0
  %1942 = vmatprep.subr.mxu0 0.0
  %1943 = vmatpush1.msra.mxu0 0.0
  %1944 = vmatprep.subr.mxu0 0.0
  %1945 = vmatpush1.msra.mxu0 0.0
  %1946 = vmatprep.subr.mxu0 0.0
  %1947 = vmatpush1.msra.mxu0 0.0
  %1948 = vmatprep.subr.mxu0 0.0
  %1949 = vmatpush1.msra.mxu0 0.0
  %1950 = vmatprep.subr.mxu0 0.0
  %1951 = vmatpush1.msra.mxu0 0.0
  %1952 = vmatprep.subr.mxu0 0.0
  %1953 = vmatpush1.msra.mxu0 0.0
  %1954 = vmatprep.subr.mxu0 0.0
  %1955 = vmatpush1.msra.mxu0 0.0
  %1956 = vmatprep.subr.mxu0 0.0
  %1957 = vmatpush1.msra.mxu0 0.0
  %1958 = vmatprep.subr.mxu0 0.0
  %1959 = vmatpush1.msra.mxu0 0.0
  %1960 = vmatprep.subr.mxu0 0.0
  %1961 = vmatpush1.msra.mxu0 0.0
  %1962 = vmatprep.subr.mxu0 0.0
  %1963 = vmatpush1.msra.mxu0 0.0
  %1964 = vmatprep.subr.mxu0 0.0
  %1965 = vmatpush1.msra.mxu0 0.0
  %1966 = vmatprep.subr.mxu0 0.0
  %1967 = vmatpush1.msra.mxu0 0.0
  %1968 = vmatprep.subr.mxu0 0.0
  %1969 = vmatpush1.msra.mxu0 0.0
  %1970 = vmatprep.mubr.f32.mxu0 0.0
  %v1971 = vand.u32 %v1805, 4294901760
  %1972 = vmatmul.mubr.f32.gmra.mrb[0].mxu0 %v1971
  %v1973 = vpop.f32.mrb[0].mxu0
  %v1974 = vadd.f32 %v1883, %v1973
  %v1975 = vpop.f32.mrb[0].mxu0
  %1976 = vdwg.mxu0
  %1977 = vmatprep.subr.mxu0 0.0
  %v1978 = vand.u32 %v820, 4294901760
  %v1979 = vsub.f32 %v820, %v1978
  %1980 = vmatpush1.msra.mxu0 %v1979
  %1981 = vmatprep.subr.mxu0 0.0
  %v1982 = vand.u32 %v821, 4294901760
  %v1983 = vsub.f32 %v821, %v1982
  %1984 = vmatpush1.msra.mxu0 %v1983
  %1985 = vmatprep.subr.mxu0 0.0
  %v1986 = vand.u32 %v822, 4294901760
  %v1987 = vsub.f32 %v822, %v1986
  %1988 = vmatpush1.msra.mxu0 %v1987
  %1989 = vmatprep.subr.mxu0 0.0
  %v1990 = vand.u32 %v823, 4294901760
  %v1991 = vsub.f32 %v823, %v1990
  %1992 = vmatpush1.msra.mxu0 %v1991
  %1993 = vmatprep.subr.mxu0 0.0
  %1994 = vmatpush1.msra.mxu0 0.0
  %1995 = vmatprep.subr.mxu0 0.0
  %1996 = vmatpush1.msra.mxu0 0.0
  %1997 = vmatprep.subr.mxu0 0.0
  %1998 = vmatpush1.msra.mxu0 0.0
  %1999 = vmatprep.subr.mxu0 0.0
  %2000 = vmatpush1.msra.mxu0 0.0
  %2001 = vmatprep.subr.mxu0 0.0
  %2002 = vmatpush1.msra.mxu0 0.0
  %2003 = vmatprep.subr.mxu0 0.0
  %2004 = vmatpush1.msra.mxu0 0.0
  %2005 = vmatprep.subr.mxu0 0.0
  %2006 = vmatpush1.msra.mxu0 0.0
  %2007 = vmatprep.subr.mxu0 0.0
  %2008 = vmatpush1.msra.mxu0 0.0
  %2009 = vmatprep.subr.mxu0 0.0
  %2010 = vmatpush1.msra.mxu0 0.0
  %2011 = vmatprep.subr.mxu0 0.0
  %2012 = vmatpush1.msra.mxu0 0.0
  %2013 = vmatprep.subr.mxu0 0.0
  %2014 = vmatpush1.msra.mxu0 0.0
  %2015 = vmatprep.subr.mxu0 0.0
  %2016 = vmatpush1.msra.mxu0 0.0
  %2017 = vmatprep.subr.mxu0 0.0
  %2018 = vmatpush1.msra.mxu0 0.0
  %2019 = vmatprep.subr.mxu0 0.0
  %2020 = vmatpush1.msra.mxu0 0.0
  %2021 = vmatprep.subr.mxu0 0.0
  %2022 = vmatpush1.msra.mxu0 0.0
  %2023 = vmatprep.subr.mxu0 0.0
  %2024 = vmatpush1.msra.mxu0 0.0
  %2025 = vmatprep.subr.mxu0 0.0
  %2026 = vmatpush1.msra.mxu0 0.0
  %2027 = vmatprep.subr.mxu0 0.0
  %2028 = vmatpush1.msra.mxu0 0.0
  %2029 = vmatprep.subr.mxu0 0.0
  %2030 = vmatpush1.msra.mxu0 0.0
  %2031 = vmatprep.subr.mxu0 0.0
  %2032 = vmatpush1.msra.mxu0 0.0
  %2033 = vmatprep.subr.mxu0 0.0
  %2034 = vmatpush1.msra.mxu0 0.0
  %2035 = vmatprep.subr.mxu0 0.0
  %2036 = vmatpush1.msra.mxu0 0.0
  %2037 = vmatprep.subr.mxu0 0.0
  %2038 = vmatpush1.msra.mxu0 0.0
  %2039 = vmatprep.subr.mxu0 0.0
  %2040 = vmatpush1.msra.mxu0 0.0
  %2041 = vmatprep.subr.mxu0 0.0
  %2042 = vmatpush1.msra.mxu0 0.0
  %2043 = vmatprep.subr.mxu0 0.0
  %2044 = vmatpush1.msra.mxu0 0.0
  %2045 = vmatprep.subr.mxu0 0.0
  %2046 = vmatpush1.msra.mxu0 0.0
  %2047 = vmatprep.subr.mxu0 0.0
  %2048 = vmatpush1.msra.mxu0 0.0
  %2049 = vmatprep.mubr.f32.mxu0 0.0
  %v2050 = vand.u32 %v1805, 4294901760
  %v2051 = vsub.f32 %v1805, %v2050
  %2052 = vmatmul.mubr.f32.gmra.mrb[0].mxu0 %v2051
  %v2053 = vpop.f32.mrb[0].mxu0
  %v2054 = vadd.f32 %v1974, %v2053
  %v2055 = vpop.f32.mrb[0].mxu0
  %2056 = vdwg.mxu0
  %2057 = vmatprep.subr.mxu0 0.0
  %v2058 = vand.u32 %v820, 4294901760
  %2059 = vmatpush1.msra.mxu0 %v2058
  %2060 = vmatprep.subr.mxu0 0.0
  %v2061 = vand.u32 %v821, 4294901760
  %2062 = vmatpush1.msra.mxu0 %v2061
  %2063 = vmatprep.subr.mxu0 0.0
  %v2064 = vand.u32 %v822, 4294901760
  %2065 = vmatpush1.msra.mxu0 %v2064
  %2066 = vmatprep.subr.mxu0 0.0
  %v2067 = vand.u32 %v823, 4294901760
  %2068 = vmatpush1.msra.mxu0 %v2067
  %2069 = vmatprep.subr.mxu0 0.0
  %2070 = vmatpush1.msra.mxu0 0.0
  %2071 = vmatprep.subr.mxu0 0.0
  %2072 = vmatpush1.msra.mxu0 0.0
  %2073 = vmatprep.subr.mxu0 0.0
  %2074 = vmatpush1.msra.mxu0 0.0
  %2075 = vmatprep.subr.mxu0 0.0
  %2076 = vmatpush1.msra.mxu0 0.0
  %2077 = vmatprep.subr.mxu0 0.0
  %2078 = vmatpush1.msra.mxu0 0.0
  %2079 = vmatprep.subr.mxu0 0.0
  %2080 = vmatpush1.msra.mxu0 0.0
  %2081 = vmatprep.subr.mxu0 0.0
  %2082 = vmatpush1.msra.mxu0 0.0
  %2083 = vmatprep.subr.mxu0 0.0
  %2084 = vmatpush1.msra.mxu0 0.0
  %2085 = vmatprep.subr.mxu0 0.0
  %2086 = vmatpush1.msra.mxu0 0.0
  %2087 = vmatprep.subr.mxu0 0.0
  %2088 = vmatpush1.msra.mxu0 0.0
  %2089 = vmatprep.subr.mxu0 0.0
  %2090 = vmatpush1.msra.mxu0 0.0
  %2091 = vmatprep.subr.mxu0 0.0
  %2092 = vmatpush1.msra.mxu0 0.0
  %2093 = vmatprep.subr.mxu0 0.0
  %2094 = vmatpush1.msra.mxu0 0.0
  %2095 = vmatprep.subr.mxu0 0.0
  %2096 = vmatpush1.msra.mxu0 0.0
  %2097 = vmatprep.subr.mxu0 0.0
  %2098 = vmatpush1.msra.mxu0 0.0
  %2099 = vmatprep.subr.mxu0 0.0
  %2100 = vmatpush1.msra.mxu0 0.0
  %2101 = vmatprep.subr.mxu0 0.0
  %2102 = vmatpush1.msra.mxu0 0.0
  %2103 = vmatprep.subr.mxu0 0.0
  %2104 = vmatpush1.msra.mxu0 0.0
  %2105 = vmatprep.subr.mxu0 0.0
  %2106 = vmatpush1.msra.mxu0 0.0
  %2107 = vmatprep.subr.mxu0 0.0
  %2108 = vmatpush1.msra.mxu0 0.0
  %2109 = vmatprep.subr.mxu0 0.0
  %2110 = vmatpush1.msra.mxu0 0.0
  %2111 = vmatprep.subr.mxu0 0.0
  %2112 = vmatpush1.msra.mxu0 0.0
  %2113 = vmatprep.subr.mxu0 0.0
  %2114 = vmatpush1.msra.mxu0 0.0
  %2115 = vmatprep.subr.mxu0 0.0
  %2116 = vmatpush1.msra.mxu0 0.0
  %2117 = vmatprep.subr.mxu0 0.0
  %2118 = vmatpush1.msra.mxu0 0.0
  %2119 = vmatprep.subr.mxu0 0.0
  %2120 = vmatpush1.msra.mxu0 0.0
  %2121 = vmatprep.subr.mxu0 0.0
  %2122 = vmatpush1.msra.mxu0 0.0
  %2123 = vmatprep.subr.mxu0 0.0
  %2124 = vmatpush1.msra.mxu0 0.0
  %2125 = vmatprep.mubr.f32.mxu0 0.0
  %v2126 = vand.u32 %v1805, 4294901760
  %v2127 = vsub.f32 %v1805, %v2126
  %v2128 = vand.u32 %v2127, 4294901760
  %2129 = vmatmul.mubr.f32.gmra.mrb[0].mxu0 %v2128
  %v2130 = vpop.f32.mrb[0].mxu0
  %v2131 = vadd.f32 %v2054, %v2130
  %v2132 = vpop.f32.mrb[0].mxu0
  %2133 = vdwg.mxu0
  %2134 = vmatprep.subr.mxu0 0.0
  %v2135 = vand.u32 %v820, 4294901760
  %v2136 = vsub.f32 %v820, %v2135
  %v2137 = vand.u32 %v2136, 4294901760
  %2138 = vmatpush1.msra.mxu0 %v2137
  %2139 = vmatprep.subr.mxu0 0.0
  %v2140 = vand.u32 %v821, 4294901760
  %v2141 = vsub.f32 %v821, %v2140
  %v2142 = vand.u32 %v2141, 4294901760
  %2143 = vmatpush1.msra.mxu0 %v2142
  %2144 = vmatprep.subr.mxu0 0.0
  %v2145 = vand.u32 %v822, 4294901760
  %v2146 = vsub.f32 %v822, %v2145
  %v2147 = vand.u32 %v2146, 4294901760
  %2148 = vmatpush1.msra.mxu0 %v2147
  %2149 = vmatprep.subr.mxu0 0.0
  %v2150 = vand.u32 %v823, 4294901760
  %v2151 = vsub.f32 %v823, %v2150
  %v2152 = vand.u32 %v2151, 4294901760
  %2153 = vmatpush1.msra.mxu0 %v2152
  %2154 = vmatprep.subr.mxu0 0.0
  %2155 = vmatpush1.msra.mxu0 0.0
  %2156 = vmatprep.subr.mxu0 0.0
  %2157 = vmatpush1.msra.mxu0 0.0
  %2158 = vmatprep.subr.mxu0 0.0
  %2159 = vmatpush1.msra.mxu0 0.0
  %2160 = vmatprep.subr.mxu0 0.0
  %2161 = vmatpush1.msra.mxu0 0.0
  %2162 = vmatprep.subr.mxu0 0.0
  %2163 = vmatpush1.msra.mxu0 0.0
  %2164 = vmatprep.subr.mxu0 0.0
  %2165 = vmatpush1.msra.mxu0 0.0
  %2166 = vmatprep.subr.mxu0 0.0
  %2167 = vmatpush1.msra.mxu0 0.0
  %2168 = vmatprep.subr.mxu0 0.0
  %2169 = vmatpush1.msra.mxu0 0.0
  %2170 = vmatprep.subr.mxu0 0.0
  %2171 = vmatpush1.msra.mxu0 0.0
  %2172 = vmatprep.subr.mxu0 0.0
  %2173 = vmatpush1.msra.mxu0 0.0
  %2174 = vmatprep.subr.mxu0 0.0
  %2175 = vmatpush1.msra.mxu0 0.0
  %2176 = vmatprep.subr.mxu0 0.0
  %2177 = vmatpush1.msra.mxu0 0.0
  %2178 = vmatprep.subr.mxu0 0.0
  %2179 = vmatpush1.msra.mxu0 0.0
  %2180 = vmatprep.subr.mxu0 0.0
  %2181 = vmatpush1.msra.mxu0 0.0
  %2182 = vmatprep.subr.mxu0 0.0
  %2183 = vmatpush1.msra.mxu0 0.0
  %2184 = vmatprep.subr.mxu0 0.0
  %2185 = vmatpush1.msra.mxu0 0.0
  %2186 = vmatprep.subr.mxu0 0.0
  %2187 = vmatpush1.msra.mxu0 0.0
  %2188 = vmatprep.subr.mxu0 0.0
  %2189 = vmatpush1.msra.mxu0 0.0
  %2190 = vmatprep.subr.mxu0 0.0
  %2191 = vmatpush1.msra.mxu0 0.0
  %2192 = vmatprep.subr.mxu0 0.0
  %2193 = vmatpush1.msra.mxu0 0.0
  %2194 = vmatprep.subr.mxu0 0.0
  %2195 = vmatpush1.msra.mxu0 0.0
  %2196 = vmatprep.subr.mxu0 0.0
  %2197 = vmatpush1.msra.mxu0 0.0
  %2198 = vmatprep.subr.mxu0 0.0
  %2199 = vmatpush1.msra.mxu0 0.0
  %2200 = vmatprep.subr.mxu0 0.0
  %2201 = vmatpush1.msra.mxu0 0.0
  %2202 = vmatprep.subr.mxu0 0.0
  %2203 = vmatpush1.msra.mxu0 0.0
  %2204 = vmatprep.subr.mxu0 0.0
  %2205 = vmatpush1.msra.mxu0 0.0
  %2206 = vmatprep.subr.mxu0 0.0
  %2207 = vmatpush1.msra.mxu0 0.0
  %2208 = vmatprep.subr.mxu0 0.0
  %2209 = vmatpush1.msra.mxu0 0.0
  %2210 = vmatprep.mubr.f32.mxu0 0.0
  %v2211 = vand.u32 %v1805, 4294901760
  %2212 = vmatmul.mubr.f32.gmra.mrb[0].mxu0 %v2211
  %v2213 = vpop.f32.mrb[0].mxu0
  %v2214 = vadd.f32 %v2131, %v2213
  %v2215 = vpop.f32.mrb[0].mxu0
  %2216 = vdwg.mxu0
  %2217 = vmatprep.subr.mxu0 0.0
  %v2218 = vand.u32 %v820, 4294901760
  %2219 = vmatpush1.msra.mxu0 %v2218
  %2220 = vmatprep.subr.mxu0 0.0
  %v2221 = vand.u32 %v821, 4294901760
  %2222 = vmatpush1.msra.mxu0 %v2221
  %2223 = vmatprep.subr.mxu0 0.0
  %v2224 = vand.u32 %v822, 4294901760
  %2225 = vmatpush1.msra.mxu0 %v2224
  %2226 = vmatprep.subr.mxu0 0.0
  %v2227 = vand.u32 %v823, 4294901760
  %2228 = vmatpush1.msra.mxu0 %v2227
  %2229 = vmatprep.subr.mxu0 0.0
  %2230 = vmatpush1.msra.mxu0 0.0
  %2231 = vmatprep.subr.mxu0 0.0
  %2232 = vmatpush1.msra.mxu0 0.0
  %2233 = vmatprep.subr.mxu0 0.0
  %2234 = vmatpush1.msra.mxu0 0.0
  %2235 = vmatprep.subr.mxu0 0.0
  %2236 = vmatpush1.msra.mxu0 0.0
  %2237 = vmatprep.subr.mxu0 0.0
  %2238 = vmatpush1.msra.mxu0 0.0
  %2239 = vmatprep.subr.mxu0 0.0
  %2240 = vmatpush1.msra.mxu0 0.0
  %2241 = vmatprep.subr.mxu0 0.0
  %2242 = vmatpush1.msra.mxu0 0.0
  %2243 = vmatprep.subr.mxu0 0.0
  %2244 = vmatpush1.msra.mxu0 0.0
  %2245 = vmatprep.subr.mxu0 0.0
  %2246 = vmatpush1.msra.mxu0 0.0
  %2247 = vmatprep.subr.mxu0 0.0
  %2248 = vmatpush1.msra.mxu0 0.0
  %2249 = vmatprep.subr.mxu0 0.0
  %2250 = vmatpush1.msra.mxu0 0.0
  %2251 = vmatprep.subr.mxu0 0.0
  %2252 = vmatpush1.msra.mxu0 0.0
  %2253 = vmatprep.subr.mxu0 0.0
  %2254 = vmatpush1.msra.mxu0 0.0
  %2255 = vmatprep.subr.mxu0 0.0
  %2256 = vmatpush1.msra.mxu0 0.0
  %2257 = vmatprep.subr.mxu0 0.0
  %2258 = vmatpush1.msra.mxu0 0.0
  %2259 = vmatprep.subr.mxu0 0.0
  %2260 = vmatpush1.msra.mxu0 0.0
  %2261 = vmatprep.subr.mxu0 0.0
  %2262 = vmatpush1.msra.mxu0 0.0
  %2263 = vmatprep.subr.mxu0 0.0
  %2264 = vmatpush1.msra.mxu0 0.0
  %2265 = vmatprep.subr.mxu0 0.0
  %2266 = vmatpush1.msra.mxu0 0.0
  %2267 = vmatprep.subr.mxu0 0.0
  %2268 = vmatpush1.msra.mxu0 0.0
  %2269 = vmatprep.subr.mxu0 0.0
  %2270 = vmatpush1.msra.mxu0 0.0
  %2271 = vmatprep.subr.mxu0 0.0
  %2272 = vmatpush1.msra.mxu0 0.0
  %2273 = vmatprep.subr.mxu0 0.0
  %2274 = vmatpush1.msra.mxu0 0.0
  %2275 = vmatprep.subr.mxu0 0.0
  %2276 = vmatpush1.msra.mxu0 0.0
  %2277 = vmatprep.subr.mxu0 0.0
  %2278 = vmatpush1.msra.mxu0 0.0
  %2279 = vmatprep.subr.mxu0 0.0
  %2280 = vmatpush1.msra.mxu0 0.0
  %2281 = vmatprep.subr.mxu0 0.0
  %2282 = vmatpush1.msra.mxu0 0.0
  %2283 = vmatprep.subr.mxu0 0.0
  %2284 = vmatpush1.msra.mxu0 0.0
  %2285 = vmatprep.mubr.f32.mxu0 0.0
  %v2286 = vand.u32 %v1805, 4294901760
  %2287 = vmatmul.mubr.f32.gmra.mrb[0].mxu0 %v2286
  %v2288 = vpop.f32.mrb[0].mxu0
  %v2289 = vadd.f32 %v2214, %v2288
  %v2290 = vpop.f32.mrb[0].mxu0
  %2291 = vdwg.mxu0
  %v2292 = vtanh.pop %v2289
  %v2294 = vsel %vm825, %v2292, 0
  %2296 = vmatprep.subr.mxu0 0.0
  %v2297 = vand.u32 %v820, 4294901760
  %2298 = vmatpush1.msra.mxu0 %v2297
  %2299 = vmatprep.subr.mxu0 0.0
  %v2300 = vand.u32 %v821, 4294901760
  %2301 = vmatpush1.msra.mxu0 %v2300
  %2302 = vmatprep.subr.mxu0 0.0
  %v2303 = vand.u32 %v822, 4294901760
  %2304 = vmatpush1.msra.mxu0 %v2303
  %2305 = vmatprep.subr.mxu0 0.0
  %v2306 = vand.u32 %v823, 4294901760
  %2307 = vmatpush1.msra.mxu0 %v2306
  %2308 = vmatprep.subr.mxu0 0.0
  %2309 = vmatpush1.msra.mxu0 0.0
  %2310 = vmatprep.subr.mxu0 0.0
  %2311 = vmatpush1.msra.mxu0 0.0
  %2312 = vmatprep.subr.mxu0 0.0
  %2313 = vmatpush1.msra.mxu0 0.0
  %2314 = vmatprep.subr.mxu0 0.0
  %2315 = vmatpush1.msra.mxu0 0.0
  %2316 = vmatprep.subr.mxu0 0.0
  %2317 = vmatpush1.msra.mxu0 0.0
  %2318 = vmatprep.subr.mxu0 0.0
  %2319 = vmatpush1.msra.mxu0 0.0
  %2320 = vmatprep.subr.mxu0 0.0
  %2321 = vmatpush1.msra.mxu0 0.0
  %2322 = vmatprep.subr.mxu0 0.0
  %2323 = vmatpush1.msra.mxu0 0.0
  %2324 = vmatprep.subr.mxu0 0.0
  %2325 = vmatpush1.msra.mxu0 0.0
  %2326 = vmatprep.subr.mxu0 0.0
  %2327 = vmatpush1.msra.mxu0 0.0
  %2328 = vmatprep.subr.mxu0 0.0
  %2329 = vmatpush1.msra.mxu0 0.0
  %2330 = vmatprep.subr.mxu0 0.0
  %2331 = vmatpush1.msra.mxu0 0.0
  %2332 = vmatprep.subr.mxu0 0.0
  %2333 = vmatpush1.msra.mxu0 0.0
  %2334 = vmatprep.subr.mxu0 0.0
  %2335 = vmatpush1.msra.mxu0 0.0
  %2336 = vmatprep.subr.mxu0 0.0
  %2337 = vmatpush1.msra.mxu0 0.0
  %2338 = vmatprep.subr.mxu0 0.0
  %2339 = vmatpush1.msra.mxu0 0.0
  %2340 = vmatprep.subr.mxu0 0.0
  %2341 = vmatpush1.msra.mxu0 0.0
  %2342 = vmatprep.subr.mxu0 0.0
  %2343 = vmatpush1.msra.mxu0 0.0
  %2344 = vmatprep.subr.mxu0 0.0
  %2345 = vmatpush1.msra.mxu0 0.0
  %2346 = vmatprep.subr.mxu0 0.0
  %2347 = vmatpush1.msra.mxu0 0.0
  %2348 = vmatprep.subr.mxu0 0.0
  %2349 = vmatpush1.msra.mxu0 0.0
  %2350 = vmatprep.subr.mxu0 0.0
  %2351 = vmatpush1.msra.mxu0 0.0
  %2352 = vmatprep.subr.mxu0 0.0
  %2353 = vmatpush1.msra.mxu0 0.0
  %2354 = vmatprep.subr.mxu0 0.0
  %2355 = vmatpush1.msra.mxu0 0.0
  %2356 = vmatprep.subr.mxu0 0.0
  %2357 = vmatpush1.msra.mxu0 0.0
  %2358 = vmatprep.subr.mxu0 0.0
  %2359 = vmatpush1.msra.mxu0 0.0
  %2360 = vmatprep.subr.mxu0 0.0
  %2361 = vmatpush1.msra.mxu0 0.0
  %2362 = vmatprep.subr.mxu0 0.0
  %2363 = vmatpush1.msra.mxu0 0.0
  %2364 = vmatprep.mubr.f32.mxu0 0.0
  %v2365 = vand.u32 %v2294, 4294901760
  %v2366 = vsub.f32 %v2294, %v2365
  %v2367 = vand.u32 %v2366, 4294901760
  %v2368 = vsub.f32 %v2366, %v2367
  %v2369 = vand.u32 %v2368, 4294901760
  %2370 = vmatmul.mubr.f32.gmra.mrb[0].mxu0 %v2369
  %v2371 = vpop.f32.mrb[0].mxu0
  %v2372 = vadd.f32 %v793, %v2371
  %v2373 = vpop.f32.mrb[0].mxu0
  %2374 = vdwg.mxu0
  %2375 = vmatprep.subr.mxu0 0.0
  %v2376 = vand.u32 %v820, 4294901760
  %v2377 = vsub.f32 %v820, %v2376
  %v2378 = vand.u32 %v2377, 4294901760
  %v2379 = vsub.f32 %v2377, %v2378
  %v2380 = vand.u32 %v2379, 4294901760
  %2381 = vmatpush1.msra.mxu0 %v2380
  %2382 = vmatprep.subr.mxu0 0.0
  %v2383 = vand.u32 %v821, 4294901760
  %v2384 = vsub.f32 %v821, %v2383
  %v2385 = vand.u32 %v2384, 4294901760
  %v2386 = vsub.f32 %v2384, %v2385
  %v2387 = vand.u32 %v2386, 4294901760
  %2388 = vmatpush1.msra.mxu0 %v2387
  %2389 = vmatprep.subr.mxu0 0.0
  %v2390 = vand.u32 %v822, 4294901760
  %v2391 = vsub.f32 %v822, %v2390
  %v2392 = vand.u32 %v2391, 4294901760
  %v2393 = vsub.f32 %v2391, %v2392
  %v2394 = vand.u32 %v2393, 4294901760
  %2395 = vmatpush1.msra.mxu0 %v2394
  %2396 = vmatprep.subr.mxu0 0.0
  %v2397 = vand.u32 %v823, 4294901760
  %v2398 = vsub.f32 %v823, %v2397
  %v2399 = vand.u32 %v2398, 4294901760
  %v2400 = vsub.f32 %v2398, %v2399
  %v2401 = vand.u32 %v2400, 4294901760
  %2402 = vmatpush1.msra.mxu0 %v2401
  %2403 = vmatprep.subr.mxu0 0.0
  %2404 = vmatpush1.msra.mxu0 0.0
  %2405 = vmatprep.subr.mxu0 0.0
  %2406 = vmatpush1.msra.mxu0 0.0
  %2407 = vmatprep.subr.mxu0 0.0
  %2408 = vmatpush1.msra.mxu0 0.0
  %2409 = vmatprep.subr.mxu0 0.0
  %2410 = vmatpush1.msra.mxu0 0.0
  %2411 = vmatprep.subr.mxu0 0.0
  %2412 = vmatpush1.msra.mxu0 0.0
  %2413 = vmatprep.subr.mxu0 0.0
  %2414 = vmatpush1.msra.mxu0 0.0
  %2415 = vmatprep.subr.mxu0 0.0
  %2416 = vmatpush1.msra.mxu0 0.0
  %2417 = vmatprep.subr.mxu0 0.0
  %2418 = vmatpush1.msra.mxu0 0.0
  %2419 = vmatprep.subr.mxu0 0.0
  %2420 = vmatpush1.msra.mxu0 0.0
  %2421 = vmatprep.subr.mxu0 0.0
  %2422 = vmatpush1.msra.mxu0 0.0
  %2423 = vmatprep.subr.mxu0 0.0
  %2424 = vmatpush1.msra.mxu0 0.0
  %2425 = vmatprep.subr.mxu0 0.0
  %2426 = vmatpush1.msra.mxu0 0.0
  %2427 = vmatprep.subr.mxu0 0.0
  %2428 = vmatpush1.msra.mxu0 0.0
  %2429 = vmatprep.subr.mxu0 0.0
  %2430 = vmatpush1.msra.mxu0 0.0
  %2431 = vmatprep.subr.mxu0 0.0
  %2432 = vmatpush1.msra.mxu0 0.0
  %2433 = vmatprep.subr.mxu0 0.0
  %2434 = vmatpush1.msra.mxu0 0.0
  %2435 = vmatprep.subr.mxu0 0.0
  %2436 = vmatpush1.msra.mxu0 0.0
  %2437 = vmatprep.subr.mxu0 0.0
  %2438 = vmatpush1.msra.mxu0 0.0
  %2439 = vmatprep.subr.mxu0 0.0
  %2440 = vmatpush1.msra.mxu0 0.0
  %2441 = vmatprep.subr.mxu0 0.0
  %2442 = vmatpush1.msra.mxu0 0.0
  %2443 = vmatprep.subr.mxu0 0.0
  %2444 = vmatpush1.msra.mxu0 0.0
  %2445 = vmatprep.subr.mxu0 0.0
  %2446 = vmatpush1.msra.mxu0 0.0
  %2447 = vmatprep.subr.mxu0 0.0
  %2448 = vmatpush1.msra.mxu0 0.0
  %2449 = vmatprep.subr.mxu0 0.0
  %2450 = vmatpush1.msra.mxu0 0.0
  %2451 = vmatprep.subr.mxu0 0.0
  %2452 = vmatpush1.msra.mxu0 0.0
  %2453 = vmatprep.subr.mxu0 0.0
  %2454 = vmatpush1.msra.mxu0 0.0
  %2455 = vmatprep.subr.mxu0 0.0
  %2456 = vmatpush1.msra.mxu0 0.0
  %2457 = vmatprep.subr.mxu0 0.0
  %2458 = vmatpush1.msra.mxu0 0.0
  %2459 = vmatprep.mubr.f32.mxu0 0.0
  %v2460 = vand.u32 %v2294, 4294901760
  %2461 = vmatmul.mubr.f32.gmra.mrb[0].mxu0 %v2460
  %v2462 = vpop.f32.mrb[0].mxu0
  %v2463 = vadd.f32 %v2372, %v2462
  %v2464 = vpop.f32.mrb[0].mxu0
  %2465 = vdwg.mxu0
  %2466 = vmatprep.subr.mxu0 0.0
  %v2467 = vand.u32 %v820, 4294901760
  %v2468 = vsub.f32 %v820, %v2467
  %2469 = vmatpush1.msra.mxu0 %v2468
  %2470 = vmatprep.subr.mxu0 0.0
  %v2471 = vand.u32 %v821, 4294901760
  %v2472 = vsub.f32 %v821, %v2471
  %2473 = vmatpush1.msra.mxu0 %v2472
  %2474 = vmatprep.subr.mxu0 0.0
  %v2475 = vand.u32 %v822, 4294901760
  %v2476 = vsub.f32 %v822, %v2475
  %2477 = vmatpush1.msra.mxu0 %v2476
  %2478 = vmatprep.subr.mxu0 0.0
  %v2479 = vand.u32 %v823, 4294901760
  %v2480 = vsub.f32 %v823, %v2479
  %2481 = vmatpush1.msra.mxu0 %v2480
  %2482 = vmatprep.subr.mxu0 0.0
  %2483 = vmatpush1.msra.mxu0 0.0
  %2484 = vmatprep.subr.mxu0 0.0
  %2485 = vmatpush1.msra.mxu0 0.0
  %2486 = vmatprep.subr.mxu0 0.0
  %2487 = vmatpush1.msra.mxu0 0.0
  %2488 = vmatprep.subr.mxu0 0.0
  %2489 = vmatpush1.msra.mxu0 0.0
  %2490 = vmatprep.subr.mxu0 0.0
  %2491 = vmatpush1.msra.mxu0 0.0
  %2492 = vmatprep.subr.mxu0 0.0
  %2493 = vmatpush1.msra.mxu0 0.0
  %2494 = vmatprep.subr.mxu0 0.0
  %2495 = vmatpush1.msra.mxu0 0.0
  %2496 = vmatprep.subr.mxu0 0.0
  %2497 = vmatpush1.msra.mxu0 0.0
  %2498 = vmatprep.subr.mxu0 0.0
  %2499 = vmatpush1.msra.mxu0 0.0
  %2500 = vmatprep.subr.mxu0 0.0
  %2501 = vmatpush1.msra.mxu0 0.0
  %2502 = vmatprep.subr.mxu0 0.0
  %2503 = vmatpush1.msra.mxu0 0.0
  %2504 = vmatprep.subr.mxu0 0.0
  %2505 = vmatpush1.msra.mxu0 0.0
  %2506 = vmatprep.subr.mxu0 0.0
  %2507 = vmatpush1.msra.mxu0 0.0
  %2508 = vmatprep.subr.mxu0 0.0
  %2509 = vmatpush1.msra.mxu0 0.0
  %2510 = vmatprep.subr.mxu0 0.0
  %2511 = vmatpush1.msra.mxu0 0.0
  %2512 = vmatprep.subr.mxu0 0.0
  %2513 = vmatpush1.msra.mxu0 0.0
  %2514 = vmatprep.subr.mxu0 0.0
  %2515 = vmatpush1.msra.mxu0 0.0
  %2516 = vmatprep.subr.mxu0 0.0
  %2517 = vmatpush1.msra.mxu0 0.0
  %2518 = vmatprep.subr.mxu0 0.0
  %2519 = vmatpush1.msra.mxu0 0.0
  %2520 = vmatprep.subr.mxu0 0.0
  %2521 = vmatpush1.msra.mxu0 0.0
  %2522 = vmatprep.subr.mxu0 0.0
  %2523 = vmatpush1.msra.mxu0 0.0
  %2524 = vmatprep.subr.mxu0 0.0
  %2525 = vmatpush1.msra.mxu0 0.0
  %2526 = vmatprep.subr.mxu0 0.0
  %2527 = vmatpush1.msra.mxu0 0.0
  %2528 = vmatprep.subr.mxu0 0.0
  %2529 = vmatpush1.msra.mxu0 0.0
  %2530 = vmatprep.subr.mxu0 0.0
  %2531 = vmatpush1.msra.mxu0 0.0
  %2532 = vmatprep.subr.mxu0 0.0
  %2533 = vmatpush1.msra.mxu0 0.0
  %2534 = vmatprep.subr.mxu0 0.0
  %2535 = vmatpush1.msra.mxu0 0.0
  %2536 = vmatprep.subr.mxu0 0.0
  %2537 = vmatpush1.msra.mxu0 0.0
  %2538 = vmatprep.mubr.f32.mxu0 0.0
  %v2539 = vand.u32 %v2294, 4294901760
  %v2540 = vsub.f32 %v2294, %v2539
  %2541 = vmatmul.mubr.f32.gmra.mrb[0].mxu0 %v2540
  %v2542 = vpop.f32.mrb[0].mxu0
  %v2543 = vadd.f32 %v2463, %v2542
  %v2544 = vpop.f32.mrb[0].mxu0
  %2545 = vdwg.mxu0
  %2546 = vmatprep.subr.mxu0 0.0
  %v2547 = vand.u32 %v820, 4294901760
  %2548 = vmatpush1.msra.mxu0 %v2547
  %2549 = vmatprep.subr.mxu0 0.0
  %v2550 = vand.u32 %v821, 4294901760
  %2551 = vmatpush1.msra.mxu0 %v2550
  %2552 = vmatprep.subr.mxu0 0.0
  %v2553 = vand.u32 %v822, 4294901760
  %2554 = vmatpush1.msra.mxu0 %v2553
  %2555 = vmatprep.subr.mxu0 0.0
  %v2556 = vand.u32 %v823, 4294901760
  %2557 = vmatpush1.msra.mxu0 %v2556
  %2558 = vmatprep.subr.mxu0 0.0
  %2559 = vmatpush1.msra.mxu0 0.0
  %2560 = vmatprep.subr.mxu0 0.0
  %2561 = vmatpush1.msra.mxu0 0.0
  %2562 = vmatprep.subr.mxu0 0.0
  %2563 = vmatpush1.msra.mxu0 0.0
  %2564 = vmatprep.subr.mxu0 0.0
  %2565 = vmatpush1.msra.mxu0 0.0
  %2566 = vmatprep.subr.mxu0 0.0
  %2567 = vmatpush1.msra.mxu0 0.0
  %2568 = vmatprep.subr.mxu0 0.0
  %2569 = vmatpush1.msra.mxu0 0.0
  %2570 = vmatprep.subr.mxu0 0.0
  %2571 = vmatpush1.msra.mxu0 0.0
  %2572 = vmatprep.subr.mxu0 0.0
  %2573 = vmatpush1.msra.mxu0 0.0
  %2574 = vmatprep.subr.mxu0 0.0
  %2575 = vmatpush1.msra.mxu0 0.0
  %2576 = vmatprep.subr.mxu0 0.0
  %2577 = vmatpush1.msra.mxu0 0.0
  %2578 = vmatprep.subr.mxu0 0.0
  %2579 = vmatpush1.msra.mxu0 0.0
  %2580 = vmatprep.subr.mxu0 0.0
  %2581 = vmatpush1.msra.mxu0 0.0
  %2582 = vmatprep.subr.mxu0 0.0
  %2583 = vmatpush1.msra.mxu0 0.0
  %2584 = vmatprep.subr.mxu0 0.0
  %2585 = vmatpush1.msra.mxu0 0.0
  %2586 = vmatprep.subr.mxu0 0.0
  %2587 = vmatpush1.msra.mxu0 0.0
  %2588 = vmatprep.subr.mxu0 0.0
  %2589 = vmatpush1.msra.mxu0 0.0
  %2590 = vmatprep.subr.mxu0 0.0
  %2591 = vmatpush1.msra.mxu0 0.0
  %2592 = vmatprep.subr.mxu0 0.0
  %2593 = vmatpush1.msra.mxu0 0.0
  %2594 = vmatprep.subr.mxu0 0.0
  %2595 = vmatpush1.msra.mxu0 0.0
  %2596 = vmatprep.subr.mxu0 0.0
  %2597 = vmatpush1.msra.mxu0 0.0
  %2598 = vmatprep.subr.mxu0 0.0
  %2599 = vmatpush1.msra.mxu0 0.0
  %2600 = vmatprep.subr.mxu0 0.0
  %2601 = vmatpush1.msra.mxu0 0.0
  %2602 = vmatprep.subr.mxu0 0.0
  %2603 = vmatpush1.msra.mxu0 0.0
  %2604 = vmatprep.subr.mxu0 0.0
  %2605 = vmatpush1.msra.mxu0 0.0
  %2606 = vmatprep.subr.mxu0 0.0
  %2607 = vmatpush1.msra.mxu0 0.0
  %2608 = vmatprep.subr.mxu0 0.0
  %2609 = vmatpush1.msra.mxu0 0.0
  %2610 = vmatprep.subr.mxu0 0.0
  %2611 = vmatpush1.msra.mxu0 0.0
  %2612 = vmatprep.subr.mxu0 0.0
  %2613 = vmatpush1.msra.mxu0 0.0
  %2614 = vmatprep.mubr.f32.mxu0 0.0
  %v2615 = vand.u32 %v2294, 4294901760
  %v2616 = vsub.f32 %v2294, %v2615
  %v2617 = vand.u32 %v2616, 4294901760
  %2618 = vmatmul.mubr.f32.gmra.mrb[0].mxu0 %v2617
  %v2619 = vpop.f32.mrb[0].mxu0
  %v2620 = vadd.f32 %v2543, %v2619
  %v2621 = vpop.f32.mrb[0].mxu0
  %2622 = vdwg.mxu0
  %2623 = vmatprep.subr.mxu0 0.0
  %v2624 = vand.u32 %v820, 4294901760
  %v2625 = vsub.f32 %v820, %v2624
  %v2626 = vand.u32 %v2625, 4294901760
  %2627 = vmatpush1.msra.mxu0 %v2626
  %2628 = vmatprep.subr.mxu0 0.0
  %v2629 = vand.u32 %v821, 4294901760
  %v2630 = vsub.f32 %v821, %v2629
  %v2631 = vand.u32 %v2630, 4294901760
  %2632 = vmatpush1.msra.mxu0 %v2631
  %2633 = vmatprep.subr.mxu0 0.0
  %v2634 = vand.u32 %v822, 4294901760
  %v2635 = vsub.f32 %v822, %v2634
  %v2636 = vand.u32 %v2635, 4294901760
  %2637 = vmatpush1.msra.mxu0 %v2636
  %2638 = vmatprep.subr.mxu0 0.0
  %v2639 = vand.u32 %v823, 4294901760
  %v2640 = vsub.f32 %v823, %v2639
  %v2641 = vand.u32 %v2640, 4294901760
  %2642 = vmatpush1.msra.mxu0 %v2641
  %2643 = vmatprep.subr.mxu0 0.0
  %2644 = vmatpush1.msra.mxu0 0.0
  %2645 = vmatprep.subr.mxu0 0.0
  %2646 = vmatpush1.msra.mxu0 0.0
  %2647 = vmatprep.subr.mxu0 0.0
  %2648 = vmatpush1.msra.mxu0 0.0
  %2649 = vmatprep.subr.mxu0 0.0
  %2650 = vmatpush1.msra.mxu0 0.0
  %2651 = vmatprep.subr.mxu0 0.0
  %2652 = vmatpush1.msra.mxu0 0.0
  %2653 = vmatprep.subr.mxu0 0.0
  %2654 = vmatpush1.msra.mxu0 0.0
  %2655 = vmatprep.subr.mxu0 0.0
  %2656 = vmatpush1.msra.mxu0 0.0
  %2657 = vmatprep.subr.mxu0 0.0
  %2658 = vmatpush1.msra.mxu0 0.0
  %2659 = vmatprep.subr.mxu0 0.0
  %2660 = vmatpush1.msra.mxu0 0.0
  %2661 = vmatprep.subr.mxu0 0.0
  %2662 = vmatpush1.msra.mxu0 0.0
  %2663 = vmatprep.subr.mxu0 0.0
  %2664 = vmatpush1.msra.mxu0 0.0
  %2665 = vmatprep.subr.mxu0 0.0
  %2666 = vmatpush1.msra.mxu0 0.0
  %2667 = vmatprep.subr.mxu0 0.0
  %2668 = vmatpush1.msra.mxu0 0.0
  %2669 = vmatprep.subr.mxu0 0.0
  %2670 = vmatpush1.msra.mxu0 0.0
  %2671 = vmatprep.subr.mxu0 0.0
  %2672 = vmatpush1.msra.mxu0 0.0
  %2673 = vmatprep.subr.mxu0 0.0
  %2674 = vmatpush1.msra.mxu0 0.0
  %2675 = vmatprep.subr.mxu0 0.0
  %2676 = vmatpush1.msra.mxu0 0.0
  %2677 = vmatprep.subr.mxu0 0.0
  %2678 = vmatpush1.msra.mxu0 0.0
  %2679 = vmatprep.subr.mxu0 0.0
  %2680 = vmatpush1.msra.mxu0 0.0
  %2681 = vmatprep.subr.mxu0 0.0
  %2682 = vmatpush1.msra.mxu0 0.0
  %2683 = vmatprep.subr.mxu0 0.0
  %2684 = vmatpush1.msra.mxu0 0.0
  %2685 = vmatprep.subr.mxu0 0.0
  %2686 = vmatpush1.msra.mxu0 0.0
  %2687 = vmatprep.subr.mxu0 0.0
  %2688 = vmatpush1.msra.mxu0 0.0
  %2689 = vmatprep.subr.mxu0 0.0
  %2690 = vmatpush1.msra.mxu0 0.0
  %2691 = vmatprep.subr.mxu0 0.0
  %2692 = vmatpush1.msra.mxu0 0.0
  %2693 = vmatprep.subr.mxu0 0.0
  %2694 = vmatpush1.msra.mxu0 0.0
  %2695 = vmatprep.subr.mxu0 0.0
  %2696 = vmatpush1.msra.mxu0 0.0
  %2697 = vmatprep.subr.mxu0 0.0
  %2698 = vmatpush1.msra.mxu0 0.0
  %2699 = vmatprep.mubr.f32.mxu0 0.0
  %v2700 = vand.u32 %v2294, 4294901760
  %2701 = vmatmul.mubr.f32.gmra.mrb[0].mxu0 %v2700
  %v2702 = vpop.f32.mrb[0].mxu0
  %v2703 = vadd.f32 %v2620, %v2702
  %v2704 = vpop.f32.mrb[0].mxu0
  %2705 = vdwg.mxu0
  %2706 = vmatprep.subr.mxu0 0.0
  %v2707 = vand.u32 %v820, 4294901760
  %2708 = vmatpush1.msra.mxu0 %v2707
  %2709 = vmatprep.subr.mxu0 0.0
  %v2710 = vand.u32 %v821, 4294901760
  %2711 = vmatpush1.msra.mxu0 %v2710
  %2712 = vmatprep.subr.mxu0 0.0
  %v2713 = vand.u32 %v822, 4294901760
  %2714 = vmatpush1.msra.mxu0 %v2713
  %2715 = vmatprep.subr.mxu0 0.0
  %v2716 = vand.u32 %v823, 4294901760
  %2717 = vmatpush1.msra.mxu0 %v2716
  %2718 = vmatprep.subr.mxu0 0.0
  %2719 = vmatpush1.msra.mxu0 0.0
  %2720 = vmatprep.subr.mxu0 0.0
  %2721 = vmatpush1.msra.mxu0 0.0
  %2722 = vmatprep.subr.mxu0 0.0
  %2723 = vmatpush1.msra.mxu0 0.0
  %2724 = vmatprep.subr.mxu0 0.0
  %2725 = vmatpush1.msra.mxu0 0.0
  %2726 = vmatprep.subr.mxu0 0.0
  %2727 = vmatpush1.msra.mxu0 0.0
  %2728 = vmatprep.subr.mxu0 0.0
  %2729 = vmatpush1.msra.mxu0 0.0
  %2730 = vmatprep.subr.mxu0 0.0
  %2731 = vmatpush1.msra.mxu0 0.0
  %2732 = vmatprep.subr.mxu0 0.0
  %2733 = vmatpush1.msra.mxu0 0.0
  %2734 = vmatprep.subr.mxu0 0.0
  %2735 = vmatpush1.msra.mxu0 0.0
  %2736 = vmatprep.subr.mxu0 0.0
  %2737 = vmatpush1.msra.mxu0 0.0
  %2738 = vmatprep.subr.mxu0 0.0
  %2739 = vmatpush1.msra.mxu0 0.0
  %2740 = vmatprep.subr.mxu0 0.0
  %2741 = vmatpush1.msra.mxu0 0.0
  %2742 = vmatprep.subr.mxu0 0.0
  %2743 = vmatpush1.msra.mxu0 0.0
  %2744 = vmatprep.subr.mxu0 0.0
  %2745 = vmatpush1.msra.mxu0 0.0
  %2746 = vmatprep.subr.mxu0 0.0
  %2747 = vmatpush1.msra.mxu0 0.0
  %2748 = vmatprep.subr.mxu0 0.0
  %2749 = vmatpush1.msra.mxu0 0.0
  %2750 = vmatprep.subr.mxu0 0.0
  %2751 = vmatpush1.msra.mxu0 0.0
  %2752 = vmatprep.subr.mxu0 0.0
  %2753 = vmatpush1.msra.mxu0 0.0
  %2754 = vmatprep.subr.mxu0 0.0
  %2755 = vmatpush1.msra.mxu0 0.0
  %2756 = vmatprep.subr.mxu0 0.0
  %2757 = vmatpush1.msra.mxu0 0.0
  %2758 = vmatprep.subr.mxu0 0.0
  %2759 = vmatpush1.msra.mxu0 0.0
  %2760 = vmatprep.subr.mxu0 0.0
  %2761 = vmatpush1.msra.mxu0 0.0
  %2762 = vmatprep.subr.mxu0 0.0
  %2763 = vmatpush1.msra.mxu0 0.0
  %2764 = vmatprep.subr.mxu0 0.0
  %2765 = vmatpush1.msra.mxu0 0.0
  %2766 = vmatprep.subr.mxu0 0.0
  %2767 = vmatpush1.msra.mxu0 0.0
  %2768 = vmatprep.subr.mxu0 0.0
  %2769 = vmatpush1.msra.mxu0 0.0
  %2770 = vmatprep.subr.mxu0 0.0
  %2771 = vmatpush1.msra.mxu0 0.0
  %2772 = vmatprep.subr.mxu0 0.0
  %2773 = vmatpush1.msra.mxu0 0.0
  %2774 = vmatprep.mubr.f32.mxu0 0.0
  %v2775 = vand.u32 %v2294, 4294901760
  %2776 = vmatmul.mubr.f32.gmra.mrb[0].mxu0 %v2775
  %v2777 = vpop.f32.mrb[0].mxu0
  %v2778 = vadd.f32 %v2703, %v2777
  %v2779 = vpop.f32.mrb[0].mxu0
  %2780 = vdwg.mxu0
  %v2781 = vtanh.pop %v2778
  %v2783 = vsel %vm825, %v2781, 0
  %2785 = vmatprep.subr.mxu0 0.0
  %v2786 = vand.u32 %v820, 4294901760
  %2787 = vmatpush1.msra.mxu0 %v2786
  %2788 = vmatprep.subr.mxu0 0.0
  %v2789 = vand.u32 %v821, 4294901760
  %2790 = vmatpush1.msra.mxu0 %v2789
  %2791 = vmatprep.subr.mxu0 0.0
  %v2792 = vand.u32 %v822, 4294901760
  %2793 = vmatpush1.msra.mxu0 %v2792
  %2794 = vmatprep.subr.mxu0 0.0
  %v2795 = vand.u32 %v823, 4294901760
  %2796 = vmatpush1.msra.mxu0 %v2795
  %2797 = vmatprep.subr.mxu0 0.0
  %2798 = vmatpush1.msra.mxu0 0.0
  %2799 = vmatprep.subr.mxu0 0.0
  %2800 = vmatpush1.msra.mxu0 0.0
  %2801 = vmatprep.subr.mxu0 0.0
  %2802 = vmatpush1.msra.mxu0 0.0
  %2803 = vmatprep.subr.mxu0 0.0
  %2804 = vmatpush1.msra.mxu0 0.0
  %2805 = vmatprep.subr.mxu0 0.0
  %2806 = vmatpush1.msra.mxu0 0.0
  %2807 = vmatprep.subr.mxu0 0.0
  %2808 = vmatpush1.msra.mxu0 0.0
  %2809 = vmatprep.subr.mxu0 0.0
  %2810 = vmatpush1.msra.mxu0 0.0
  %2811 = vmatprep.subr.mxu0 0.0
  %2812 = vmatpush1.msra.mxu0 0.0
  %2813 = vmatprep.subr.mxu0 0.0
  %2814 = vmatpush1.msra.mxu0 0.0
  %2815 = vmatprep.subr.mxu0 0.0
  %2816 = vmatpush1.msra.mxu0 0.0
  %2817 = vmatprep.subr.mxu0 0.0
  %2818 = vmatpush1.msra.mxu0 0.0
  %2819 = vmatprep.subr.mxu0 0.0
  %2820 = vmatpush1.msra.mxu0 0.0
  %2821 = vmatprep.subr.mxu0 0.0
  %2822 = vmatpush1.msra.mxu0 0.0
  %2823 = vmatprep.subr.mxu0 0.0
  %2824 = vmatpush1.msra.mxu0 0.0
  %2825 = vmatprep.subr.mxu0 0.0
  %2826 = vmatpush1.msra.mxu0 0.0
  %2827 = vmatprep.subr.mxu0 0.0
  %2828 = vmatpush1.msra.mxu0 0.0
  %2829 = vmatprep.subr.mxu0 0.0
  %2830 = vmatpush1.msra.mxu0 0.0
  %2831 = vmatprep.subr.mxu0 0.0
  %2832 = vmatpush1.msra.mxu0 0.0
  %2833 = vmatprep.subr.mxu0 0.0
  %2834 = vmatpush1.msra.mxu0 0.0
  %2835 = vmatprep.subr.mxu0 0.0
  %2836 = vmatpush1.msra.mxu0 0.0
  %2837 = vmatprep.subr.mxu0 0.0
  %2838 = vmatpush1.msra.mxu0 0.0
  %2839 = vmatprep.subr.mxu0 0.0
  %2840 = vmatpush1.msra.mxu0 0.0
  %2841 = vmatprep.subr.mxu0 0.0
  %2842 = vmatpush1.msra.mxu0 0.0
  %2843 = vmatprep.subr.mxu0 0.0
  %2844 = vmatpush1.msra.mxu0 0.0
  %2845 = vmatprep.subr.mxu0 0.0
  %2846 = vmatpush1.msra.mxu0 0.0
  %2847 = vmatprep.subr.mxu0 0.0
  %2848 = vmatpush1.msra.mxu0 0.0
  %2849 = vmatprep.subr.mxu0 0.0
  %2850 = vmatpush1.msra.mxu0 0.0
  %2851 = vmatprep.subr.mxu0 0.0
  %2852 = vmatpush1.msra.mxu0 0.0
  %2853 = vmatprep.mubr.f32.mxu0 0.0
  %v2854 = vand.u32 %v2783, 4294901760
  %v2855 = vsub.f32 %v2783, %v2854
  %v2856 = vand.u32 %v2855, 4294901760
  %v2857 = vsub.f32 %v2855, %v2856
  %v2858 = vand.u32 %v2857, 4294901760
  %2859 = vmatmul.mubr.f32.gmra.mrb[0].mxu0 %v2858
  %v2860 = vpop.f32.mrb[0].mxu0
  %v2861 = vadd.f32 %v799, %v2860
  %v2862 = vpop.f32.mrb[0].mxu0
  %2863 = vdwg.mxu0
  %2864 = vmatprep.subr.mxu0 0.0
  %v2865 = vand.u32 %v820, 4294901760
  %v2866 = vsub.f32 %v820, %v2865
  %v2867 = vand.u32 %v2866, 4294901760
  %v2868 = vsub.f32 %v2866, %v2867
  %v2869 = vand.u32 %v2868, 4294901760
  %2870 = vmatpush1.msra.mxu0 %v2869
  %2871 = vmatprep.subr.mxu0 0.0
  %v2872 = vand.u32 %v821, 4294901760
  %v2873 = vsub.f32 %v821, %v2872
  %v2874 = vand.u32 %v2873, 4294901760
  %v2875 = vsub.f32 %v2873, %v2874
  %v2876 = vand.u32 %v2875, 4294901760
  %2877 = vmatpush1.msra.mxu0 %v2876
  %2878 = vmatprep.subr.mxu0 0.0
  %v2879 = vand.u32 %v822, 4294901760
  %v2880 = vsub.f32 %v822, %v2879
  %v2881 = vand.u32 %v2880, 4294901760
  %v2882 = vsub.f32 %v2880, %v2881
  %v2883 = vand.u32 %v2882, 4294901760
  %2884 = vmatpush1.msra.mxu0 %v2883
  %2885 = vmatprep.subr.mxu0 0.0
  %v2886 = vand.u32 %v823, 4294901760
  %v2887 = vsub.f32 %v823, %v2886
  %v2888 = vand.u32 %v2887, 4294901760
  %v2889 = vsub.f32 %v2887, %v2888
  %v2890 = vand.u32 %v2889, 4294901760
  %2891 = vmatpush1.msra.mxu0 %v2890
  %2892 = vmatprep.subr.mxu0 0.0
  %2893 = vmatpush1.msra.mxu0 0.0
  %2894 = vmatprep.subr.mxu0 0.0
  %2895 = vmatpush1.msra.mxu0 0.0
  %2896 = vmatprep.subr.mxu0 0.0
  %2897 = vmatpush1.msra.mxu0 0.0
  %2898 = vmatprep.subr.mxu0 0.0
  %2899 = vmatpush1.msra.mxu0 0.0
  %2900 = vmatprep.subr.mxu0 0.0
  %2901 = vmatpush1.msra.mxu0 0.0
  %2902 = vmatprep.subr.mxu0 0.0
  %2903 = vmatpush1.msra.mxu0 0.0
  %2904 = vmatprep.subr.mxu0 0.0
  %2905 = vmatpush1.msra.mxu0 0.0
  %2906 = vmatprep.subr.mxu0 0.0
  %2907 = vmatpush1.msra.mxu0 0.0
  %2908 = vmatprep.subr.mxu0 0.0
  %2909 = vmatpush1.msra.mxu0 0.0
  %2910 = vmatprep.subr.mxu0 0.0
  %2911 = vmatpush1.msra.mxu0 0.0
  %2912 = vmatprep.subr.mxu0 0.0
  %2913 = vmatpush1.msra.mxu0 0.0
  %2914 = vmatprep.subr.mxu0 0.0
  %2915 = vmatpush1.msra.mxu0 0.0
  %2916 = vmatprep.subr.mxu0 0.0
  %2917 = vmatpush1.msra.mxu0 0.0
  %2918 = vmatprep.subr.mxu0 0.0
  %2919 = vmatpush1.msra.mxu0 0.0
  %2920 = vmatprep.subr.mxu0 0.0
  %2921 = vmatpush1.msra.mxu0 0.0
  %2922 = vmatprep.subr.mxu0 0.0
  %2923 = vmatpush1.msra.mxu0 0.0
  %2924 = vmatprep.subr.mxu0 0.0
  %2925 = vmatpush1.msra.mxu0 0.0
  %2926 = vmatprep.subr.mxu0 0.0
  %2927 = vmatpush1.msra.mxu0 0.0
  %2928 = vmatprep.subr.mxu0 0.0
  %2929 = vmatpush1.msra.mxu0 0.0
  %2930 = vmatprep.subr.mxu0 0.0
  %2931 = vmatpush1.msra.mxu0 0.0
  %2932 = vmatprep.subr.mxu0 0.0
  %2933 = vmatpush1.msra.mxu0 0.0
  %2934 = vmatprep.subr.mxu0 0.0
  %2935 = vmatpush1.msra.mxu0 0.0
  %2936 = vmatprep.subr.mxu0 0.0
  %2937 = vmatpush1.msra.mxu0 0.0
  %2938 = vmatprep.subr.mxu0 0.0
  %2939 = vmatpush1.msra.mxu0 0.0
  %2940 = vmatprep.subr.mxu0 0.0
  %2941 = vmatpush1.msra.mxu0 0.0
  %2942 = vmatprep.subr.mxu0 0.0
  %2943 = vmatpush1.msra.mxu0 0.0
  %2944 = vmatprep.subr.mxu0 0.0
  %2945 = vmatpush1.msra.mxu0 0.0
  %2946 = vmatprep.subr.mxu0 0.0
  %2947 = vmatpush1.msra.mxu0 0.0
  %2948 = vmatprep.mubr.f32.mxu0 0.0
  %v2949 = vand.u32 %v2783, 4294901760
  %2950 = vmatmul.mubr.f32.gmra.mrb[0].mxu0 %v2949
  %v2951 = vpop.f32.mrb[0].mxu0
  %v2952 = vadd.f32 %v2861, %v2951
  %v2953 = vpop.f32.mrb[0].mxu0
  %2954 = vdwg.mxu0
  %2955 = vmatprep.subr.mxu0 0.0
  %v2956 = vand.u32 %v820, 4294901760
  %v2957 = vsub.f32 %v820, %v2956
  %2958 = vmatpush1.msra.mxu0 %v2957
  %2959 = vmatprep.subr.mxu0 0.0
  %v2960 = vand.u32 %v821, 4294901760
  %v2961 = vsub.f32 %v821, %v2960
  %2962 = vmatpush1.msra.mxu0 %v2961
  %2963 = vmatprep.subr.mxu0 0.0
  %v2964 = vand.u32 %v822, 4294901760
  %v2965 = vsub.f32 %v822, %v2964
  %2966 = vmatpush1.msra.mxu0 %v2965
  %2967 = vmatprep.subr.mxu0 0.0
  %v2968 = vand.u32 %v823, 4294901760
  %v2969 = vsub.f32 %v823, %v2968
  %2970 = vmatpush1.msra.mxu0 %v2969
  %2971 = vmatprep.subr.mxu0 0.0
  %2972 = vmatpush1.msra.mxu0 0.0
  %2973 = vmatprep.subr.mxu0 0.0
  %2974 = vmatpush1.msra.mxu0 0.0
  %2975 = vmatprep.subr.mxu0 0.0
  %2976 = vmatpush1.msra.mxu0 0.0
  %2977 = vmatprep.subr.mxu0 0.0
  %2978 = vmatpush1.msra.mxu0 0.0
  %2979 = vmatprep.subr.mxu0 0.0
  %2980 = vmatpush1.msra.mxu0 0.0
  %2981 = vmatprep.subr.mxu0 0.0
  %2982 = vmatpush1.msra.mxu0 0.0
  %2983 = vmatprep.subr.mxu0 0.0
  %2984 = vmatpush1.msra.mxu0 0.0
  %2985 = vmatprep.subr.mxu0 0.0
  %2986 = vmatpush1.msra.mxu0 0.0
  %2987 = vmatprep.subr.mxu0 0.0
  %2988 = vmatpush1.msra.mxu0 0.0
  %2989 = vmatprep.subr.mxu0 0.0
  %2990 = vmatpush1.msra.mxu0 0.0
  %2991 = vmatprep.subr.mxu0 0.0
  %2992 = vmatpush1.msra.mxu0 0.0
  %2993 = vmatprep.subr.mxu0 0.0
  %2994 = vmatpush1.msra.mxu0 0.0
  %2995 = vmatprep.subr.mxu0 0.0
  %2996 = vmatpush1.msra.mxu0 0.0
  %2997 = vmatprep.subr.mxu0 0.0
  %2998 = vmatpush1.msra.mxu0 0.0
  %2999 = vmatprep.subr.mxu0 0.0
  %3000 = vmatpush1.msra.mxu0 0.0
  %3001 = vmatprep.subr.mxu0 0.0
  %3002 = vmatpush1.msra.mxu0 0.0
  %3003 = vmatprep.subr.mxu0 0.0
  %3004 = vmatpush1.msra.mxu0 0.0
  %3005 = vmatprep.subr.mxu0 0.0
  %3006 = vmatpush1.msra.mxu0 0.0
  %3007 = vmatprep.subr.mxu0 0.0
  %3008 = vmatpush1.msra.mxu0 0.0
  %3009 = vmatprep.subr.mxu0 0.0
  %3010 = vmatpush1.msra.mxu0 0.0
  %3011 = vmatprep.subr.mxu0 0.0
  %3012 = vmatpush1.msra.mxu0 0.0
  %3013 = vmatprep.subr.mxu0 0.0
  %3014 = vmatpush1.msra.mxu0 0.0
  %3015 = vmatprep.subr.mxu0 0.0
  %3016 = vmatpush1.msra.mxu0 0.0
  %3017 = vmatprep.subr.mxu0 0.0
  %3018 = vmatpush1.msra.mxu0 0.0
  %3019 = vmatprep.subr.mxu0 0.0
  %3020 = vmatpush1.msra.mxu0 0.0
  %3021 = vmatprep.subr.mxu0 0.0
  %3022 = vmatpush1.msra.mxu0 0.0
  %3023 = vmatprep.subr.mxu0 0.0
  %3024 = vmatpush1.msra.mxu0 0.0
  %3025 = vmatprep.subr.mxu0 0.0
  %3026 = vmatpush1.msra.mxu0 0.0
  %3027 = vmatprep.mubr.f32.mxu0 0.0
  %v3028 = vand.u32 %v2783, 4294901760
  %v3029 = vsub.f32 %v2783, %v3028
  %3030 = vmatmul.mubr.f32.gmra.mrb[0].mxu0 %v3029
  %v3031 = vpop.f32.mrb[0].mxu0
  %v3032 = vadd.f32 %v2952, %v3031
  %v3033 = vpop.f32.mrb[0].mxu0
  %3034 = vdwg.mxu0
  %3035 = vmatprep.subr.mxu0 0.0
  %v3036 = vand.u32 %v820, 4294901760
  %3037 = vmatpush1.msra.mxu0 %v3036
  %3038 = vmatprep.subr.mxu0 0.0
  %v3039 = vand.u32 %v821, 4294901760
  %3040 = vmatpush1.msra.mxu0 %v3039
  %3041 = vmatprep.subr.mxu0 0.0
  %v3042 = vand.u32 %v822, 4294901760
  %3043 = vmatpush1.msra.mxu0 %v3042
  %3044 = vmatprep.subr.mxu0 0.0
  %v3045 = vand.u32 %v823, 4294901760
  %3046 = vmatpush1.msra.mxu0 %v3045
  %3047 = vmatprep.subr.mxu0 0.0
  %3048 = vmatpush1.msra.mxu0 0.0
  %3049 = vmatprep.subr.mxu0 0.0
  %3050 = vmatpush1.msra.mxu0 0.0
  %3051 = vmatprep.subr.mxu0 0.0
  %3052 = vmatpush1.msra.mxu0 0.0
  %3053 = vmatprep.subr.mxu0 0.0
  %3054 = vmatpush1.msra.mxu0 0.0
  %3055 = vmatprep.subr.mxu0 0.0
  %3056 = vmatpush1.msra.mxu0 0.0
  %3057 = vmatprep.subr.mxu0 0.0
  %3058 = vmatpush1.msra.mxu0 0.0
  %3059 = vmatprep.subr.mxu0 0.0
  %3060 = vmatpush1.msra.mxu0 0.0
  %3061 = vmatprep.subr.mxu0 0.0
  %3062 = vmatpush1.msra.mxu0 0.0
  %3063 = vmatprep.subr.mxu0 0.0
  %3064 = vmatpush1.msra.mxu0 0.0
  %3065 = vmatprep.subr.mxu0 0.0
  %3066 = vmatpush1.msra.mxu0 0.0
  %3067 = vmatprep.subr.mxu0 0.0
  %3068 = vmatpush1.msra.mxu0 0.0
  %3069 = vmatprep.subr.mxu0 0.0
  %3070 = vmatpush1.msra.mxu0 0.0
  %3071 = vmatprep.subr.mxu0 0.0
  %3072 = vmatpush1.msra.mxu0 0.0
  %3073 = vmatprep.subr.mxu0 0.0
  %3074 = vmatpush1.msra.mxu0 0.0
  %3075 = vmatprep.subr.mxu0 0.0
  %3076 = vmatpush1.msra.mxu0 0.0
  %3077 = vmatprep.subr.mxu0 0.0
  %3078 = vmatpush1.msra.mxu0 0.0
  %3079 = vmatprep.subr.mxu0 0.0
  %3080 = vmatpush1.msra.mxu0 0.0
  %3081 = vmatprep.subr.mxu0 0.0
  %3082 = vmatpush1.msra.mxu0 0.0
  %3083 = vmatprep.subr.mxu0 0.0
  %3084 = vmatpush1.msra.mxu0 0.0
  %3085 = vmatprep.subr.mxu0 0.0
  %3086 = vmatpush1.msra.mxu0 0.0
  %3087 = vmatprep.subr.mxu0 0.0
  %3088 = vmatpush1.msra.mxu0 0.0
  %3089 = vmatprep.subr.mxu0 0.0
  %3090 = vmatpush1.msra.mxu0 0.0
  %3091 = vmatprep.subr.mxu0 0.0
  %3092 = vmatpush1.msra.mxu0 0.0
  %3093 = vmatprep.subr.mxu0 0.0
  %3094 = vmatpush1.msra.mxu0 0.0
  %3095 = vmatprep.subr.mxu0 0.0
  %3096 = vmatpush1.msra.mxu0 0.0
  %3097 = vmatprep.subr.mxu0 0.0
  %3098 = vmatpush1.msra.mxu0 0.0
  %3099 = vmatprep.subr.mxu0 0.0
  %3100 = vmatpush1.msra.mxu0 0.0
  %3101 = vmatprep.subr.mxu0 0.0
  %3102 = vmatpush1.msra.mxu0 0.0
  %3103 = vmatprep.mubr.f32.mxu0 0.0
  %v3104 = vand.u32 %v2783, 4294901760
  %v3105 = vsub.f32 %v2783, %v3104
  %v3106 = vand.u32 %v3105, 4294901760
  %3107 = vmatmul.mubr.f32.gmra.mrb[0].mxu0 %v3106
  %v3108 = vpop.f32.mrb[0].mxu0
  %v3109 = vadd.f32 %v3032, %v3108
  %v3110 = vpop.f32.mrb[0].mxu0
  %3111 = vdwg.mxu0
  %3112 = vmatprep.subr.mxu0 0.0
  %v3113 = vand.u32 %v820, 4294901760
  %v3114 = vsub.f32 %v820, %v3113
  %v3115 = vand.u32 %v3114, 4294901760
  %3116 = vmatpush1.msra.mxu0 %v3115
  %3117 = vmatprep.subr.mxu0 0.0
  %v3118 = vand.u32 %v821, 4294901760
  %v3119 = vsub.f32 %v821, %v3118
  %v3120 = vand.u32 %v3119, 4294901760
  %3121 = vmatpush1.msra.mxu0 %v3120
  %3122 = vmatprep.subr.mxu0 0.0
  %v3123 = vand.u32 %v822, 4294901760
  %v3124 = vsub.f32 %v822, %v3123
  %v3125 = vand.u32 %v3124, 4294901760
  %3126 = vmatpush1.msra.mxu0 %v3125
  %3127 = vmatprep.subr.mxu0 0.0
  %v3128 = vand.u32 %v823, 4294901760
  %v3129 = vsub.f32 %v823, %v3128
  %v3130 = vand.u32 %v3129, 4294901760
  %3131 = vmatpush1.msra.mxu0 %v3130
  %3132 = vmatprep.subr.mxu0 0.0
  %3133 = vmatpush1.msra.mxu0 0.0
  %3134 = vmatprep.subr.mxu0 0.0
  %3135 = vmatpush1.msra.mxu0 0.0
  %3136 = vmatprep.subr.mxu0 0.0
  %3137 = vmatpush1.msra.mxu0 0.0
  %3138 = vmatprep.subr.mxu0 0.0
  %3139 = vmatpush1.msra.mxu0 0.0
  %3140 = vmatprep.subr.mxu0 0.0
  %3141 = vmatpush1.msra.mxu0 0.0
  %3142 = vmatprep.subr.mxu0 0.0
  %3143 = vmatpush1.msra.mxu0 0.0
  %3144 = vmatprep.subr.mxu0 0.0
  %3145 = vmatpush1.msra.mxu0 0.0
  %3146 = vmatprep.subr.mxu0 0.0
  %3147 = vmatpush1.msra.mxu0 0.0
  %3148 = vmatprep.subr.mxu0 0.0
  %3149 = vmatpush1.msra.mxu0 0.0
  %3150 = vmatprep.subr.mxu0 0.0
  %3151 = vmatpush1.msra.mxu0 0.0
  %3152 = vmatprep.subr.mxu0 0.0
  %3153 = vmatpush1.msra.mxu0 0.0
  %3154 = vmatprep.subr.mxu0 0.0
  %3155 = vmatpush1.msra.mxu0 0.0
  %3156 = vmatprep.subr.mxu0 0.0
  %3157 = vmatpush1.msra.mxu0 0.0
  %3158 = vmatprep.subr.mxu0 0.0
  %3159 = vmatpush1.msra.mxu0 0.0
  %3160 = vmatprep.subr.mxu0 0.0
  %3161 = vmatpush1.msra.mxu0 0.0
  %3162 = vmatprep.subr.mxu0 0.0
  %3163 = vmatpush1.msra.mxu0 0.0
  %3164 = vmatprep.subr.mxu0 0.0
  %3165 = vmatpush1.msra.mxu0 0.0
  %3166 = vmatprep.subr.mxu0 0.0
  %3167 = vmatpush1.msra.mxu0 0.0
  %3168 = vmatprep.subr.mxu0 0.0
  %3169 = vmatpush1.msra.mxu0 0.0
  %3170 = vmatprep.subr.mxu0 0.0
  %3171 = vmatpush1.msra.mxu0 0.0
  %3172 = vmatprep.subr.mxu0 0.0
  %3173 = vmatpush1.msra.mxu0 0.0
  %3174 = vmatprep.subr.mxu0 0.0
  %3175 = vmatpush1.msra.mxu0 0.0
  %3176 = vmatprep.subr.mxu0 0.0
  %3177 = vmatpush1.msra.mxu0 0.0
  %3178 = vmatprep.subr.mxu0 0.0
  %3179 = vmatpush1.msra.mxu0 0.0
  %3180 = vmatprep.subr.mxu0 0.0
  %3181 = vmatpush1.msra.mxu0 0.0
  %3182 = vmatprep.subr.mxu0 0.0
  %3183 = vmatpush1.msra.mxu0 0.0
  %3184 = vmatprep.subr.mxu0 0.0
  %3185 = vmatpush1.msra.mxu0 0.0
  %3186 = vmatprep.subr.mxu0 0.0
  %3187 = vmatpush1.msra.mxu0 0.0
  %3188 = vmatprep.mubr.f32.mxu0 0.0
  %v3189 = vand.u32 %v2783, 4294901760
  %3190 = vmatmul.mubr.f32.gmra.mrb[0].mxu0 %v3189
  %v3191 = vpop.f32.mrb[0].mxu0
  %v3192 = vadd.f32 %v3109, %v3191
  %v3193 = vpop.f32.mrb[0].mxu0
  %3194 = vdwg.mxu0
  %3195 = vmatprep.subr.mxu0 0.0
  %v3196 = vand.u32 %v820, 4294901760
  %3197 = vmatpush1.msra.mxu0 %v3196
  %3198 = vmatprep.subr.mxu0 0.0
  %v3199 = vand.u32 %v821, 4294901760
  %3200 = vmatpush1.msra.mxu0 %v3199
  %3201 = vmatprep.subr.mxu0 0.0
  %v3202 = vand.u32 %v822, 4294901760
  %3203 = vmatpush1.msra.mxu0 %v3202
  %3204 = vmatprep.subr.mxu0 0.0
  %v3205 = vand.u32 %v823, 4294901760
  %3206 = vmatpush1.msra.mxu0 %v3205
  %3207 = vmatprep.subr.mxu0 0.0
  %3208 = vmatpush1.msra.mxu0 0.0
  %3209 = vmatprep.subr.mxu0 0.0
  %3210 = vmatpush1.msra.mxu0 0.0
  %3211 = vmatprep.subr.mxu0 0.0
  %3212 = vmatpush1.msra.mxu0 0.0
  %3213 = vmatprep.subr.mxu0 0.0
  %3214 = vmatpush1.msra.mxu0 0.0
  %3215 = vmatprep.subr.mxu0 0.0
  %3216 = vmatpush1.msra.mxu0 0.0
  %3217 = vmatprep.subr.mxu0 0.0
  %3218 = vmatpush1.msra.mxu0 0.0
  %3219 = vmatprep.subr.mxu0 0.0
  %3220 = vmatpush1.msra.mxu0 0.0
  %3221 = vmatprep.subr.mxu0 0.0
  %3222 = vmatpush1.msra.mxu0 0.0
  %3223 = vmatprep.subr.mxu0 0.0
  %3224 = vmatpush1.msra.mxu0 0.0
  %3225 = vmatprep.subr.mxu0 0.0
  %3226 = vmatpush1.msra.mxu0 0.0
  %3227 = vmatprep.subr.mxu0 0.0
  %3228 = vmatpush1.msra.mxu0 0.0
  %3229 = vmatprep.subr.mxu0 0.0
  %3230 = vmatpush1.msra.mxu0 0.0
  %3231 = vmatprep.subr.mxu0 0.0
  %3232 = vmatpush1.msra.mxu0 0.0
  %3233 = vmatprep.subr.mxu0 0.0
  %3234 = vmatpush1.msra.mxu0 0.0
  %3235 = vmatprep.subr.mxu0 0.0
  %3236 = vmatpush1.msra.mxu0 0.0
  %3237 = vmatprep.subr.mxu0 0.0
  %3238 = vmatpush1.msra.mxu0 0.0
  %3239 = vmatprep.subr.mxu0 0.0
  %3240 = vmatpush1.msra.mxu0 0.0
  %3241 = vmatprep.subr.mxu0 0.0
  %3242 = vmatpush1.msra.mxu0 0.0
  %3243 = vmatprep.subr.mxu0 0.0
  %3244 = vmatpush1.msra.mxu0 0.0
  %3245 = vmatprep.subr.mxu0 0.0
  %3246 = vmatpush1.msra.mxu0 0.0
  %3247 = vmatprep.subr.mxu0 0.0
  %3248 = vmatpush1.msra.mxu0 0.0
  %3249 = vmatprep.subr.mxu0 0.0
  %3250 = vmatpush1.msra.mxu0 0.0
  %3251 = vmatprep.subr.mxu0 0.0
  %3252 = vmatpush1.msra.mxu0 0.0
  %3253 = vmatprep.subr.mxu0 0.0
  %3254 = vmatpush1.msra.mxu0 0.0
  %3255 = vmatprep.subr.mxu0 0.0
  %3256 = vmatpush1.msra.mxu0 0.0
  %3257 = vmatprep.subr.mxu0 0.0
  %3258 = vmatpush1.msra.mxu0 0.0
  %3259 = vmatprep.subr.mxu0 0.0
  %3260 = vmatpush1.msra.mxu0 0.0
  %3261 = vmatprep.subr.mxu0 0.0
  %3262 = vmatpush1.msra.mxu0 0.0
  %3263 = vmatprep.mubr.f32.mxu0 0.0
  %v3264 = vand.u32 %v2783, 4294901760
  %3265 = vmatmul.mubr.f32.gmra.mrb[0].mxu0 %v3264
  %v3266 = vpop.f32.mrb[0].mxu0
  %v3267 = vadd.f32 %v3192, %v3266
  %v3268 = vpop.f32.mrb[0].mxu0
  %3269 = vdwg.mxu0
  %v3270 = vtanh.pop %v3267
  %v3272 = vsel %vm825, %v3270, 0
  %3274 = vmatprep.subr.mxu0 0.0
  %v3275 = vand.u32 %v820, 4294901760
  %3276 = vmatpush1.msra.mxu0 %v3275
  %3277 = vmatprep.subr.mxu0 0.0
  %v3278 = vand.u32 %v821, 4294901760
  %3279 = vmatpush1.msra.mxu0 %v3278
  %3280 = vmatprep.subr.mxu0 0.0
  %v3281 = vand.u32 %v822, 4294901760
  %3282 = vmatpush1.msra.mxu0 %v3281
  %3283 = vmatprep.subr.mxu0 0.0
  %v3284 = vand.u32 %v823, 4294901760
  %3285 = vmatpush1.msra.mxu0 %v3284
  %3286 = vmatprep.subr.mxu0 0.0
  %3287 = vmatpush1.msra.mxu0 0.0
  %3288 = vmatprep.subr.mxu0 0.0
  %3289 = vmatpush1.msra.mxu0 0.0
  %3290 = vmatprep.subr.mxu0 0.0
  %3291 = vmatpush1.msra.mxu0 0.0
  %3292 = vmatprep.subr.mxu0 0.0
  %3293 = vmatpush1.msra.mxu0 0.0
  %3294 = vmatprep.subr.mxu0 0.0
  %3295 = vmatpush1.msra.mxu0 0.0
  %3296 = vmatprep.subr.mxu0 0.0
  %3297 = vmatpush1.msra.mxu0 0.0
  %3298 = vmatprep.subr.mxu0 0.0
  %3299 = vmatpush1.msra.mxu0 0.0
  %3300 = vmatprep.subr.mxu0 0.0
  %3301 = vmatpush1.msra.mxu0 0.0
  %3302 = vmatprep.subr.mxu0 0.0
  %3303 = vmatpush1.msra.mxu0 0.0
  %3304 = vmatprep.subr.mxu0 0.0
  %3305 = vmatpush1.msra.mxu0 0.0
  %3306 = vmatprep.subr.mxu0 0.0
  %3307 = vmatpush1.msra.mxu0 0.0
  %3308 = vmatprep.subr.mxu0 0.0
  %3309 = vmatpush1.msra.mxu0 0.0
  %3310 = vmatprep.subr.mxu0 0.0
  %3311 = vmatpush1.msra.mxu0 0.0
  %3312 = vmatprep.subr.mxu0 0.0
  %3313 = vmatpush1.msra.mxu0 0.0
  %3314 = vmatprep.subr.mxu0 0.0
  %3315 = vmatpush1.msra.mxu0 0.0
  %3316 = vmatprep.subr.mxu0 0.0
  %3317 = vmatpush1.msra.mxu0 0.0
  %3318 = vmatprep.subr.mxu0 0.0
  %3319 = vmatpush1.msra.mxu0 0.0
  %3320 = vmatprep.subr.mxu0 0.0
  %3321 = vmatpush1.msra.mxu0 0.0
  %3322 = vmatprep.subr.mxu0 0.0
  %3323 = vmatpush1.msra.mxu0 0.0
  %3324 = vmatprep.subr.mxu0 0.0
  %3325 = vmatpush1.msra.mxu0 0.0
  %3326 = vmatprep.subr.mxu0 0.0
  %3327 = vmatpush1.msra.mxu0 0.0
  %3328 = vmatprep.subr.mxu0 0.0
  %3329 = vmatpush1.msra.mxu0 0.0
  %3330 = vmatprep.subr.mxu0 0.0
  %3331 = vmatpush1.msra.mxu0 0.0
  %3332 = vmatprep.subr.mxu0 0.0
  %3333 = vmatpush1.msra.mxu0 0.0
  %3334 = vmatprep.subr.mxu0 0.0
  %3335 = vmatpush1.msra.mxu0 0.0
  %3336 = vmatprep.subr.mxu0 0.0
  %3337 = vmatpush1.msra.mxu0 0.0
  %3338 = vmatprep.subr.mxu0 0.0
  %3339 = vmatpush1.msra.mxu0 0.0
  %3340 = vmatprep.subr.mxu0 0.0
  %3341 = vmatpush1.msra.mxu0 0.0
  %3342 = vmatprep.mubr.f32.mxu0 0.0
  %v3343 = vand.u32 %v3272, 4294901760
  %v3344 = vsub.f32 %v3272, %v3343
  %v3345 = vand.u32 %v3344, 4294901760
  %v3346 = vsub.f32 %v3344, %v3345
  %v3347 = vand.u32 %v3346, 4294901760
  %3348 = vmatmul.mubr.f32.gmra.mrb[0].mxu0 %v3347
  %v3349 = vpop.f32.mrb[0].mxu0
  %v3350 = vadd.f32 %v805, %v3349
  %v3351 = vpop.f32.mrb[0].mxu0
  %3352 = vdwg.mxu0
  %3353 = vmatprep.subr.mxu0 0.0
  %v3354 = vand.u32 %v820, 4294901760
  %v3355 = vsub.f32 %v820, %v3354
  %v3356 = vand.u32 %v3355, 4294901760
  %v3357 = vsub.f32 %v3355, %v3356
  %v3358 = vand.u32 %v3357, 4294901760
  %3359 = vmatpush1.msra.mxu0 %v3358
  %3360 = vmatprep.subr.mxu0 0.0
  %v3361 = vand.u32 %v821, 4294901760
  %v3362 = vsub.f32 %v821, %v3361
  %v3363 = vand.u32 %v3362, 4294901760
  %v3364 = vsub.f32 %v3362, %v3363
  %v3365 = vand.u32 %v3364, 4294901760
  %3366 = vmatpush1.msra.mxu0 %v3365
  %3367 = vmatprep.subr.mxu0 0.0
  %v3368 = vand.u32 %v822, 4294901760
  %v3369 = vsub.f32 %v822, %v3368
  %v3370 = vand.u32 %v3369, 4294901760
  %v3371 = vsub.f32 %v3369, %v3370
  %v3372 = vand.u32 %v3371, 4294901760
  %3373 = vmatpush1.msra.mxu0 %v3372
  %3374 = vmatprep.subr.mxu0 0.0
  %v3375 = vand.u32 %v823, 4294901760
  %v3376 = vsub.f32 %v823, %v3375
  %v3377 = vand.u32 %v3376, 4294901760
  %v3378 = vsub.f32 %v3376, %v3377
  %v3379 = vand.u32 %v3378, 4294901760
  %3380 = vmatpush1.msra.mxu0 %v3379
  %3381 = vmatprep.subr.mxu0 0.0
  %3382 = vmatpush1.msra.mxu0 0.0
  %3383 = vmatprep.subr.mxu0 0.0
  %3384 = vmatpush1.msra.mxu0 0.0
  %3385 = vmatprep.subr.mxu0 0.0
  %3386 = vmatpush1.msra.mxu0 0.0
  %3387 = vmatprep.subr.mxu0 0.0
  %3388 = vmatpush1.msra.mxu0 0.0
  %3389 = vmatprep.subr.mxu0 0.0
  %3390 = vmatpush1.msra.mxu0 0.0
  %3391 = vmatprep.subr.mxu0 0.0
  %3392 = vmatpush1.msra.mxu0 0.0
  %3393 = vmatprep.subr.mxu0 0.0
  %3394 = vmatpush1.msra.mxu0 0.0
  %3395 = vmatprep.subr.mxu0 0.0
  %3396 = vmatpush1.msra.mxu0 0.0
  %3397 = vmatprep.subr.mxu0 0.0
  %3398 = vmatpush1.msra.mxu0 0.0
  %3399 = vmatprep.subr.mxu0 0.0
  %3400 = vmatpush1.msra.mxu0 0.0
  %3401 = vmatprep.subr.mxu0 0.0
  %3402 = vmatpush1.msra.mxu0 0.0
  %3403 = vmatprep.subr.mxu0 0.0
  %3404 = vmatpush1.msra.mxu0 0.0
  %3405 = vmatprep.subr.mxu0 0.0
  %3406 = vmatpush1.msra.mxu0 0.0
  %3407 = vmatprep.subr.mxu0 0.0
  %3408 = vmatpush1.msra.mxu0 0.0
  %3409 = vmatprep.subr.mxu0 0.0
  %3410 = vmatpush1.msra.mxu0 0.0
  %3411 = vmatprep.subr.mxu0 0.0
  %3412 = vmatpush1.msra.mxu0 0.0
  %3413 = vmatprep.subr.mxu0 0.0
  %3414 = vmatpush1.msra.mxu0 0.0
  %3415 = vmatprep.subr.mxu0 0.0
  %3416 = vmatpush1.msra.mxu0 0.0
  %3417 = vmatprep.subr.mxu0 0.0
  %3418 = vmatpush1.msra.mxu0 0.0
  %3419 = vmatprep.subr.mxu0 0.0
  %3420 = vmatpush1.msra.mxu0 0.0
  %3421 = vmatprep.subr.mxu0 0.0
  %3422 = vmatpush1.msra.mxu0 0.0
  %3423 = vmatprep.subr.mxu0 0.0
  %3424 = vmatpush1.msra.mxu0 0.0
  %3425 = vmatprep.subr.mxu0 0.0
  %3426 = vmatpush1.msra.mxu0 0.0
  %3427 = vmatprep.subr.mxu0 0.0
  %3428 = vmatpush1.msra.mxu0 0.0
  %3429 = vmatprep.subr.mxu0 0.0
  %3430 = vmatpush1.msra.mxu0 0.0
  %3431 = vmatprep.subr.mxu0 0.0
  %3432 = vmatpush1.msra.mxu0 0.0
  %3433 = vmatprep.subr.mxu0 0.0
  %3434 = vmatpush1.msra.mxu0 0.0
  %3435 = vmatprep.subr.mxu0 0.0
  %3436 = vmatpush1.msra.mxu0 0.0
  %3437 = vmatprep.mubr.f32.mxu0 0.0
  %v3438 = vand.u32 %v3272, 4294901760
  %3439 = vmatmul.mubr.f32.gmra.mrb[0].mxu0 %v3438
  %v3440 = vpop.f32.mrb[0].mxu0
  %v3441 = vadd.f32 %v3350, %v3440
  %v3442 = vpop.f32.mrb[0].mxu0
  %3443 = vdwg.mxu0
  %3444 = vmatprep.subr.mxu0 0.0
  %v3445 = vand.u32 %v820, 4294901760
  %v3446 = vsub.f32 %v820, %v3445
  %3447 = vmatpush1.msra.mxu0 %v3446
  %3448 = vmatprep.subr.mxu0 0.0
  %v3449 = vand.u32 %v821, 4294901760
  %v3450 = vsub.f32 %v821, %v3449
  %3451 = vmatpush1.msra.mxu0 %v3450
  %3452 = vmatprep.subr.mxu0 0.0
  %v3453 = vand.u32 %v822, 4294901760
  %v3454 = vsub.f32 %v822, %v3453
  %3455 = vmatpush1.msra.mxu0 %v3454
  %3456 = vmatprep.subr.mxu0 0.0
  %v3457 = vand.u32 %v823, 4294901760
  %v3458 = vsub.f32 %v823, %v3457
  %3459 = vmatpush1.msra.mxu0 %v3458
  %3460 = vmatprep.subr.mxu0 0.0
  %3461 = vmatpush1.msra.mxu0 0.0
  %3462 = vmatprep.subr.mxu0 0.0
  %3463 = vmatpush1.msra.mxu0 0.0
  %3464 = vmatprep.subr.mxu0 0.0
  %3465 = vmatpush1.msra.mxu0 0.0
  %3466 = vmatprep.subr.mxu0 0.0
  %3467 = vmatpush1.msra.mxu0 0.0
  %3468 = vmatprep.subr.mxu0 0.0
  %3469 = vmatpush1.msra.mxu0 0.0
  %3470 = vmatprep.subr.mxu0 0.0
  %3471 = vmatpush1.msra.mxu0 0.0
  %3472 = vmatprep.subr.mxu0 0.0
  %3473 = vmatpush1.msra.mxu0 0.0
  %3474 = vmatprep.subr.mxu0 0.0
  %3475 = vmatpush1.msra.mxu0 0.0
  %3476 = vmatprep.subr.mxu0 0.0
  %3477 = vmatpush1.msra.mxu0 0.0
  %3478 = vmatprep.subr.mxu0 0.0
  %3479 = vmatpush1.msra.mxu0 0.0
  %3480 = vmatprep.subr.mxu0 0.0
  %3481 = vmatpush1.msra.mxu0 0.0
  %3482 = vmatprep.subr.mxu0 0.0
  %3483 = vmatpush1.msra.mxu0 0.0
  %3484 = vmatprep.subr.mxu0 0.0
  %3485 = vmatpush1.msra.mxu0 0.0
  %3486 = vmatprep.subr.mxu0 0.0
  %3487 = vmatpush1.msra.mxu0 0.0
  %3488 = vmatprep.subr.mxu0 0.0
  %3489 = vmatpush1.msra.mxu0 0.0
  %3490 = vmatprep.subr.mxu0 0.0
  %3491 = vmatpush1.msra.mxu0 0.0
  %3492 = vmatprep.subr.mxu0 0.0
  %3493 = vmatpush1.msra.mxu0 0.0
  %3494 = vmatprep.subr.mxu0 0.0
  %3495 = vmatpush1.msra.mxu0 0.0
  %3496 = vmatprep.subr.mxu0 0.0
  %3497 = vmatpush1.msra.mxu0 0.0
  %3498 = vmatprep.subr.mxu0 0.0
  %3499 = vmatpush1.msra.mxu0 0.0
  %3500 = vmatprep.subr.mxu0 0.0
  %3501 = vmatpush1.msra.mxu0 0.0
  %3502 = vmatprep.subr.mxu0 0.0
  %3503 = vmatpush1.msra.mxu0 0.0
  %3504 = vmatprep.subr.mxu0 0.0
  %3505 = vmatpush1.msra.mxu0 0.0
  %3506 = vmatprep.subr.mxu0 0.0
  %3507 = vmatpush1.msra.mxu0 0.0
  %3508 = vmatprep.subr.mxu0 0.0
  %3509 = vmatpush1.msra.mxu0 0.0
  %3510 = vmatprep.subr.mxu0 0.0
  %3511 = vmatpush1.msra.mxu0 0.0
  %3512 = vmatprep.subr.mxu0 0.0
  %3513 = vmatpush1.msra.mxu0 0.0
  %3514 = vmatprep.subr.mxu0 0.0
  %3515 = vmatpush1.msra.mxu0 0.0
  %3516 = vmatprep.mubr.f32.mxu0 0.0
  %v3517 = vand.u32 %v3272, 4294901760
  %v3518 = vsub.f32 %v3272, %v3517
  %3519 = vmatmul.mubr.f32.gmra.mrb[0].mxu0 %v3518
  %v3520 = vpop.f32.mrb[0].mxu0
  %v3521 = vadd.f32 %v3441, %v3520
  %v3522 = vpop.f32.mrb[0].mxu0
  %3523 = vdwg.mxu0
  %3524 = vmatprep.subr.mxu0 0.0
  %v3525 = vand.u32 %v820, 4294901760
  %3526 = vmatpush1.msra.mxu0 %v3525
  %3527 = vmatprep.subr.mxu0 0.0
  %v3528 = vand.u32 %v821, 4294901760
  %3529 = vmatpush1.msra.mxu0 %v3528
  %3530 = vmatprep.subr.mxu0 0.0
  %v3531 = vand.u32 %v822, 4294901760
  %3532 = vmatpush1.msra.mxu0 %v3531
  %3533 = vmatprep.subr.mxu0 0.0
  %v3534 = vand.u32 %v823, 4294901760
  %3535 = vmatpush1.msra.mxu0 %v3534
  %3536 = vmatprep.subr.mxu0 0.0
  %3537 = vmatpush1.msra.mxu0 0.0
  %3538 = vmatprep.subr.mxu0 0.0
  %3539 = vmatpush1.msra.mxu0 0.0
  %3540 = vmatprep.subr.mxu0 0.0
  %3541 = vmatpush1.msra.mxu0 0.0
  %3542 = vmatprep.subr.mxu0 0.0
  %3543 = vmatpush1.msra.mxu0 0.0
  %3544 = vmatprep.subr.mxu0 0.0
  %3545 = vmatpush1.msra.mxu0 0.0
  %3546 = vmatprep.subr.mxu0 0.0
  %3547 = vmatpush1.msra.mxu0 0.0
  %3548 = vmatprep.subr.mxu0 0.0
  %3549 = vmatpush1.msra.mxu0 0.0
  %3550 = vmatprep.subr.mxu0 0.0
  %3551 = vmatpush1.msra.mxu0 0.0
  %3552 = vmatprep.subr.mxu0 0.0
  %3553 = vmatpush1.msra.mxu0 0.0
  %3554 = vmatprep.subr.mxu0 0.0
  %3555 = vmatpush1.msra.mxu0 0.0
  %3556 = vmatprep.subr.mxu0 0.0
  %3557 = vmatpush1.msra.mxu0 0.0
  %3558 = vmatprep.subr.mxu0 0.0
  %3559 = vmatpush1.msra.mxu0 0.0
  %3560 = vmatprep.subr.mxu0 0.0
  %3561 = vmatpush1.msra.mxu0 0.0
  %3562 = vmatprep.subr.mxu0 0.0
  %3563 = vmatpush1.msra.mxu0 0.0
  %3564 = vmatprep.subr.mxu0 0.0
  %3565 = vmatpush1.msra.mxu0 0.0
  %3566 = vmatprep.subr.mxu0 0.0
  %3567 = vmatpush1.msra.mxu0 0.0
  %3568 = vmatprep.subr.mxu0 0.0
  %3569 = vmatpush1.msra.mxu0 0.0
  %3570 = vmatprep.subr.mxu0 0.0
  %3571 = vmatpush1.msra.mxu0 0.0
  %3572 = vmatprep.subr.mxu0 0.0
  %3573 = vmatpush1.msra.mxu0 0.0
  %3574 = vmatprep.subr.mxu0 0.0
  %3575 = vmatpush1.msra.mxu0 0.0
  %3576 = vmatprep.subr.mxu0 0.0
  %3577 = vmatpush1.msra.mxu0 0.0
  %3578 = vmatprep.subr.mxu0 0.0
  %3579 = vmatpush1.msra.mxu0 0.0
  %3580 = vmatprep.subr.mxu0 0.0
  %3581 = vmatpush1.msra.mxu0 0.0
  %3582 = vmatprep.subr.mxu0 0.0
  %3583 = vmatpush1.msra.mxu0 0.0
  %3584 = vmatprep.subr.mxu0 0.0
  %3585 = vmatpush1.msra.mxu0 0.0
  %3586 = vmatprep.subr.mxu0 0.0
  %3587 = vmatpush1.msra.mxu0 0.0
  %3588 = vmatprep.subr.mxu0 0.0
  %3589 = vmatpush1.msra.mxu0 0.0
  %3590 = vmatprep.subr.mxu0 0.0
  %3591 = vmatpush1.msra.mxu0 0.0
  %3592 = vmatprep.mubr.f32.mxu0 0.0
  %v3593 = vand.u32 %v3272, 4294901760
  %v3594 = vsub.f32 %v3272, %v3593
  %v3595 = vand.u32 %v3594, 4294901760
  %3596 = vmatmul.mubr.f32.gmra.mrb[0].mxu0 %v3595
  %v3597 = vpop.f32.mrb[0].mxu0
  %v3598 = vadd.f32 %v3521, %v3597
  %v3599 = vpop.f32.mrb[0].mxu0
  %3600 = vdwg.mxu0
  %3601 = vmatprep.subr.mxu0 0.0
  %v3602 = vand.u32 %v820, 4294901760
  %v3603 = vsub.f32 %v820, %v3602
  %v3604 = vand.u32 %v3603, 4294901760
  %3605 = vmatpush1.msra.mxu0 %v3604
  %3606 = vmatprep.subr.mxu0 0.0
  %v3607 = vand.u32 %v821, 4294901760
  %v3608 = vsub.f32 %v821, %v3607
  %v3609 = vand.u32 %v3608, 4294901760
  %3610 = vmatpush1.msra.mxu0 %v3609
  %3611 = vmatprep.subr.mxu0 0.0
  %v3612 = vand.u32 %v822, 4294901760
  %v3613 = vsub.f32 %v822, %v3612
  %v3614 = vand.u32 %v3613, 4294901760
  %3615 = vmatpush1.msra.mxu0 %v3614
  %3616 = vmatprep.subr.mxu0 0.0
  %v3617 = vand.u32 %v823, 4294901760
  %v3618 = vsub.f32 %v823, %v3617
  %v3619 = vand.u32 %v3618, 4294901760
  %3620 = vmatpush1.msra.mxu0 %v3619
  %3621 = vmatprep.subr.mxu0 0.0
  %3622 = vmatpush1.msra.mxu0 0.0
  %3623 = vmatprep.subr.mxu0 0.0
  %3624 = vmatpush1.msra.mxu0 0.0
  %3625 = vmatprep.subr.mxu0 0.0
  %3626 = vmatpush1.msra.mxu0 0.0
  %3627 = vmatprep.subr.mxu0 0.0
  %3628 = vmatpush1.msra.mxu0 0.0
  %3629 = vmatprep.subr.mxu0 0.0
  %3630 = vmatpush1.msra.mxu0 0.0
  %3631 = vmatprep.subr.mxu0 0.0
  %3632 = vmatpush1.msra.mxu0 0.0
  %3633 = vmatprep.subr.mxu0 0.0
  %3634 = vmatpush1.msra.mxu0 0.0
  %3635 = vmatprep.subr.mxu0 0.0
  %3636 = vmatpush1.msra.mxu0 0.0
  %3637 = vmatprep.subr.mxu0 0.0
  %3638 = vmatpush1.msra.mxu0 0.0
  %3639 = vmatprep.subr.mxu0 0.0
  %3640 = vmatpush1.msra.mxu0 0.0
  %3641 = vmatprep.subr.mxu0 0.0
  %3642 = vmatpush1.msra.mxu0 0.0
  %3643 = vmatprep.subr.mxu0 0.0
  %3644 = vmatpush1.msra.mxu0 0.0
  %3645 = vmatprep.subr.mxu0 0.0
  %3646 = vmatpush1.msra.mxu0 0.0
  %3647 = vmatprep.subr.mxu0 0.0
  %3648 = vmatpush1.msra.mxu0 0.0
  %3649 = vmatprep.subr.mxu0 0.0
  %3650 = vmatpush1.msra.mxu0 0.0
  %3651 = vmatprep.subr.mxu0 0.0
  %3652 = vmatpush1.msra.mxu0 0.0
  %3653 = vmatprep.subr.mxu0 0.0
  %3654 = vmatpush1.msra.mxu0 0.0
  %3655 = vmatprep.subr.mxu0 0.0
  %3656 = vmatpush1.msra.mxu0 0.0
  %3657 = vmatprep.subr.mxu0 0.0
  %3658 = vmatpush1.msra.mxu0 0.0
  %3659 = vmatprep.subr.mxu0 0.0
  %3660 = vmatpush1.msra.mxu0 0.0
  %3661 = vmatprep.subr.mxu0 0.0
  %3662 = vmatpush1.msra.mxu0 0.0
  %3663 = vmatprep.subr.mxu0 0.0
  %3664 = vmatpush1.msra.mxu0 0.0
  %3665 = vmatprep.subr.mxu0 0.0
  %3666 = vmatpush1.msra.mxu0 0.0
  %3667 = vmatprep.subr.mxu0 0.0
  %3668 = vmatpush1.msra.mxu0 0.0
  %3669 = vmatprep.subr.mxu0 0.0
  %3670 = vmatpush1.msra.mxu0 0.0
  %3671 = vmatprep.subr.mxu0 0.0
  %3672 = vmatpush1.msra.mxu0 0.0
  %3673 = vmatprep.subr.mxu0 0.0
  %3674 = vmatpush1.msra.mxu0 0.0
  %3675 = vmatprep.subr.mxu0 0.0
  %3676 = vmatpush1.msra.mxu0 0.0
  %3677 = vmatprep.mubr.f32.mxu0 0.0
  %v3678 = vand.u32 %v3272, 4294901760
  %3679 = vmatmul.mubr.f32.gmra.mrb[0].mxu0 %v3678
  %v3680 = vpop.f32.mrb[0].mxu0
  %v3681 = vadd.f32 %v3598, %v3680
  %v3682 = vpop.f32.mrb[0].mxu0
  %3683 = vdwg.mxu0
  %3684 = vmatprep.subr.mxu0 0.0
  %v3685 = vand.u32 %v820, 4294901760
  %3686 = vmatpush1.msra.mxu0 %v3685
  %3687 = vmatprep.subr.mxu0 0.0
  %v3688 = vand.u32 %v821, 4294901760
  %3689 = vmatpush1.msra.mxu0 %v3688
  %3690 = vmatprep.subr.mxu0 0.0
  %v3691 = vand.u32 %v822, 4294901760
  %3692 = vmatpush1.msra.mxu0 %v3691
  %3693 = vmatprep.subr.mxu0 0.0
  %v3694 = vand.u32 %v823, 4294901760
  %3695 = vmatpush1.msra.mxu0 %v3694
  %3696 = vmatprep.subr.mxu0 0.0
  %3697 = vmatpush1.msra.mxu0 0.0
  %3698 = vmatprep.subr.mxu0 0.0
  %3699 = vmatpush1.msra.mxu0 0.0
  %3700 = vmatprep.subr.mxu0 0.0
  %3701 = vmatpush1.msra.mxu0 0.0
  %3702 = vmatprep.subr.mxu0 0.0
  %3703 = vmatpush1.msra.mxu0 0.0
  %3704 = vmatprep.subr.mxu0 0.0
  %3705 = vmatpush1.msra.mxu0 0.0
  %3706 = vmatprep.subr.mxu0 0.0
  %3707 = vmatpush1.msra.mxu0 0.0
  %3708 = vmatprep.subr.mxu0 0.0
  %3709 = vmatpush1.msra.mxu0 0.0
  %3710 = vmatprep.subr.mxu0 0.0
  %3711 = vmatpush1.msra.mxu0 0.0
  %3712 = vmatprep.subr.mxu0 0.0
  %3713 = vmatpush1.msra.mxu0 0.0
  %3714 = vmatprep.subr.mxu0 0.0
  %3715 = vmatpush1.msra.mxu0 0.0
  %3716 = vmatprep.subr.mxu0 0.0
  %3717 = vmatpush1.msra.mxu0 0.0
  %3718 = vmatprep.subr.mxu0 0.0
  %3719 = vmatpush1.msra.mxu0 0.0
  %3720 = vmatprep.subr.mxu0 0.0
  %3721 = vmatpush1.msra.mxu0 0.0
  %3722 = vmatprep.subr.mxu0 0.0
  %3723 = vmatpush1.msra.mxu0 0.0
  %3724 = vmatprep.subr.mxu0 0.0
  %3725 = vmatpush1.msra.mxu0 0.0
  %3726 = vmatprep.subr.mxu0 0.0
  %3727 = vmatpush1.msra.mxu0 0.0
  %3728 = vmatprep.subr.mxu0 0.0
  %3729 = vmatpush1.msra.mxu0 0.0
  %3730 = vmatprep.subr.mxu0 0.0
  %3731 = vmatpush1.msra.mxu0 0.0
  %3732 = vmatprep.subr.mxu0 0.0
  %3733 = vmatpush1.msra.mxu0 0.0
  %3734 = vmatprep.subr.mxu0 0.0
  %3735 = vmatpush1.msra.mxu0 0.0
  %3736 = vmatprep.subr.mxu0 0.0
  %3737 = vmatpush1.msra.mxu0 0.0
  %3738 = vmatprep.subr.mxu0 0.0
  %3739 = vmatpush1.msra.mxu0 0.0
  %3740 = vmatprep.subr.mxu0 0.0
  %3741 = vmatpush1.msra.mxu0 0.0
  %3742 = vmatprep.subr.mxu0 0.0
  %3743 = vmatpush1.msra.mxu0 0.0
  %3744 = vmatprep.subr.mxu0 0.0
  %3745 = vmatpush1.msra.mxu0 0.0
  %3746 = vmatprep.subr.mxu0 0.0
  %3747 = vmatpush1.msra.mxu0 0.0
  %3748 = vmatprep.subr.mxu0 0.0
  %3749 = vmatpush1.msra.mxu0 0.0
  %3750 = vmatprep.subr.mxu0 0.0
  %3751 = vmatpush1.msra.mxu0 0.0
  %3752 = vmatprep.mubr.f32.mxu0 0.0
  %v3753 = vand.u32 %v3272, 4294901760
  %3754 = vmatmul.mubr.f32.gmra.mrb[0].mxu0 %v3753
  %v3755 = vpop.f32.mrb[0].mxu0
  %v3756 = vadd.f32 %v3681, %v3755
  %v3757 = vpop.f32.mrb[0].mxu0
  %3758 = vdwg.mxu0
  %v3759 = vtanh.pop %v3756
  %v3761 = vsel %vm825, %v3759, 0
  %3763 = vmatprep.subr.mxu0 0.0
  %v3764 = vand.u32 %v820, 4294901760
  %3765 = vmatpush1.msra.mxu0 %v3764
  %3766 = vmatprep.subr.mxu0 0.0
  %v3767 = vand.u32 %v821, 4294901760
  %3768 = vmatpush1.msra.mxu0 %v3767
  %3769 = vmatprep.subr.mxu0 0.0
  %v3770 = vand.u32 %v822, 4294901760
  %3771 = vmatpush1.msra.mxu0 %v3770
  %3772 = vmatprep.subr.mxu0 0.0
  %v3773 = vand.u32 %v823, 4294901760
  %3774 = vmatpush1.msra.mxu0 %v3773
  %3775 = vmatprep.subr.mxu0 0.0
  %3776 = vmatpush1.msra.mxu0 0.0
  %3777 = vmatprep.subr.mxu0 0.0
  %3778 = vmatpush1.msra.mxu0 0.0
  %3779 = vmatprep.subr.mxu0 0.0
  %3780 = vmatpush1.msra.mxu0 0.0
  %3781 = vmatprep.subr.mxu0 0.0
  %3782 = vmatpush1.msra.mxu0 0.0
  %3783 = vmatprep.subr.mxu0 0.0
  %3784 = vmatpush1.msra.mxu0 0.0
  %3785 = vmatprep.subr.mxu0 0.0
  %3786 = vmatpush1.msra.mxu0 0.0
  %3787 = vmatprep.subr.mxu0 0.0
  %3788 = vmatpush1.msra.mxu0 0.0
  %3789 = vmatprep.subr.mxu0 0.0
  %3790 = vmatpush1.msra.mxu0 0.0
  %3791 = vmatprep.subr.mxu0 0.0
  %3792 = vmatpush1.msra.mxu0 0.0
  %3793 = vmatprep.subr.mxu0 0.0
  %3794 = vmatpush1.msra.mxu0 0.0
  %3795 = vmatprep.subr.mxu0 0.0
  %3796 = vmatpush1.msra.mxu0 0.0
  %3797 = vmatprep.subr.mxu0 0.0
  %3798 = vmatpush1.msra.mxu0 0.0
  %3799 = vmatprep.subr.mxu0 0.0
  %3800 = vmatpush1.msra.mxu0 0.0
  %3801 = vmatprep.subr.mxu0 0.0
  %3802 = vmatpush1.msra.mxu0 0.0
  %3803 = vmatprep.subr.mxu0 0.0
  %3804 = vmatpush1.msra.mxu0 0.0
  %3805 = vmatprep.subr.mxu0 0.0
  %3806 = vmatpush1.msra.mxu0 0.0
  %3807 = vmatprep.subr.mxu0 0.0
  %3808 = vmatpush1.msra.mxu0 0.0
  %3809 = vmatprep.subr.mxu0 0.0
  %3810 = vmatpush1.msra.mxu0 0.0
  %3811 = vmatprep.subr.mxu0 0.0
  %3812 = vmatpush1.msra.mxu0 0.0
  %3813 = vmatprep.subr.mxu0 0.0
  %3814 = vmatpush1.msra.mxu0 0.0
  %3815 = vmatprep.subr.mxu0 0.0
  %3816 = vmatpush1.msra.mxu0 0.0
  %3817 = vmatprep.subr.mxu0 0.0
  %3818 = vmatpush1.msra.mxu0 0.0
  %3819 = vmatprep.subr.mxu0 0.0
  %3820 = vmatpush1.msra.mxu0 0.0
  %3821 = vmatprep.subr.mxu0 0.0
  %3822 = vmatpush1.msra.mxu0 0.0
  %3823 = vmatprep.subr.mxu0 0.0
  %3824 = vmatpush1.msra.mxu0 0.0
  %3825 = vmatprep.subr.mxu0 0.0
  %3826 = vmatpush1.msra.mxu0 0.0
  %3827 = vmatprep.subr.mxu0 0.0
  %3828 = vmatpush1.msra.mxu0 0.0
  %3829 = vmatprep.subr.mxu0 0.0
  %3830 = vmatpush1.msra.mxu0 0.0
  %3831 = vmatprep.mubr.f32.mxu0 0.0
  %v3832 = vand.u32 %v3761, 4294901760
  %v3833 = vsub.f32 %v3761, %v3832
  %v3834 = vand.u32 %v3833, 4294901760
  %v3835 = vsub.f32 %v3833, %v3834
  %v3836 = vand.u32 %v3835, 4294901760
  %3837 = vmatmul.mubr.f32.gmra.mrb[0].mxu0 %v3836
  %v3838 = vpop.f32.mrb[0].mxu0
  %v3839 = vadd.f32 %v811, %v3838
  %v3840 = vpop.f32.mrb[0].mxu0
  %3841 = vdwg.mxu0
  %3842 = vmatprep.subr.mxu0 0.0
  %v3843 = vand.u32 %v820, 4294901760
  %v3844 = vsub.f32 %v820, %v3843
  %v3845 = vand.u32 %v3844, 4294901760
  %v3846 = vsub.f32 %v3844, %v3845
  %v3847 = vand.u32 %v3846, 4294901760
  %3848 = vmatpush1.msra.mxu0 %v3847
  %3849 = vmatprep.subr.mxu0 0.0
  %v3850 = vand.u32 %v821, 4294901760
  %v3851 = vsub.f32 %v821, %v3850
  %v3852 = vand.u32 %v3851, 4294901760
  %v3853 = vsub.f32 %v3851, %v3852
  %v3854 = vand.u32 %v3853, 4294901760
  %3855 = vmatpush1.msra.mxu0 %v3854
  %3856 = vmatprep.subr.mxu0 0.0
  %v3857 = vand.u32 %v822, 4294901760
  %v3858 = vsub.f32 %v822, %v3857
  %v3859 = vand.u32 %v3858, 4294901760
  %v3860 = vsub.f32 %v3858, %v3859
  %v3861 = vand.u32 %v3860, 4294901760
  %3862 = vmatpush1.msra.mxu0 %v3861
  %3863 = vmatprep.subr.mxu0 0.0
  %v3864 = vand.u32 %v823, 4294901760
  %v3865 = vsub.f32 %v823, %v3864
  %v3866 = vand.u32 %v3865, 4294901760
  %v3867 = vsub.f32 %v3865, %v3866
  %v3868 = vand.u32 %v3867, 4294901760
  %3869 = vmatpush1.msra.mxu0 %v3868
  %3870 = vmatprep.subr.mxu0 0.0
  %3871 = vmatpush1.msra.mxu0 0.0
  %3872 = vmatprep.subr.mxu0 0.0
  %3873 = vmatpush1.msra.mxu0 0.0
  %3874 = vmatprep.subr.mxu0 0.0
  %3875 = vmatpush1.msra.mxu0 0.0
  %3876 = vmatprep.subr.mxu0 0.0
  %3877 = vmatpush1.msra.mxu0 0.0
  %3878 = vmatprep.subr.mxu0 0.0
  %3879 = vmatpush1.msra.mxu0 0.0
  %3880 = vmatprep.subr.mxu0 0.0
  %3881 = vmatpush1.msra.mxu0 0.0
  %3882 = vmatprep.subr.mxu0 0.0
  %3883 = vmatpush1.msra.mxu0 0.0
  %3884 = vmatprep.subr.mxu0 0.0
  %3885 = vmatpush1.msra.mxu0 0.0
  %3886 = vmatprep.subr.mxu0 0.0
  %3887 = vmatpush1.msra.mxu0 0.0
  %3888 = vmatprep.subr.mxu0 0.0
  %3889 = vmatpush1.msra.mxu0 0.0
  %3890 = vmatprep.subr.mxu0 0.0
  %3891 = vmatpush1.msra.mxu0 0.0
  %3892 = vmatprep.subr.mxu0 0.0
  %3893 = vmatpush1.msra.mxu0 0.0
  %3894 = vmatprep.subr.mxu0 0.0
  %3895 = vmatpush1.msra.mxu0 0.0
  %3896 = vmatprep.subr.mxu0 0.0
  %3897 = vmatpush1.msra.mxu0 0.0
  %3898 = vmatprep.subr.mxu0 0.0
  %3899 = vmatpush1.msra.mxu0 0.0
  %3900 = vmatprep.subr.mxu0 0.0
  %3901 = vmatpush1.msra.mxu0 0.0
  %3902 = vmatprep.subr.mxu0 0.0
  %3903 = vmatpush1.msra.mxu0 0.0
  %3904 = vmatprep.subr.mxu0 0.0
  %3905 = vmatpush1.msra.mxu0 0.0
  %3906 = vmatprep.subr.mxu0 0.0
  %3907 = vmatpush1.msra.mxu0 0.0
  %3908 = vmatprep.subr.mxu0 0.0
  %3909 = vmatpush1.msra.mxu0 0.0
  %3910 = vmatprep.subr.mxu0 0.0
  %3911 = vmatpush1.msra.mxu0 0.0
  %3912 = vmatprep.subr.mxu0 0.0
  %3913 = vmatpush1.msra.mxu0 0.0
  %3914 = vmatprep.subr.mxu0 0.0
  %3915 = vmatpush1.msra.mxu0 0.0
  %3916 = vmatprep.subr.mxu0 0.0
  %3917 = vmatpush1.msra.mxu0 0.0
  %3918 = vmatprep.subr.mxu0 0.0
  %3919 = vmatpush1.msra.mxu0 0.0
  %3920 = vmatprep.subr.mxu0 0.0
  %3921 = vmatpush1.msra.mxu0 0.0
  %3922 = vmatprep.subr.mxu0 0.0
  %3923 = vmatpush1.msra.mxu0 0.0
  %3924 = vmatprep.subr.mxu0 0.0
  %3925 = vmatpush1.msra.mxu0 0.0
  %3926 = vmatprep.mubr.f32.mxu0 0.0
  %v3927 = vand.u32 %v3761, 4294901760
  %3928 = vmatmul.mubr.f32.gmra.mrb[0].mxu0 %v3927
  %v3929 = vpop.f32.mrb[0].mxu0
  %v3930 = vadd.f32 %v3839, %v3929
  %v3931 = vpop.f32.mrb[0].mxu0
  %3932 = vdwg.mxu0
  %3933 = vmatprep.subr.mxu0 0.0
  %v3934 = vand.u32 %v820, 4294901760
  %v3935 = vsub.f32 %v820, %v3934
  %3936 = vmatpush1.msra.mxu0 %v3935
  %3937 = vmatprep.subr.mxu0 0.0
  %v3938 = vand.u32 %v821, 4294901760
  %v3939 = vsub.f32 %v821, %v3938
  %3940 = vmatpush1.msra.mxu0 %v3939
  %3941 = vmatprep.subr.mxu0 0.0
  %v3942 = vand.u32 %v822, 4294901760
  %v3943 = vsub.f32 %v822, %v3942
  %3944 = vmatpush1.msra.mxu0 %v3943
  %3945 = vmatprep.subr.mxu0 0.0
  %v3946 = vand.u32 %v823, 4294901760
  %v3947 = vsub.f32 %v823, %v3946
  %3948 = vmatpush1.msra.mxu0 %v3947
  %3949 = vmatprep.subr.mxu0 0.0
  %3950 = vmatpush1.msra.mxu0 0.0
  %3951 = vmatprep.subr.mxu0 0.0
  %3952 = vmatpush1.msra.mxu0 0.0
  %3953 = vmatprep.subr.mxu0 0.0
  %3954 = vmatpush1.msra.mxu0 0.0
  %3955 = vmatprep.subr.mxu0 0.0
  %3956 = vmatpush1.msra.mxu0 0.0
  %3957 = vmatprep.subr.mxu0 0.0
  %3958 = vmatpush1.msra.mxu0 0.0
  %3959 = vmatprep.subr.mxu0 0.0
  %3960 = vmatpush1.msra.mxu0 0.0
  %3961 = vmatprep.subr.mxu0 0.0
  %3962 = vmatpush1.msra.mxu0 0.0
  %3963 = vmatprep.subr.mxu0 0.0
  %3964 = vmatpush1.msra.mxu0 0.0
  %3965 = vmatprep.subr.mxu0 0.0
  %3966 = vmatpush1.msra.mxu0 0.0
  %3967 = vmatprep.subr.mxu0 0.0
  %3968 = vmatpush1.msra.mxu0 0.0
  %3969 = vmatprep.subr.mxu0 0.0
  %3970 = vmatpush1.msra.mxu0 0.0
  %3971 = vmatprep.subr.mxu0 0.0
  %3972 = vmatpush1.msra.mxu0 0.0
  %3973 = vmatprep.subr.mxu0 0.0
  %3974 = vmatpush1.msra.mxu0 0.0
  %3975 = vmatprep.subr.mxu0 0.0
  %3976 = vmatpush1.msra.mxu0 0.0
  %3977 = vmatprep.subr.mxu0 0.0
  %3978 = vmatpush1.msra.mxu0 0.0
  %3979 = vmatprep.subr.mxu0 0.0
  %3980 = vmatpush1.msra.mxu0 0.0
  %3981 = vmatprep.subr.mxu0 0.0
  %3982 = vmatpush1.msra.mxu0 0.0
  %3983 = vmatprep.subr.mxu0 0.0
  %3984 = vmatpush1.msra.mxu0 0.0
  %3985 = vmatprep.subr.mxu0 0.0
  %3986 = vmatpush1.msra.mxu0 0.0
  %3987 = vmatprep.subr.mxu0 0.0
  %3988 = vmatpush1.msra.mxu0 0.0
  %3989 = vmatprep.subr.mxu0 0.0
  %3990 = vmatpush1.msra.mxu0 0.0
  %3991 = vmatprep.subr.mxu0 0.0
  %3992 = vmatpush1.msra.mxu0 0.0
  %3993 = vmatprep.subr.mxu0 0.0
  %3994 = vmatpush1.msra.mxu0 0.0
  %3995 = vmatprep.subr.mxu0 0.0
  %3996 = vmatpush1.msra.mxu0 0.0
  %3997 = vmatprep.subr.mxu0 0.0
  %3998 = vmatpush1.msra.mxu0 0.0
  %3999 = vmatprep.subr.mxu0 0.0
  %4000 = vmatpush1.msra.mxu0 0.0
  %4001 = vmatprep.subr.mxu0 0.0
  %4002 = vmatpush1.msra.mxu0 0.0
  %4003 = vmatprep.subr.mxu0 0.0
  %4004 = vmatpush1.msra.mxu0 0.0
  %4005 = vmatprep.mubr.f32.mxu0 0.0
  %v4006 = vand.u32 %v3761, 4294901760
  %v4007 = vsub.f32 %v3761, %v4006
  %4008 = vmatmul.mubr.f32.gmra.mrb[0].mxu0 %v4007
  %v4009 = vpop.f32.mrb[0].mxu0
  %v4010 = vadd.f32 %v3930, %v4009
  %v4011 = vpop.f32.mrb[0].mxu0
  %4012 = vdwg.mxu0
  %4013 = vmatprep.subr.mxu0 0.0
  %v4014 = vand.u32 %v820, 4294901760
  %4015 = vmatpush1.msra.mxu0 %v4014
  %4016 = vmatprep.subr.mxu0 0.0
  %v4017 = vand.u32 %v821, 4294901760
  %4018 = vmatpush1.msra.mxu0 %v4017
  %4019 = vmatprep.subr.mxu0 0.0
  %v4020 = vand.u32 %v822, 4294901760
  %4021 = vmatpush1.msra.mxu0 %v4020
  %4022 = vmatprep.subr.mxu0 0.0
  %v4023 = vand.u32 %v823, 4294901760
  %4024 = vmatpush1.msra.mxu0 %v4023
  %4025 = vmatprep.subr.mxu0 0.0
  %4026 = vmatpush1.msra.mxu0 0.0
  %4027 = vmatprep.subr.mxu0 0.0
  %4028 = vmatpush1.msra.mxu0 0.0
  %4029 = vmatprep.subr.mxu0 0.0
  %4030 = vmatpush1.msra.mxu0 0.0
  %4031 = vmatprep.subr.mxu0 0.0
  %4032 = vmatpush1.msra.mxu0 0.0
  %4033 = vmatprep.subr.mxu0 0.0
  %4034 = vmatpush1.msra.mxu0 0.0
  %4035 = vmatprep.subr.mxu0 0.0
  %4036 = vmatpush1.msra.mxu0 0.0
  %4037 = vmatprep.subr.mxu0 0.0
  %4038 = vmatpush1.msra.mxu0 0.0
  %4039 = vmatprep.subr.mxu0 0.0
  %4040 = vmatpush1.msra.mxu0 0.0
  %4041 = vmatprep.subr.mxu0 0.0
  %4042 = vmatpush1.msra.mxu0 0.0
  %4043 = vmatprep.subr.mxu0 0.0
  %4044 = vmatpush1.msra.mxu0 0.0
  %4045 = vmatprep.subr.mxu0 0.0
  %4046 = vmatpush1.msra.mxu0 0.0
  %4047 = vmatprep.subr.mxu0 0.0
  %4048 = vmatpush1.msra.mxu0 0.0
  %4049 = vmatprep.subr.mxu0 0.0
  %4050 = vmatpush1.msra.mxu0 0.0
  %4051 = vmatprep.subr.mxu0 0.0
  %4052 = vmatpush1.msra.mxu0 0.0
  %4053 = vmatprep.subr.mxu0 0.0
  %4054 = vmatpush1.msra.mxu0 0.0
  %4055 = vmatprep.subr.mxu0 0.0
  %4056 = vmatpush1.msra.mxu0 0.0
  %4057 = vmatprep.subr.mxu0 0.0
  %4058 = vmatpush1.msra.mxu0 0.0
  %4059 = vmatprep.subr.mxu0 0.0
  %4060 = vmatpush1.msra.mxu0 0.0
  %4061 = vmatprep.subr.mxu0 0.0
  %4062 = vmatpush1.msra.mxu0 0.0
  %4063 = vmatprep.subr.mxu0 0.0
  %4064 = vmatpush1.msra.mxu0 0.0
  %4065 = vmatprep.subr.mxu0 0.0
  %4066 = vmatpush1.msra.mxu0 0.0
  %4067 = vmatprep.subr.mxu0 0.0
  %4068 = vmatpush1.msra.mxu0 0.0
  %4069 = vmatprep.subr.mxu0 0.0
  %4070 = vmatpush1.msra.mxu0 0.0
  %4071 = vmatprep.subr.mxu0 0.0
  %4072 = vmatpush1.msra.mxu0 0.0
  %4073 = vmatprep.subr.mxu0 0.0
  %4074 = vmatpush1.msra.mxu0 0.0
  %4075 = vmatprep.subr.mxu0 0.0
  %4076 = vmatpush1.msra.mxu0 0.0
  %4077 = vmatprep.subr.mxu0 0.0
  %4078 = vmatpush1.msra.mxu0 0.0
  %4079 = vmatprep.subr.mxu0 0.0
  %4080 = vmatpush1.msra.mxu0 0.0
  %4081 = vmatprep.mubr.f32.mxu0 0.0
  %v4082 = vand.u32 %v3761, 4294901760
  %v4083 = vsub.f32 %v3761, %v4082
  %v4084 = vand.u32 %v4083, 4294901760
  %4085 = vmatmul.mubr.f32.gmra.mrb[0].mxu0 %v4084
  %v4086 = vpop.f32.mrb[0].mxu0
  %v4087 = vadd.f32 %v4010, %v4086
  %v4088 = vpop.f32.mrb[0].mxu0
  %4089 = vdwg.mxu0
  %4090 = vmatprep.subr.mxu0 0.0
  %v4091 = vand.u32 %v820, 4294901760
  %v4092 = vsub.f32 %v820, %v4091
  %v4093 = vand.u32 %v4092, 4294901760
  %4094 = vmatpush1.msra.mxu0 %v4093
  %4095 = vmatprep.subr.mxu0 0.0
  %v4096 = vand.u32 %v821, 4294901760
  %v4097 = vsub.f32 %v821, %v4096
  %v4098 = vand.u32 %v4097, 4294901760
  %4099 = vmatpush1.msra.mxu0 %v4098
  %4100 = vmatprep.subr.mxu0 0.0
  %v4101 = vand.u32 %v822, 4294901760
  %v4102 = vsub.f32 %v822, %v4101
  %v4103 = vand.u32 %v4102, 4294901760
  %4104 = vmatpush1.msra.mxu0 %v4103
  %4105 = vmatprep.subr.mxu0 0.0
  %v4106 = vand.u32 %v823, 4294901760
  %v4107 = vsub.f32 %v823, %v4106
  %v4108 = vand.u32 %v4107, 4294901760
  %4109 = vmatpush1.msra.mxu0 %v4108
  %4110 = vmatprep.subr.mxu0 0.0
  %4111 = vmatpush1.msra.mxu0 0.0
  %4112 = vmatprep.subr.mxu0 0.0
  %4113 = vmatpush1.msra.mxu0 0.0
  %4114 = vmatprep.subr.mxu0 0.0
  %4115 = vmatpush1.msra.mxu0 0.0
  %4116 = vmatprep.subr.mxu0 0.0
  %4117 = vmatpush1.msra.mxu0 0.0
  %4118 = vmatprep.subr.mxu0 0.0
  %4119 = vmatpush1.msra.mxu0 0.0
  %4120 = vmatprep.subr.mxu0 0.0
  %4121 = vmatpush1.msra.mxu0 0.0
  %4122 = vmatprep.subr.mxu0 0.0
  %4123 = vmatpush1.msra.mxu0 0.0
  %4124 = vmatprep.subr.mxu0 0.0
  %4125 = vmatpush1.msra.mxu0 0.0
  %4126 = vmatprep.subr.mxu0 0.0
  %4127 = vmatpush1.msra.mxu0 0.0
  %4128 = vmatprep.subr.mxu0 0.0
  %4129 = vmatpush1.msra.mxu0 0.0
  %4130 = vmatprep.subr.mxu0 0.0
  %4131 = vmatpush1.msra.mxu0 0.0
  %4132 = vmatprep.subr.mxu0 0.0
  %4133 = vmatpush1.msra.mxu0 0.0
  %4134 = vmatprep.subr.mxu0 0.0
  %4135 = vmatpush1.msra.mxu0 0.0
  %4136 = vmatprep.subr.mxu0 0.0
  %4137 = vmatpush1.msra.mxu0 0.0
  %4138 = vmatprep.subr.mxu0 0.0
  %4139 = vmatpush1.msra.mxu0 0.0
  %4140 = vmatprep.subr.mxu0 0.0
  %4141 = vmatpush1.msra.mxu0 0.0
  %4142 = vmatprep.subr.mxu0 0.0
  %4143 = vmatpush1.msra.mxu0 0.0
  %4144 = vmatprep.subr.mxu0 0.0
  %4145 = vmatpush1.msra.mxu0 0.0
  %4146 = vmatprep.subr.mxu0 0.0
  %4147 = vmatpush1.msra.mxu0 0.0
  %4148 = vmatprep.subr.mxu0 0.0
  %4149 = vmatpush1.msra.mxu0 0.0
  %4150 = vmatprep.subr.mxu0 0.0
  %4151 = vmatpush1.msra.mxu0 0.0
  %4152 = vmatprep.subr.mxu0 0.0
  %4153 = vmatpush1.msra.mxu0 0.0
  %4154 = vmatprep.subr.mxu0 0.0
  %4155 = vmatpush1.msra.mxu0 0.0
  %4156 = vmatprep.subr.mxu0 0.0
  %4157 = vmatpush1.msra.mxu0 0.0
  %4158 = vmatprep.subr.mxu0 0.0
  %4159 = vmatpush1.msra.mxu0 0.0
  %4160 = vmatprep.subr.mxu0 0.0
  %4161 = vmatpush1.msra.mxu0 0.0
  %4162 = vmatprep.subr.mxu0 0.0
  %4163 = vmatpush1.msra.mxu0 0.0
  %4164 = vmatprep.subr.mxu0 0.0
  %4165 = vmatpush1.msra.mxu0 0.0
  %4166 = vmatprep.mubr.f32.mxu0 0.0
  %v4167 = vand.u32 %v3761, 4294901760
  %4168 = vmatmul.mubr.f32.gmra.mrb[0].mxu0 %v4167
  %v4169 = vpop.f32.mrb[0].mxu0
  %v4170 = vadd.f32 %v4087, %v4169
  %v4171 = vpop.f32.mrb[0].mxu0
  %4172 = vdwg.mxu0
  %4173 = vmatprep.subr.mxu0 0.0
  %v4174 = vand.u32 %v820, 4294901760
  %4175 = vmatpush1.msra.mxu0 %v4174
  %4176 = vmatprep.subr.mxu0 0.0
  %v4177 = vand.u32 %v821, 4294901760
  %4178 = vmatpush1.msra.mxu0 %v4177
  %4179 = vmatprep.subr.mxu0 0.0
  %v4180 = vand.u32 %v822, 4294901760
  %4181 = vmatpush1.msra.mxu0 %v4180
  %4182 = vmatprep.subr.mxu0 0.0
  %v4183 = vand.u32 %v823, 4294901760
  %4184 = vmatpush1.msra.mxu0 %v4183
  %4185 = vmatprep.subr.mxu0 0.0
  %4186 = vmatpush1.msra.mxu0 0.0
  %4187 = vmatprep.subr.mxu0 0.0
  %4188 = vmatpush1.msra.mxu0 0.0
  %4189 = vmatprep.subr.mxu0 0.0
  %4190 = vmatpush1.msra.mxu0 0.0
  %4191 = vmatprep.subr.mxu0 0.0
  %4192 = vmatpush1.msra.mxu0 0.0
  %4193 = vmatprep.subr.mxu0 0.0
  %4194 = vmatpush1.msra.mxu0 0.0
  %4195 = vmatprep.subr.mxu0 0.0
  %4196 = vmatpush1.msra.mxu0 0.0
  %4197 = vmatprep.subr.mxu0 0.0
  %4198 = vmatpush1.msra.mxu0 0.0
  %4199 = vmatprep.subr.mxu0 0.0
  %4200 = vmatpush1.msra.mxu0 0.0
  %4201 = vmatprep.subr.mxu0 0.0
  %4202 = vmatpush1.msra.mxu0 0.0
  %4203 = vmatprep.subr.mxu0 0.0
  %4204 = vmatpush1.msra.mxu0 0.0
  %4205 = vmatprep.subr.mxu0 0.0
  %4206 = vmatpush1.msra.mxu0 0.0
  %4207 = vmatprep.subr.mxu0 0.0
  %4208 = vmatpush1.msra.mxu0 0.0
  %4209 = vmatprep.subr.mxu0 0.0
  %4210 = vmatpush1.msra.mxu0 0.0
  %4211 = vmatprep.subr.mxu0 0.0
  %4212 = vmatpush1.msra.mxu0 0.0
  %4213 = vmatprep.subr.mxu0 0.0
  %4214 = vmatpush1.msra.mxu0 0.0
  %4215 = vmatprep.subr.mxu0 0.0
  %4216 = vmatpush1.msra.mxu0 0.0
  %4217 = vmatprep.subr.mxu0 0.0
  %4218 = vmatpush1.msra.mxu0 0.0
  %4219 = vmatprep.subr.mxu0 0.0
  %4220 = vmatpush1.msra.mxu0 0.0
  %4221 = vmatprep.subr.mxu0 0.0
  %4222 = vmatpush1.msra.mxu0 0.0
  %4223 = vmatprep.subr.mxu0 0.0
  %4224 = vmatpush1.msra.mxu0 0.0
  %4225 = vmatprep.subr.mxu0 0.0
  %4226 = vmatpush1.msra.mxu0 0.0
  %4227 = vmatprep.subr.mxu0 0.0
  %4228 = vmatpush1.msra.mxu0 0.0
  %4229 = vmatprep.subr.mxu0 0.0
  %4230 = vmatpush1.msra.mxu0 0.0
  %4231 = vmatprep.subr.mxu0 0.0
  %4232 = vmatpush1.msra.mxu0 0.0
  %4233 = vmatprep.subr.mxu0 0.0
  %4234 = vmatpush1.msra.mxu0 0.0
  %4235 = vmatprep.subr.mxu0 0.0
  %4236 = vmatpush1.msra.mxu0 0.0
  %4237 = vmatprep.subr.mxu0 0.0
  %4238 = vmatpush1.msra.mxu0 0.0
  %4239 = vmatprep.subr.mxu0 0.0
  %4240 = vmatpush1.msra.mxu0 0.0
  %4241 = vmatprep.mubr.f32.mxu0 0.0
  %v4242 = vand.u32 %v3761, 4294901760
  %4243 = vmatmul.mubr.f32.gmra.mrb[0].mxu0 %v4242
  %v4244 = vpop.f32.mrb[0].mxu0
  %v4245 = vadd.f32 %v4170, %v4244
  %v4246 = vpop.f32.mrb[0].mxu0
  %4247 = vdwg.mxu0
  %v4248 = vtanh.pop %v4245
  %v4250 = vsel %vm825, %v4248, 0
  %4252 = vmatprep.subr.mxu0 0.0
  %v4253 = vand.u32 %v820, 4294901760
  %4254 = vmatpush1.msra.mxu0 %v4253
  %4255 = vmatprep.subr.mxu0 0.0
  %v4256 = vand.u32 %v821, 4294901760
  %4257 = vmatpush1.msra.mxu0 %v4256
  %4258 = vmatprep.subr.mxu0 0.0
  %v4259 = vand.u32 %v822, 4294901760
  %4260 = vmatpush1.msra.mxu0 %v4259
  %4261 = vmatprep.subr.mxu0 0.0
  %v4262 = vand.u32 %v823, 4294901760
  %4263 = vmatpush1.msra.mxu0 %v4262
  %4264 = vmatprep.subr.mxu0 0.0
  %4265 = vmatpush1.msra.mxu0 0.0
  %4266 = vmatprep.subr.mxu0 0.0
  %4267 = vmatpush1.msra.mxu0 0.0
  %4268 = vmatprep.subr.mxu0 0.0
  %4269 = vmatpush1.msra.mxu0 0.0
  %4270 = vmatprep.subr.mxu0 0.0
  %4271 = vmatpush1.msra.mxu0 0.0
  %4272 = vmatprep.subr.mxu0 0.0
  %4273 = vmatpush1.msra.mxu0 0.0
  %4274 = vmatprep.subr.mxu0 0.0
  %4275 = vmatpush1.msra.mxu0 0.0
  %4276 = vmatprep.subr.mxu0 0.0
  %4277 = vmatpush1.msra.mxu0 0.0
  %4278 = vmatprep.subr.mxu0 0.0
  %4279 = vmatpush1.msra.mxu0 0.0
  %4280 = vmatprep.subr.mxu0 0.0
  %4281 = vmatpush1.msra.mxu0 0.0
  %4282 = vmatprep.subr.mxu0 0.0
  %4283 = vmatpush1.msra.mxu0 0.0
  %4284 = vmatprep.subr.mxu0 0.0
  %4285 = vmatpush1.msra.mxu0 0.0
  %4286 = vmatprep.subr.mxu0 0.0
  %4287 = vmatpush1.msra.mxu0 0.0
  %4288 = vmatprep.subr.mxu0 0.0
  %4289 = vmatpush1.msra.mxu0 0.0
  %4290 = vmatprep.subr.mxu0 0.0
  %4291 = vmatpush1.msra.mxu0 0.0
  %4292 = vmatprep.subr.mxu0 0.0
  %4293 = vmatpush1.msra.mxu0 0.0
  %4294 = vmatprep.subr.mxu0 0.0
  %4295 = vmatpush1.msra.mxu0 0.0
  %4296 = vmatprep.subr.mxu0 0.0
  %4297 = vmatpush1.msra.mxu0 0.0
  %4298 = vmatprep.subr.mxu0 0.0
  %4299 = vmatpush1.msra.mxu0 0.0
  %4300 = vmatprep.subr.mxu0 0.0
  %4301 = vmatpush1.msra.mxu0 0.0
  %4302 = vmatprep.subr.mxu0 0.0
  %4303 = vmatpush1.msra.mxu0 0.0
  %4304 = vmatprep.subr.mxu0 0.0
  %4305 = vmatpush1.msra.mxu0 0.0
  %4306 = vmatprep.subr.mxu0 0.0
  %4307 = vmatpush1.msra.mxu0 0.0
  %4308 = vmatprep.subr.mxu0 0.0
  %4309 = vmatpush1.msra.mxu0 0.0
  %4310 = vmatprep.subr.mxu0 0.0
  %4311 = vmatpush1.msra.mxu0 0.0
  %4312 = vmatprep.subr.mxu0 0.0
  %4313 = vmatpush1.msra.mxu0 0.0
  %4314 = vmatprep.subr.mxu0 0.0
  %4315 = vmatpush1.msra.mxu0 0.0
  %4316 = vmatprep.subr.mxu0 0.0
  %4317 = vmatpush1.msra.mxu0 0.0
  %4318 = vmatprep.subr.mxu0 0.0
  %4319 = vmatpush1.msra.mxu0 0.0
  %4320 = vmatprep.mubr.f32.mxu0 0.0
  %v4321 = vand.u32 %v4250, 4294901760
  %v4322 = vsub.f32 %v4250, %v4321
  %v4323 = vand.u32 %v4322, 4294901760
  %v4324 = vsub.f32 %v4322, %v4323
  %v4325 = vand.u32 %v4324, 4294901760
  %4326 = vmatmul.mubr.f32.gmra.mrb[0].mxu0 %v4325
  %v4327 = vpop.f32.mrb[0].mxu0
  %v4328 = vadd.f32 %v817, %v4327
  %v4329 = vpop.f32.mrb[0].mxu0
  %4330 = vdwg.mxu0
  %4331 = vmatprep.subr.mxu0 0.0
  %v4332 = vand.u32 %v820, 4294901760
  %v4333 = vsub.f32 %v820, %v4332
  %v4334 = vand.u32 %v4333, 4294901760
  %v4335 = vsub.f32 %v4333, %v4334
  %v4336 = vand.u32 %v4335, 4294901760
  %4337 = vmatpush1.msra.mxu0 %v4336
  %4338 = vmatprep.subr.mxu0 0.0
  %v4339 = vand.u32 %v821, 4294901760
  %v4340 = vsub.f32 %v821, %v4339
  %v4341 = vand.u32 %v4340, 4294901760
  %v4342 = vsub.f32 %v4340, %v4341
  %v4343 = vand.u32 %v4342, 4294901760
  %4344 = vmatpush1.msra.mxu0 %v4343
  %4345 = vmatprep.subr.mxu0 0.0
  %v4346 = vand.u32 %v822, 4294901760
  %v4347 = vsub.f32 %v822, %v4346
  %v4348 = vand.u32 %v4347, 4294901760
  %v4349 = vsub.f32 %v4347, %v4348
  %v4350 = vand.u32 %v4349, 4294901760
  %4351 = vmatpush1.msra.mxu0 %v4350
  %4352 = vmatprep.subr.mxu0 0.0
  %v4353 = vand.u32 %v823, 4294901760
  %v4354 = vsub.f32 %v823, %v4353
  %v4355 = vand.u32 %v4354, 4294901760
  %v4356 = vsub.f32 %v4354, %v4355
  %v4357 = vand.u32 %v4356, 4294901760
  %4358 = vmatpush1.msra.mxu0 %v4357
  %4359 = vmatprep.subr.mxu0 0.0
  %4360 = vmatpush1.msra.mxu0 0.0
  %4361 = vmatprep.subr.mxu0 0.0
  %4362 = vmatpush1.msra.mxu0 0.0
  %4363 = vmatprep.subr.mxu0 0.0
  %4364 = vmatpush1.msra.mxu0 0.0
  %4365 = vmatprep.subr.mxu0 0.0
  %4366 = vmatpush1.msra.mxu0 0.0
  %4367 = vmatprep.subr.mxu0 0.0
  %4368 = vmatpush1.msra.mxu0 0.0
  %4369 = vmatprep.subr.mxu0 0.0
  %4370 = vmatpush1.msra.mxu0 0.0
  %4371 = vmatprep.subr.mxu0 0.0
  %4372 = vmatpush1.msra.mxu0 0.0
  %4373 = vmatprep.subr.mxu0 0.0
  %4374 = vmatpush1.msra.mxu0 0.0
  %4375 = vmatprep.subr.mxu0 0.0
  %4376 = vmatpush1.msra.mxu0 0.0
  %4377 = vmatprep.subr.mxu0 0.0
  %4378 = vmatpush1.msra.mxu0 0.0
  %4379 = vmatprep.subr.mxu0 0.0
  %4380 = vmatpush1.msra.mxu0 0.0
  %4381 = vmatprep.subr.mxu0 0.0
  %4382 = vmatpush1.msra.mxu0 0.0
  %4383 = vmatprep.subr.mxu0 0.0
  %4384 = vmatpush1.msra.mxu0 0.0
  %4385 = vmatprep.subr.mxu0 0.0
  %4386 = vmatpush1.msra.mxu0 0.0
  %4387 = vmatprep.subr.mxu0 0.0
  %4388 = vmatpush1.msra.mxu0 0.0
  %4389 = vmatprep.subr.mxu0 0.0
  %4390 = vmatpush1.msra.mxu0 0.0
  %4391 = vmatprep.subr.mxu0 0.0
  %4392 = vmatpush1.msra.mxu0 0.0
  %4393 = vmatprep.subr.mxu0 0.0
  %4394 = vmatpush1.msra.mxu0 0.0
  %4395 = vmatprep.subr.mxu0 0.0
  %4396 = vmatpush1.msra.mxu0 0.0
  %4397 = vmatprep.subr.mxu0 0.0
  %4398 = vmatpush1.msra.mxu0 0.0
  %4399 = vmatprep.subr.mxu0 0.0
  %4400 = vmatpush1.msra.mxu0 0.0
  %4401 = vmatprep.subr.mxu0 0.0
  %4402 = vmatpush1.msra.mxu0 0.0
  %4403 = vmatprep.subr.mxu0 0.0
  %4404 = vmatpush1.msra.mxu0 0.0
  %4405 = vmatprep.subr.mxu0 0.0
  %4406 = vmatpush1.msra.mxu0 0.0
  %4407 = vmatprep.subr.mxu0 0.0
  %4408 = vmatpush1.msra.mxu0 0.0
  %4409 = vmatprep.subr.mxu0 0.0
  %4410 = vmatpush1.msra.mxu0 0.0
  %4411 = vmatprep.subr.mxu0 0.0
  %4412 = vmatpush1.msra.mxu0 0.0
  %4413 = vmatprep.subr.mxu0 0.0
  %4414 = vmatpush1.msra.mxu0 0.0
  %4415 = vmatprep.mubr.f32.mxu0 0.0
  %v4416 = vand.u32 %v4250, 4294901760
  %4417 = vmatmul.mubr.f32.gmra.mrb[0].mxu0 %v4416
  %v4418 = vpop.f32.mrb[0].mxu0
  %v4419 = vadd.f32 %v4328, %v4418
  %v4420 = vpop.f32.mrb[0].mxu0
  %4421 = vdwg.mxu0
  %4422 = vmatprep.subr.mxu0 0.0
  %v4423 = vand.u32 %v820, 4294901760
  %v4424 = vsub.f32 %v820, %v4423
  %4425 = vmatpush1.msra.mxu0 %v4424
  %4426 = vmatprep.subr.mxu0 0.0
  %v4427 = vand.u32 %v821, 4294901760
  %v4428 = vsub.f32 %v821, %v4427
  %4429 = vmatpush1.msra.mxu0 %v4428
  %4430 = vmatprep.subr.mxu0 0.0
  %v4431 = vand.u32 %v822, 4294901760
  %v4432 = vsub.f32 %v822, %v4431
  %4433 = vmatpush1.msra.mxu0 %v4432
  %4434 = vmatprep.subr.mxu0 0.0
  %v4435 = vand.u32 %v823, 4294901760
  %v4436 = vsub.f32 %v823, %v4435
  %4437 = vmatpush1.msra.mxu0 %v4436
  %4438 = vmatprep.subr.mxu0 0.0
  %4439 = vmatpush1.msra.mxu0 0.0
  %4440 = vmatprep.subr.mxu0 0.0
  %4441 = vmatpush1.msra.mxu0 0.0
  %4442 = vmatprep.subr.mxu0 0.0
  %4443 = vmatpush1.msra.mxu0 0.0
  %4444 = vmatprep.subr.mxu0 0.0
  %4445 = vmatpush1.msra.mxu0 0.0
  %4446 = vmatprep.subr.mxu0 0.0
  %4447 = vmatpush1.msra.mxu0 0.0
  %4448 = vmatprep.subr.mxu0 0.0
  %4449 = vmatpush1.msra.mxu0 0.0
  %4450 = vmatprep.subr.mxu0 0.0
  %4451 = vmatpush1.msra.mxu0 0.0
  %4452 = vmatprep.subr.mxu0 0.0
  %4453 = vmatpush1.msra.mxu0 0.0
  %4454 = vmatprep.subr.mxu0 0.0
  %4455 = vmatpush1.msra.mxu0 0.0
  %4456 = vmatprep.subr.mxu0 0.0
  %4457 = vmatpush1.msra.mxu0 0.0
  %4458 = vmatprep.subr.mxu0 0.0
  %4459 = vmatpush1.msra.mxu0 0.0
  %4460 = vmatprep.subr.mxu0 0.0
  %4461 = vmatpush1.msra.mxu0 0.0
  %4462 = vmatprep.subr.mxu0 0.0
  %4463 = vmatpush1.msra.mxu0 0.0
  %4464 = vmatprep.subr.mxu0 0.0
  %4465 = vmatpush1.msra.mxu0 0.0
  %4466 = vmatprep.subr.mxu0 0.0
  %4467 = vmatpush1.msra.mxu0 0.0
  %4468 = vmatprep.subr.mxu0 0.0
  %4469 = vmatpush1.msra.mxu0 0.0
  %4470 = vmatprep.subr.mxu0 0.0
  %4471 = vmatpush1.msra.mxu0 0.0
  %4472 = vmatprep.subr.mxu0 0.0
  %4473 = vmatpush1.msra.mxu0 0.0
  %4474 = vmatprep.subr.mxu0 0.0
  %4475 = vmatpush1.msra.mxu0 0.0
  %4476 = vmatprep.subr.mxu0 0.0
  %4477 = vmatpush1.msra.mxu0 0.0
  %4478 = vmatprep.subr.mxu0 0.0
  %4479 = vmatpush1.msra.mxu0 0.0
  %4480 = vmatprep.subr.mxu0 0.0
  %4481 = vmatpush1.msra.mxu0 0.0
  %4482 = vmatprep.subr.mxu0 0.0
  %4483 = vmatpush1.msra.mxu0 0.0
  %4484 = vmatprep.subr.mxu0 0.0
  %4485 = vmatpush1.msra.mxu0 0.0
  %4486 = vmatprep.subr.mxu0 0.0
  %4487 = vmatpush1.msra.mxu0 0.0
  %4488 = vmatprep.subr.mxu0 0.0
  %4489 = vmatpush1.msra.mxu0 0.0
  %4490 = vmatprep.subr.mxu0 0.0
  %4491 = vmatpush1.msra.mxu0 0.0
  %4492 = vmatprep.subr.mxu0 0.0
  %4493 = vmatpush1.msra.mxu0 0.0
  %4494 = vmatprep.mubr.f32.mxu0 0.0
  %v4495 = vand.u32 %v4250, 4294901760
  %v4496 = vsub.f32 %v4250, %v4495
  %4497 = vmatmul.mubr.f32.gmra.mrb[0].mxu0 %v4496
  %v4498 = vpop.f32.mrb[0].mxu0
  %v4499 = vadd.f32 %v4419, %v4498
  %v4500 = vpop.f32.mrb[0].mxu0
  %4501 = vdwg.mxu0
  %4502 = vmatprep.subr.mxu0 0.0
  %v4503 = vand.u32 %v820, 4294901760
  %4504 = vmatpush1.msra.mxu0 %v4503
  %4505 = vmatprep.subr.mxu0 0.0
  %v4506 = vand.u32 %v821, 4294901760
  %4507 = vmatpush1.msra.mxu0 %v4506
  %4508 = vmatprep.subr.mxu0 0.0
  %v4509 = vand.u32 %v822, 4294901760
  %4510 = vmatpush1.msra.mxu0 %v4509
  %4511 = vmatprep.subr.mxu0 0.0
  %v4512 = vand.u32 %v823, 4294901760
  %4513 = vmatpush1.msra.mxu0 %v4512
  %4514 = vmatprep.subr.mxu0 0.0
  %4515 = vmatpush1.msra.mxu0 0.0
  %4516 = vmatprep.subr.mxu0 0.0
  %4517 = vmatpush1.msra.mxu0 0.0
  %4518 = vmatprep.subr.mxu0 0.0
  %4519 = vmatpush1.msra.mxu0 0.0
  %4520 = vmatprep.subr.mxu0 0.0
  %4521 = vmatpush1.msra.mxu0 0.0
  %4522 = vmatprep.subr.mxu0 0.0
  %4523 = vmatpush1.msra.mxu0 0.0
  %4524 = vmatprep.subr.mxu0 0.0
  %4525 = vmatpush1.msra.mxu0 0.0
  %4526 = vmatprep.subr.mxu0 0.0
  %4527 = vmatpush1.msra.mxu0 0.0
  %4528 = vmatprep.subr.mxu0 0.0
  %4529 = vmatpush1.msra.mxu0 0.0
  %4530 = vmatprep.subr.mxu0 0.0
  %4531 = vmatpush1.msra.mxu0 0.0
  %4532 = vmatprep.subr.mxu0 0.0
  %4533 = vmatpush1.msra.mxu0 0.0
  %4534 = vmatprep.subr.mxu0 0.0
  %4535 = vmatpush1.msra.mxu0 0.0
  %4536 = vmatprep.subr.mxu0 0.0
  %4537 = vmatpush1.msra.mxu0 0.0
  %4538 = vmatprep.subr.mxu0 0.0
  %4539 = vmatpush1.msra.mxu0 0.0
  %4540 = vmatprep.subr.mxu0 0.0
  %4541 = vmatpush1.msra.mxu0 0.0
  %4542 = vmatprep.subr.mxu0 0.0
  %4543 = vmatpush1.msra.mxu0 0.0
  %4544 = vmatprep.subr.mxu0 0.0
  %4545 = vmatpush1.msra.mxu0 0.0
  %4546 = vmatprep.subr.mxu0 0.0
  %4547 = vmatpush1.msra.mxu0 0.0
  %4548 = vmatprep.subr.mxu0 0.0
  %4549 = vmatpush1.msra.mxu0 0.0
  %4550 = vmatprep.subr.mxu0 0.0
  %4551 = vmatpush1.msra.mxu0 0.0
  %4552 = vmatprep.subr.mxu0 0.0
  %4553 = vmatpush1.msra.mxu0 0.0
  %4554 = vmatprep.subr.mxu0 0.0
  %4555 = vmatpush1.msra.mxu0 0.0
  %4556 = vmatprep.subr.mxu0 0.0
  %4557 = vmatpush1.msra.mxu0 0.0
  %4558 = vmatprep.subr.mxu0 0.0
  %4559 = vmatpush1.msra.mxu0 0.0
  %4560 = vmatprep.subr.mxu0 0.0
  %4561 = vmatpush1.msra.mxu0 0.0
  %4562 = vmatprep.subr.mxu0 0.0
  %4563 = vmatpush1.msra.mxu0 0.0
  %4564 = vmatprep.subr.mxu0 0.0
  %4565 = vmatpush1.msra.mxu0 0.0
  %4566 = vmatprep.subr.mxu0 0.0
  %4567 = vmatpush1.msra.mxu0 0.0
  %4568 = vmatprep.subr.mxu0 0.0
  %4569 = vmatpush1.msra.mxu0 0.0
  %4570 = vmatprep.mubr.f32.mxu0 0.0
  %v4571 = vand.u32 %v4250, 4294901760
  %v4572 = vsub.f32 %v4250, %v4571
  %v4573 = vand.u32 %v4572, 4294901760
  %4574 = vmatmul.mubr.f32.gmra.mrb[0].mxu0 %v4573
  %v4575 = vpop.f32.mrb[0].mxu0
  %v4576 = vadd.f32 %v4499, %v4575
  %v4577 = vpop.f32.mrb[0].mxu0
  %4578 = vdwg.mxu0
  %4579 = vmatprep.subr.mxu0 0.0
  %v4580 = vand.u32 %v820, 4294901760
  %v4581 = vsub.f32 %v820, %v4580
  %v4582 = vand.u32 %v4581, 4294901760
  %4583 = vmatpush1.msra.mxu0 %v4582
  %4584 = vmatprep.subr.mxu0 0.0
  %v4585 = vand.u32 %v821, 4294901760
  %v4586 = vsub.f32 %v821, %v4585
  %v4587 = vand.u32 %v4586, 4294901760
  %4588 = vmatpush1.msra.mxu0 %v4587
  %4589 = vmatprep.subr.mxu0 0.0
  %v4590 = vand.u32 %v822, 4294901760
  %v4591 = vsub.f32 %v822, %v4590
  %v4592 = vand.u32 %v4591, 4294901760
  %4593 = vmatpush1.msra.mxu0 %v4592
  %4594 = vmatprep.subr.mxu0 0.0
  %v4595 = vand.u32 %v823, 4294901760
  %v4596 = vsub.f32 %v823, %v4595
  %v4597 = vand.u32 %v4596, 4294901760
  %4598 = vmatpush1.msra.mxu0 %v4597
  %4599 = vmatprep.subr.mxu0 0.0
  %4600 = vmatpush1.msra.mxu0 0.0
  %4601 = vmatprep.subr.mxu0 0.0
  %4602 = vmatpush1.msra.mxu0 0.0
  %4603 = vmatprep.subr.mxu0 0.0
  %4604 = vmatpush1.msra.mxu0 0.0
  %4605 = vmatprep.subr.mxu0 0.0
  %4606 = vmatpush1.msra.mxu0 0.0
  %4607 = vmatprep.subr.mxu0 0.0
  %4608 = vmatpush1.msra.mxu0 0.0
  %4609 = vmatprep.subr.mxu0 0.0
  %4610 = vmatpush1.msra.mxu0 0.0
  %4611 = vmatprep.subr.mxu0 0.0
  %4612 = vmatpush1.msra.mxu0 0.0
  %4613 = vmatprep.subr.mxu0 0.0
  %4614 = vmatpush1.msra.mxu0 0.0
  %4615 = vmatprep.subr.mxu0 0.0
  %4616 = vmatpush1.msra.mxu0 0.0
  %4617 = vmatprep.subr.mxu0 0.0
  %4618 = vmatpush1.msra.mxu0 0.0
  %4619 = vmatprep.subr.mxu0 0.0
  %4620 = vmatpush1.msra.mxu0 0.0
  %4621 = vmatprep.subr.mxu0 0.0
  %4622 = vmatpush1.msra.mxu0 0.0
  %4623 = vmatprep.subr.mxu0 0.0
  %4624 = vmatpush1.msra.mxu0 0.0
  %4625 = vmatprep.subr.mxu0 0.0
  %4626 = vmatpush1.msra.mxu0 0.0
  %4627 = vmatprep.subr.mxu0 0.0
  %4628 = vmatpush1.msra.mxu0 0.0
  %4629 = vmatprep.subr.mxu0 0.0
  %4630 = vmatpush1.msra.mxu0 0.0
  %4631 = vmatprep.subr.mxu0 0.0
  %4632 = vmatpush1.msra.mxu0 0.0
  %4633 = vmatprep.subr.mxu0 0.0
  %4634 = vmatpush1.msra.mxu0 0.0
  %4635 = vmatprep.subr.mxu0 0.0
  %4636 = vmatpush1.msra.mxu0 0.0
  %4637 = vmatprep.subr.mxu0 0.0
  %4638 = vmatpush1.msra.mxu0 0.0
  %4639 = vmatprep.subr.mxu0 0.0
  %4640 = vmatpush1.msra.mxu0 0.0
  %4641 = vmatprep.subr.mxu0 0.0
  %4642 = vmatpush1.msra.mxu0 0.0
  %4643 = vmatprep.subr.mxu0 0.0
  %4644 = vmatpush1.msra.mxu0 0.0
  %4645 = vmatprep.subr.mxu0 0.0
  %4646 = vmatpush1.msra.mxu0 0.0
  %4647 = vmatprep.subr.mxu0 0.0
  %4648 = vmatpush1.msra.mxu0 0.0
  %4649 = vmatprep.subr.mxu0 0.0
  %4650 = vmatpush1.msra.mxu0 0.0
  %4651 = vmatprep.subr.mxu0 0.0
  %4652 = vmatpush1.msra.mxu0 0.0
  %4653 = vmatprep.subr.mxu0 0.0
  %4654 = vmatpush1.msra.mxu0 0.0
  %4655 = vmatprep.mubr.f32.mxu0 0.0
  %v4656 = vand.u32 %v4250, 4294901760
  %4657 = vmatmul.mubr.f32.gmra.mrb[0].mxu0 %v4656
  %v4658 = vpop.f32.mrb[0].mxu0
  %v4659 = vadd.f32 %v4576, %v4658
  %v4660 = vpop.f32.mrb[0].mxu0
  %4661 = vdwg.mxu0
  %4662 = vmatprep.subr.mxu0 0.0
  %v4663 = vand.u32 %v820, 4294901760
  %4664 = vmatpush1.msra.mxu0 %v4663
  %4665 = vmatprep.subr.mxu0 0.0
  %v4666 = vand.u32 %v821, 4294901760
  %4667 = vmatpush1.msra.mxu0 %v4666
  %4668 = vmatprep.subr.mxu0 0.0
  %v4669 = vand.u32 %v822, 4294901760
  %4670 = vmatpush1.msra.mxu0 %v4669
  %4671 = vmatprep.subr.mxu0 0.0
  %v4672 = vand.u32 %v823, 4294901760
  %4673 = vmatpush1.msra.mxu0 %v4672
  %4674 = vmatprep.subr.mxu0 0.0
  %4675 = vmatpush1.msra.mxu0 0.0
  %4676 = vmatprep.subr.mxu0 0.0
  %4677 = vmatpush1.msra.mxu0 0.0
  %4678 = vmatprep.subr.mxu0 0.0
  %4679 = vmatpush1.msra.mxu0 0.0
  %4680 = vmatprep.subr.mxu0 0.0
  %4681 = vmatpush1.msra.mxu0 0.0
  %4682 = vmatprep.subr.mxu0 0.0
  %4683 = vmatpush1.msra.mxu0 0.0
  %4684 = vmatprep.subr.mxu0 0.0
  %4685 = vmatpush1.msra.mxu0 0.0
  %4686 = vmatprep.subr.mxu0 0.0
  %4687 = vmatpush1.msra.mxu0 0.0
  %4688 = vmatprep.subr.mxu0 0.0
  %4689 = vmatpush1.msra.mxu0 0.0
  %4690 = vmatprep.subr.mxu0 0.0
  %4691 = vmatpush1.msra.mxu0 0.0
  %4692 = vmatprep.subr.mxu0 0.0
  %4693 = vmatpush1.msra.mxu0 0.0
  %4694 = vmatprep.subr.mxu0 0.0
  %4695 = vmatpush1.msra.mxu0 0.0
  %4696 = vmatprep.subr.mxu0 0.0
  %4697 = vmatpush1.msra.mxu0 0.0
  %4698 = vmatprep.subr.mxu0 0.0
  %4699 = vmatpush1.msra.mxu0 0.0
  %4700 = vmatprep.subr.mxu0 0.0
  %4701 = vmatpush1.msra.mxu0 0.0
  %4702 = vmatprep.subr.mxu0 0.0
  %4703 = vmatpush1.msra.mxu0 0.0
  %4704 = vmatprep.subr.mxu0 0.0
  %4705 = vmatpush1.msra.mxu0 0.0
  %4706 = vmatprep.subr.mxu0 0.0
  %4707 = vmatpush1.msra.mxu0 0.0
  %4708 = vmatprep.subr.mxu0 0.0
  %4709 = vmatpush1.msra.mxu0 0.0
  %4710 = vmatprep.subr.mxu0 0.0
  %4711 = vmatpush1.msra.mxu0 0.0
  %4712 = vmatprep.subr.mxu0 0.0
  %4713 = vmatpush1.msra.mxu0 0.0
  %4714 = vmatprep.subr.mxu0 0.0
  %4715 = vmatpush1.msra.mxu0 0.0
  %4716 = vmatprep.subr.mxu0 0.0
  %4717 = vmatpush1.msra.mxu0 0.0
  %4718 = vmatprep.subr.mxu0 0.0
  %4719 = vmatpush1.msra.mxu0 0.0
  %4720 = vmatprep.subr.mxu0 0.0
  %4721 = vmatpush1.msra.mxu0 0.0
  %4722 = vmatprep.subr.mxu0 0.0
  %4723 = vmatpush1.msra.mxu0 0.0
  %4724 = vmatprep.subr.mxu0 0.0
  %4725 = vmatpush1.msra.mxu0 0.0
  %4726 = vmatprep.subr.mxu0 0.0
  %4727 = vmatpush1.msra.mxu0 0.0
  %4728 = vmatprep.subr.mxu0 0.0
  %4729 = vmatpush1.msra.mxu0 0.0
  %4730 = vmatprep.mubr.f32.mxu0 0.0
  %v4731 = vand.u32 %v4250, 4294901760
  %4732 = vmatmul.mubr.f32.gmra.mrb[0].mxu0 %v4731
  %v4733 = vpop.f32.mrb[0].mxu0
  %v4734 = vadd.f32 %v4659, %v4733
  %v4735 = vpop.f32.mrb[0].mxu0
  %4736 = vdwg.mxu0
  %v4737 = vtanh.pop %v4734
  %4738 = vst.msk [vmem:[%s8] sm:$0xff] %vm825, %v4737
  %v4739 = vld [vmem:[%s5] sm:$0xff]
  %v4740 = vld [vmem:[%s5 + $0x8] sm:$0xff]
  %v4741 = vld [vmem:[%s5 + $0x10] sm:$0xff]
  %v4742 = vld [vmem:[%s5 + $0x18] sm:$0xff]
  %v4743 = vld [vmem:[%s6] sm:$0x1]
  %v4745 = vlaneseq
  %v4746 = vshrl.u32 %v4745, 7
  %v4747 = vsub.s32 0, %v4746
  %v4748 = vrot.slane %v4743, %v4747
  %v4751 = vsel %vm825, %v4737, 0
  %4753 = vmatprep.subr.mxu0 0.0
  %v4754 = vand.u32 %v4739, 4294901760
  %4755 = vmatpush1.msra.mxu0 %v4754
  %4756 = vmatprep.subr.mxu0 0.0
  %v4757 = vand.u32 %v4740, 4294901760
  %4758 = vmatpush1.msra.mxu0 %v4757
  %4759 = vmatprep.subr.mxu0 0.0
  %v4760 = vand.u32 %v4741, 4294901760
  %4761 = vmatpush1.msra.mxu0 %v4760
  %4762 = vmatprep.subr.mxu0 0.0
  %v4763 = vand.u32 %v4742, 4294901760
  %4764 = vmatpush1.msra.mxu0 %v4763
  %4765 = vmatprep.subr.mxu0 0.0
  %4766 = vmatpush1.msra.mxu0 0.0
  %4767 = vmatprep.subr.mxu0 0.0
  %4768 = vmatpush1.msra.mxu0 0.0
  %4769 = vmatprep.subr.mxu0 0.0
  %4770 = vmatpush1.msra.mxu0 0.0
  %4771 = vmatprep.subr.mxu0 0.0
  %4772 = vmatpush1.msra.mxu0 0.0
  %4773 = vmatprep.subr.mxu0 0.0
  %4774 = vmatpush1.msra.mxu0 0.0
  %4775 = vmatprep.subr.mxu0 0.0
  %4776 = vmatpush1.msra.mxu0 0.0
  %4777 = vmatprep.subr.mxu0 0.0
  %4778 = vmatpush1.msra.mxu0 0.0
  %4779 = vmatprep.subr.mxu0 0.0
  %4780 = vmatpush1.msra.mxu0 0.0
  %4781 = vmatprep.subr.mxu0 0.0
  %4782 = vmatpush1.msra.mxu0 0.0
  %4783 = vmatprep.subr.mxu0 0.0
  %4784 = vmatpush1.msra.mxu0 0.0
  %4785 = vmatprep.subr.mxu0 0.0
  %4786 = vmatpush1.msra.mxu0 0.0
  %4787 = vmatprep.subr.mxu0 0.0
  %4788 = vmatpush1.msra.mxu0 0.0
  %4789 = vmatprep.subr.mxu0 0.0
  %4790 = vmatpush1.msra.mxu0 0.0
  %4791 = vmatprep.subr.mxu0 0.0
  %4792 = vmatpush1.msra.mxu0 0.0
  %4793 = vmatprep.subr.mxu0 0.0
  %4794 = vmatpush1.msra.mxu0 0.0
  %4795 = vmatprep.subr.mxu0 0.0
  %4796 = vmatpush1.msra.mxu0 0.0
  %4797 = vmatprep.subr.mxu0 0.0
  %4798 = vmatpush1.msra.mxu0 0.0
  %4799 = vmatprep.subr.mxu0 0.0
  %4800 = vmatpush1.msra.mxu0 0.0
  %4801 = vmatprep.subr.mxu0 0.0
  %4802 = vmatpush1.msra.mxu0 0.0
  %4803 = vmatprep.subr.mxu0 0.0
  %4804 = vmatpush1.msra.mxu0 0.0
  %4805 = vmatprep.subr.mxu0 0.0
  %4806 = vmatpush1.msra.mxu0 0.0
  %4807 = vmatprep.subr.mxu0 0.0
  %4808 = vmatpush1.msra.mxu0 0.0
  %4809 = vmatprep.subr.mxu0 0.0
  %4810 = vmatpush1.msra.mxu0 0.0
  %4811 = vmatprep.subr.mxu0 0.0
  %4812 = vmatpush1.msra.mxu0 0.0
  %4813 = vmatprep.subr.mxu0 0.0
  %4814 = vmatpush1.msra.mxu0 0.0
  %4815 = vmatprep.subr.mxu0 0.0
  %4816 = vmatpush1.msra.mxu0 0.0
  %4817 = vmatprep.subr.mxu0 0.0
  %4818 = vmatpush1.msra.mxu0 0.0
  %4819 = vmatprep.subr.mxu0 0.0
  %4820 = vmatpush1.msra.mxu0 0.0
  %4821 = vmatprep.mubr.f32.mxu0 0.0
  %v4822 = vand.u32 %v1316, 4294901760
  %v4823 = vsub.f32 %v1316, %v4822
  %v4824 = vand.u32 %v4823, 4294901760
  %v4825 = vsub.f32 %v4823, %v4824
  %v4826 = vand.u32 %v4825, 4294901760
  %4827 = vmatmul.mubr.f32.gmra.mrb[0].mxu0 %v4826
  %v4828 = vpop.f32.mrb[0].mxu0
  %v4829 = vadd.f32 %v4748, %v4828
  %v4830 = vpop.f32.mrb[0].mxu0
  %4831 = vmatprep.mubr.f32.mxu0 0.0
  %v4832 = vand.u32 %v1805, 4294901760
  %v4833 = vsub.f32 %v1805, %v4832
  %v4834 = vand.u32 %v4833, 4294901760
  %v4835 = vsub.f32 %v4833, %v4834
  %v4836 = vand.u32 %v4835, 4294901760
  %4837 = vmatmul.mubr.f32.gmra.mrb[0].mxu0 %v4836
  %v4838 = vpop.f32.mrb[0].mxu0
  %v4839 = vadd.f32 %v4748, %v4838
  %v4840 = vpop.f32.mrb[0].mxu0
  %4841 = vmatprep.mubr.f32.mxu0 0.0
  %v4842 = vand.u32 %v2294, 4294901760
  %v4843 = vsub.f32 %v2294, %v4842
  %v4844 = vand.u32 %v4843, 4294901760
  %v4845 = vsub.f32 %v4843, %v4844
  %v4846 = vand.u32 %v4845, 4294901760
  %4847 = vmatmul.mubr.f32.gmra.mrb[0].mxu0 %v4846
  %v4848 = vpop.f32.mrb[0].mxu0
  %v4849 = vadd.f32 %v4748, %v4848
  %v4850 = vpop.f32.mrb[0].mxu0
  %4851 = vmatprep.mubr.f32.mxu0 0.0
  %v4852 = vand.u32 %v2783, 4294901760
  %v4853 = vsub.f32 %v2783, %v4852
  %v4854 = vand.u32 %v4853, 4294901760
  %v4855 = vsub.f32 %v4853, %v4854
  %v4856 = vand.u32 %v4855, 4294901760
  %4857 = vmatmul.mubr.f32.gmra.mrb[0].mxu0 %v4856
  %v4858 = vpop.f32.mrb[0].mxu0
  %v4859 = vadd.f32 %v4748, %v4858
  %v4860 = vpop.f32.mrb[0].mxu0
  %4861 = vmatprep.mubr.f32.mxu0 0.0
  %v4862 = vand.u32 %v3272, 4294901760
  %v4863 = vsub.f32 %v3272, %v4862
  %v4864 = vand.u32 %v4863, 4294901760
  %v4865 = vsub.f32 %v4863, %v4864
  %v4866 = vand.u32 %v4865, 4294901760
  %4867 = vmatmul.mubr.f32.gmra.mrb[0].mxu0 %v4866
  %v4868 = vpop.f32.mrb[0].mxu0
  %v4869 = vadd.f32 %v4748, %v4868
  %v4870 = vpop.f32.mrb[0].mxu0
  %4871 = vmatprep.mubr.f32.mxu0 0.0
  %v4872 = vand.u32 %v3761, 4294901760
  %v4873 = vsub.f32 %v3761, %v4872
  %v4874 = vand.u32 %v4873, 4294901760
  %v4875 = vsub.f32 %v4873, %v4874
  %v4876 = vand.u32 %v4875, 4294901760
  %4877 = vmatmul.mubr.f32.gmra.mrb[0].mxu0 %v4876
  %v4878 = vpop.f32.mrb[0].mxu0
  %v4879 = vadd.f32 %v4748, %v4878
  %v4880 = vpop.f32.mrb[0].mxu0
  %4881 = vmatprep.mubr.f32.mxu0 0.0
  %v4882 = vand.u32 %v4250, 4294901760
  %v4883 = vsub.f32 %v4250, %v4882
  %v4884 = vand.u32 %v4883, 4294901760
  %v4885 = vsub.f32 %v4883, %v4884
  %v4886 = vand.u32 %v4885, 4294901760
  %4887 = vmatmul.mubr.f32.gmra.mrb[0].mxu0 %v4886
  %v4888 = vpop.f32.mrb[0].mxu0
  %v4889 = vadd.f32 %v4748, %v4888
  %v4890 = vpop.f32.mrb[0].mxu0
  %4891 = vmatprep.mubr.f32.mxu0 0.0
  %v4892 = vand.u32 %v4751, 4294901760
  %v4893 = vsub.f32 %v4751, %v4892
  %v4894 = vand.u32 %v4893, 4294901760
  %v4895 = vsub.f32 %v4893, %v4894
  %v4896 = vand.u32 %v4895, 4294901760
  %4897 = vmatmul.mubr.f32.gmra.mrb[0].mxu0 %v4896
  %v4898 = vpop.f32.mrb[0].mxu0
  %v4899 = vadd.f32 %v4748, %v4898
  %v4900 = vpop.f32.mrb[0].mxu0
  %4901 = vdwg.mxu0
  %4902 = vmatprep.subr.mxu0 0.0
  %v4903 = vand.u32 %v4739, 4294901760
  %v4904 = vsub.f32 %v4739, %v4903
  %v4905 = vand.u32 %v4904, 4294901760
  %v4906 = vsub.f32 %v4904, %v4905
  %v4907 = vand.u32 %v4906, 4294901760
  %4908 = vmatpush1.msra.mxu0 %v4907
  %4909 = vmatprep.subr.mxu0 0.0
  %v4910 = vand.u32 %v4740, 4294901760
  %v4911 = vsub.f32 %v4740, %v4910
  %v4912 = vand.u32 %v4911, 4294901760
  %v4913 = vsub.f32 %v4911, %v4912
  %v4914 = vand.u32 %v4913, 4294901760
  %4915 = vmatpush1.msra.mxu0 %v4914
  %4916 = vmatprep.subr.mxu0 0.0
  %v4917 = vand.u32 %v4741, 4294901760
  %v4918 = vsub.f32 %v4741, %v4917
  %v4919 = vand.u32 %v4918, 4294901760
  %v4920 = vsub.f32 %v4918, %v4919
  %v4921 = vand.u32 %v4920, 4294901760
  %4922 = vmatpush1.msra.mxu0 %v4921
  %4923 = vmatprep.subr.mxu0 0.0
  %v4924 = vand.u32 %v4742, 4294901760
  %v4925 = vsub.f32 %v4742, %v4924
  %v4926 = vand.u32 %v4925, 4294901760
  %v4927 = vsub.f32 %v4925, %v4926
  %v4928 = vand.u32 %v4927, 4294901760
  %4929 = vmatpush1.msra.mxu0 %v4928
  %4930 = vmatprep.subr.mxu0 0.0
  %4931 = vmatpush1.msra.mxu0 0.0
  %4932 = vmatprep.subr.mxu0 0.0
  %4933 = vmatpush1.msra.mxu0 0.0
  %4934 = vmatprep.subr.mxu0 0.0
  %4935 = vmatpush1.msra.mxu0 0.0
  %4936 = vmatprep.subr.mxu0 0.0
  %4937 = vmatpush1.msra.mxu0 0.0
  %4938 = vmatprep.subr.mxu0 0.0
  %4939 = vmatpush1.msra.mxu0 0.0
  %4940 = vmatprep.subr.mxu0 0.0
  %4941 = vmatpush1.msra.mxu0 0.0
  %4942 = vmatprep.subr.mxu0 0.0
  %4943 = vmatpush1.msra.mxu0 0.0
  %4944 = vmatprep.subr.mxu0 0.0
  %4945 = vmatpush1.msra.mxu0 0.0
  %4946 = vmatprep.subr.mxu0 0.0
  %4947 = vmatpush1.msra.mxu0 0.0
  %4948 = vmatprep.subr.mxu0 0.0
  %4949 = vmatpush1.msra.mxu0 0.0
  %4950 = vmatprep.subr.mxu0 0.0
  %4951 = vmatpush1.msra.mxu0 0.0
  %4952 = vmatprep.subr.mxu0 0.0
  %4953 = vmatpush1.msra.mxu0 0.0
  %4954 = vmatprep.subr.mxu0 0.0
  %4955 = vmatpush1.msra.mxu0 0.0
  %4956 = vmatprep.subr.mxu0 0.0
  %4957 = vmatpush1.msra.mxu0 0.0
  %4958 = vmatprep.subr.mxu0 0.0
  %4959 = vmatpush1.msra.mxu0 0.0
  %4960 = vmatprep.subr.mxu0 0.0
  %4961 = vmatpush1.msra.mxu0 0.0
  %4962 = vmatprep.subr.mxu0 0.0
  %4963 = vmatpush1.msra.mxu0 0.0
  %4964 = vmatprep.subr.mxu0 0.0
  %4965 = vmatpush1.msra.mxu0 0.0
  %4966 = vmatprep.subr.mxu0 0.0
  %4967 = vmatpush1.msra.mxu0 0.0
  %4968 = vmatprep.subr.mxu0 0.0
  %4969 = vmatpush1.msra.mxu0 0.0
  %4970 = vmatprep.subr.mxu0 0.0
  %4971 = vmatpush1.msra.mxu0 0.0
  %4972 = vmatprep.subr.mxu0 0.0
  %4973 = vmatpush1.msra.mxu0 0.0
  %4974 = vmatprep.subr.mxu0 0.0
  %4975 = vmatpush1.msra.mxu0 0.0
  %4976 = vmatprep.subr.mxu0 0.0
  %4977 = vmatpush1.msra.mxu0 0.0
  %4978 = vmatprep.subr.mxu0 0.0
  %4979 = vmatpush1.msra.mxu0 0.0
  %4980 = vmatprep.subr.mxu0 0.0
  %4981 = vmatpush1.msra.mxu0 0.0
  %4982 = vmatprep.subr.mxu0 0.0
  %4983 = vmatpush1.msra.mxu0 0.0
  %4984 = vmatprep.subr.mxu0 0.0
  %4985 = vmatpush1.msra.mxu0 0.0
  %4986 = vmatprep.mubr.f32.mxu0 0.0
  %v4987 = vand.u32 %v1316, 4294901760
  %4988 = vmatmul.mubr.f32.gmra.mrb[0].mxu0 %v4987
  %v4989 = vpop.f32.mrb[0].mxu0
  %v4990 = vadd.f32 %v4829, %v4989
  %v4991 = vpop.f32.mrb[0].mxu0
  %4992 = vmatprep.mubr.f32.mxu0 0.0
  %v4993 = vand.u32 %v1805, 4294901760
  %4994 = vmatmul.mubr.f32.gmra.mrb[0].mxu0 %v4993
  %v4995 = vpop.f32.mrb[0].mxu0
  %v4996 = vadd.f32 %v4839, %v4995
  %v4997 = vpop.f32.mrb[0].mxu0
  %4998 = vmatprep.mubr.f32.mxu0 0.0
  %v4999 = vand.u32 %v2294, 4294901760
  %5000 = vmatmul.mubr.f32.gmra.mrb[0].mxu0 %v4999
  %v5001 = vpop.f32.mrb[0].mxu0
  %v5002 = vadd.f32 %v4849, %v5001
  %v5003 = vpop.f32.mrb[0].mxu0
  %5004 = vmatprep.mubr.f32.mxu0 0.0
  %v5005 = vand.u32 %v2783, 4294901760
  %5006 = vmatmul.mubr.f32.gmra.mrb[0].mxu0 %v5005
  %v5007 = vpop.f32.mrb[0].mxu0
  %v5008 = vadd.f32 %v4859, %v5007
  %v5009 = vpop.f32.mrb[0].mxu0
  %5010 = vmatprep.mubr.f32.mxu0 0.0
  %v5011 = vand.u32 %v3272, 4294901760
  %5012 = vmatmul.mubr.f32.gmra.mrb[0].mxu0 %v5011
  %v5013 = vpop.f32.mrb[0].mxu0
  %v5014 = vadd.f32 %v4869, %v5013
  %v5015 = vpop.f32.mrb[0].mxu0
  %5016 = vmatprep.mubr.f32.mxu0 0.0
  %v5017 = vand.u32 %v3761, 4294901760
  %5018 = vmatmul.mubr.f32.gmra.mrb[0].mxu0 %v5017
  %v5019 = vpop.f32.mrb[0].mxu0
  %v5020 = vadd.f32 %v4879, %v5019
  %v5021 = vpop.f32.mrb[0].mxu0
  %5022 = vmatprep.mubr.f32.mxu0 0.0
  %v5023 = vand.u32 %v4250, 4294901760
  %5024 = vmatmul.mubr.f32.gmra.mrb[0].mxu0 %v5023
  %v5025 = vpop.f32.mrb[0].mxu0
  %v5026 = vadd.f32 %v4889, %v5025
  %v5027 = vpop.f32.mrb[0].mxu0
  %5028 = vmatprep.mubr.f32.mxu0 0.0
  %v5029 = vand.u32 %v4751, 4294901760
  %5030 = vmatmul.mubr.f32.gmra.mrb[0].mxu0 %v5029
  %v5031 = vpop.f32.mrb[0].mxu0
  %v5032 = vadd.f32 %v4899, %v5031
  %v5033 = vpop.f32.mrb[0].mxu0
  %5034 = vdwg.mxu0
  %5035 = vmatprep.subr.mxu0 0.0
  %v5036 = vand.u32 %v4739, 4294901760
  %v5037 = vsub.f32 %v4739, %v5036
  %5038 = vmatpush1.msra.mxu0 %v5037
  %5039 = vmatprep.subr.mxu0 0.0
  %v5040 = vand.u32 %v4740, 4294901760
  %v5041 = vsub.f32 %v4740, %v5040
  %5042 = vmatpush1.msra.mxu0 %v5041
  %5043 = vmatprep.subr.mxu0 0.0
  %v5044 = vand.u32 %v4741, 4294901760
  %v5045 = vsub.f32 %v4741, %v5044
  %5046 = vmatpush1.msra.mxu0 %v5045
  %5047 = vmatprep.subr.mxu0 0.0
  %v5048 = vand.u32 %v4742, 4294901760
  %v5049 = vsub.f32 %v4742, %v5048
  %5050 = vmatpush1.msra.mxu0 %v5049
  %5051 = vmatprep.subr.mxu0 0.0
  %5052 = vmatpush1.msra.mxu0 0.0
  %5053 = vmatprep.subr.mxu0 0.0
  %5054 = vmatpush1.msra.mxu0 0.0
  %5055 = vmatprep.subr.mxu0 0.0
  %5056 = vmatpush1.msra.mxu0 0.0
  %5057 = vmatprep.subr.mxu0 0.0
  %5058 = vmatpush1.msra.mxu0 0.0
  %5059 = vmatprep.subr.mxu0 0.0
  %5060 = vmatpush1.msra.mxu0 0.0
  %5061 = vmatprep.subr.mxu0 0.0
  %5062 = vmatpush1.msra.mxu0 0.0
  %5063 = vmatprep.subr.mxu0 0.0
  %5064 = vmatpush1.msra.mxu0 0.0
  %5065 = vmatprep.subr.mxu0 0.0
  %5066 = vmatpush1.msra.mxu0 0.0
  %5067 = vmatprep.subr.mxu0 0.0
  %5068 = vmatpush1.msra.mxu0 0.0
  %5069 = vmatprep.subr.mxu0 0.0
  %5070 = vmatpush1.msra.mxu0 0.0
  %5071 = vmatprep.subr.mxu0 0.0
  %5072 = vmatpush1.msra.mxu0 0.0
  %5073 = vmatprep.subr.mxu0 0.0
  %5074 = vmatpush1.msra.mxu0 0.0
  %5075 = vmatprep.subr.mxu0 0.0
  %5076 = vmatpush1.msra.mxu0 0.0
  %5077 = vmatprep.subr.mxu0 0.0
  %5078 = vmatpush1.msra.mxu0 0.0
  %5079 = vmatprep.subr.mxu0 0.0
  %5080 = vmatpush1.msra.mxu0 0.0
  %5081 = vmatprep.subr.mxu0 0.0
  %5082 = vmatpush1.msra.mxu0 0.0
  %5083 = vmatprep.subr.mxu0 0.0
  %5084 = vmatpush1.msra.mxu0 0.0
  %5085 = vmatprep.subr.mxu0 0.0
  %5086 = vmatpush1.msra.mxu0 0.0
  %5087 = vmatprep.subr.mxu0 0.0
  %5088 = vmatpush1.msra.mxu0 0.0
  %5089 = vmatprep.subr.mxu0 0.0
  %5090 = vmatpush1.msra.mxu0 0.0
  %5091 = vmatprep.subr.mxu0 0.0
  %5092 = vmatpush1.msra.mxu0 0.0
  %5093 = vmatprep.subr.mxu0 0.0
  %5094 = vmatpush1.msra.mxu0 0.0
  %5095 = vmatprep.subr.mxu0 0.0
  %5096 = vmatpush1.msra.mxu0 0.0
  %5097 = vmatprep.subr.mxu0 0.0
  %5098 = vmatpush1.msra.mxu0 0.0
  %5099 = vmatprep.subr.mxu0 0.0
  %5100 = vmatpush1.msra.mxu0 0.0
  %5101 = vmatprep.subr.mxu0 0.0
  %5102 = vmatpush1.msra.mxu0 0.0
  %5103 = vmatprep.subr.mxu0 0.0
  %5104 = vmatpush1.msra.mxu0 0.0
  %5105 = vmatprep.subr.mxu0 0.0
  %5106 = vmatpush1.msra.mxu0 0.0
  %5107 = vmatprep.mubr.f32.mxu0 0.0
  %v5108 = vand.u32 %v1316, 4294901760
  %v5109 = vsub.f32 %v1316, %v5108
  %5110 = vmatmul.mubr.f32.gmra.mrb[0].mxu0 %v5109
  %v5111 = vpop.f32.mrb[0].mxu0
  %v5112 = vadd.f32 %v4990, %v5111
  %v5113 = vpop.f32.mrb[0].mxu0
  %5114 = vmatprep.mubr.f32.mxu0 0.0
  %v5115 = vand.u32 %v1805, 4294901760
  %v5116 = vsub.f32 %v1805, %v5115
  %5117 = vmatmul.mubr.f32.gmra.mrb[0].mxu0 %v5116
  %v5118 = vpop.f32.mrb[0].mxu0
  %v5119 = vadd.f32 %v4996, %v5118
  %v5120 = vpop.f32.mrb[0].mxu0
  %5121 = vmatprep.mubr.f32.mxu0 0.0
  %v5122 = vand.u32 %v2294, 4294901760
  %v5123 = vsub.f32 %v2294, %v5122
  %5124 = vmatmul.mubr.f32.gmra.mrb[0].mxu0 %v5123
  %v5125 = vpop.f32.mrb[0].mxu0
  %v5126 = vadd.f32 %v5002, %v5125
  %v5127 = vpop.f32.mrb[0].mxu0
  %5128 = vmatprep.mubr.f32.mxu0 0.0
  %v5129 = vand.u32 %v2783, 4294901760
  %v5130 = vsub.f32 %v2783, %v5129
  %5131 = vmatmul.mubr.f32.gmra.mrb[0].mxu0 %v5130
  %v5132 = vpop.f32.mrb[0].mxu0
  %v5133 = vadd.f32 %v5008, %v5132
  %v5134 = vpop.f32.mrb[0].mxu0
  %5135 = vmatprep.mubr.f32.mxu0 0.0
  %v5136 = vand.u32 %v3272, 4294901760
  %v5137 = vsub.f32 %v3272, %v5136
  %5138 = vmatmul.mubr.f32.gmra.mrb[0].mxu0 %v5137
  %v5139 = vpop.f32.mrb[0].mxu0
  %v5140 = vadd.f32 %v5014, %v5139
  %v5141 = vpop.f32.mrb[0].mxu0
  %5142 = vmatprep.mubr.f32.mxu0 0.0
  %v5143 = vand.u32 %v3761, 4294901760
  %v5144 = vsub.f32 %v3761, %v5143
  %5145 = vmatmul.mubr.f32.gmra.mrb[0].mxu0 %v5144
  %v5146 = vpop.f32.mrb[0].mxu0
  %v5147 = vadd.f32 %v5020, %v5146
  %v5148 = vpop.f32.mrb[0].mxu0
  %5149 = vmatprep.mubr.f32.mxu0 0.0
  %v5150 = vand.u32 %v4250, 4294901760
  %v5151 = vsub.f32 %v4250, %v5150
  %5152 = vmatmul.mubr.f32.gmra.mrb[0].mxu0 %v5151
  %v5153 = vpop.f32.mrb[0].mxu0
  %v5154 = vadd.f32 %v5026, %v5153
  %v5155 = vpop.f32.mrb[0].mxu0
  %5156 = vmatprep.mubr.f32.mxu0 0.0
  %v5157 = vand.u32 %v4751, 4294901760
  %v5158 = vsub.f32 %v4751, %v5157
  %5159 = vmatmul.mubr.f32.gmra.mrb[0].mxu0 %v5158
  %v5160 = vpop.f32.mrb[0].mxu0
  %v5161 = vadd.f32 %v5032, %v5160
  %v5162 = vpop.f32.mrb[0].mxu0
  %5163 = vdwg.mxu0
  %5164 = vmatprep.subr.mxu0 0.0
  %v5165 = vand.u32 %v4739, 4294901760
  %5166 = vmatpush1.msra.mxu0 %v5165
  %5167 = vmatprep.subr.mxu0 0.0
  %v5168 = vand.u32 %v4740, 4294901760
  %5169 = vmatpush1.msra.mxu0 %v5168
  %5170 = vmatprep.subr.mxu0 0.0
  %v5171 = vand.u32 %v4741, 4294901760
  %5172 = vmatpush1.msra.mxu0 %v5171
  %5173 = vmatprep.subr.mxu0 0.0
  %v5174 = vand.u32 %v4742, 4294901760
  %5175 = vmatpush1.msra.mxu0 %v5174
  %5176 = vmatprep.subr.mxu0 0.0
  %5177 = vmatpush1.msra.mxu0 0.0
  %5178 = vmatprep.subr.mxu0 0.0
  %5179 = vmatpush1.msra.mxu0 0.0
  %5180 = vmatprep.subr.mxu0 0.0
  %5181 = vmatpush1.msra.mxu0 0.0
  %5182 = vmatprep.subr.mxu0 0.0
  %5183 = vmatpush1.msra.mxu0 0.0
  %5184 = vmatprep.subr.mxu0 0.0
  %5185 = vmatpush1.msra.mxu0 0.0
  %5186 = vmatprep.subr.mxu0 0.0
  %5187 = vmatpush1.msra.mxu0 0.0
  %5188 = vmatprep.subr.mxu0 0.0
  %5189 = vmatpush1.msra.mxu0 0.0
  %5190 = vmatprep.subr.mxu0 0.0
  %5191 = vmatpush1.msra.mxu0 0.0
  %5192 = vmatprep.subr.mxu0 0.0
  %5193 = vmatpush1.msra.mxu0 0.0
  %5194 = vmatprep.subr.mxu0 0.0
  %5195 = vmatpush1.msra.mxu0 0.0
  %5196 = vmatprep.subr.mxu0 0.0
  %5197 = vmatpush1.msra.mxu0 0.0
  %5198 = vmatprep.subr.mxu0 0.0
  %5199 = vmatpush1.msra.mxu0 0.0
  %5200 = vmatprep.subr.mxu0 0.0
  %5201 = vmatpush1.msra.mxu0 0.0
  %5202 = vmatprep.subr.mxu0 0.0
  %5203 = vmatpush1.msra.mxu0 0.0
  %5204 = vmatprep.subr.mxu0 0.0
  %5205 = vmatpush1.msra.mxu0 0.0
  %5206 = vmatprep.subr.mxu0 0.0
  %5207 = vmatpush1.msra.mxu0 0.0
  %5208 = vmatprep.subr.mxu0 0.0
  %5209 = vmatpush1.msra.mxu0 0.0
  %5210 = vmatprep.subr.mxu0 0.0
  %5211 = vmatpush1.msra.mxu0 0.0
  %5212 = vmatprep.subr.mxu0 0.0
  %5213 = vmatpush1.msra.mxu0 0.0
  %5214 = vmatprep.subr.mxu0 0.0
  %5215 = vmatpush1.msra.mxu0 0.0
  %5216 = vmatprep.subr.mxu0 0.0
  %5217 = vmatpush1.msra.mxu0 0.0
  %5218 = vmatprep.subr.mxu0 0.0
  %5219 = vmatpush1.msra.mxu0 0.0
  %5220 = vmatprep.subr.mxu0 0.0
  %5221 = vmatpush1.msra.mxu0 0.0
  %5222 = vmatprep.subr.mxu0 0.0
  %5223 = vmatpush1.msra.mxu0 0.0
  %5224 = vmatprep.subr.mxu0 0.0
  %5225 = vmatpush1.msra.mxu0 0.0
  %5226 = vmatprep.subr.mxu0 0.0
  %5227 = vmatpush1.msra.mxu0 0.0
  %5228 = vmatprep.subr.mxu0 0.0
  %5229 = vmatpush1.msra.mxu0 0.0
  %5230 = vmatprep.subr.mxu0 0.0
  %5231 = vmatpush1.msra.mxu0 0.0
  %5232 = vmatprep.mubr.f32.mxu0 0.0
  %v5233 = vand.u32 %v1316, 4294901760
  %v5234 = vsub.f32 %v1316, %v5233
  %v5235 = vand.u32 %v5234, 4294901760
  %5236 = vmatmul.mubr.f32.gmra.mrb[0].mxu0 %v5235
  %v5237 = vpop.f32.mrb[0].mxu0
  %v5238 = vadd.f32 %v5112, %v5237
  %v5239 = vpop.f32.mrb[0].mxu0
  %5240 = vmatprep.mubr.f32.mxu0 0.0
  %v5241 = vand.u32 %v1805, 4294901760
  %v5242 = vsub.f32 %v1805, %v5241
  %v5243 = vand.u32 %v5242, 4294901760
  %5244 = vmatmul.mubr.f32.gmra.mrb[0].mxu0 %v5243
  %v5245 = vpop.f32.mrb[0].mxu0
  %v5246 = vadd.f32 %v5119, %v5245
  %v5247 = vpop.f32.mrb[0].mxu0
  %5248 = vmatprep.mubr.f32.mxu0 0.0
  %v5249 = vand.u32 %v2294, 4294901760
  %v5250 = vsub.f32 %v2294, %v5249
  %v5251 = vand.u32 %v5250, 4294901760
  %5252 = vmatmul.mubr.f32.gmra.mrb[0].mxu0 %v5251
  %v5253 = vpop.f32.mrb[0].mxu0
  %v5254 = vadd.f32 %v5126, %v5253
  %v5255 = vpop.f32.mrb[0].mxu0
  %5256 = vmatprep.mubr.f32.mxu0 0.0
  %v5257 = vand.u32 %v2783, 4294901760
  %v5258 = vsub.f32 %v2783, %v5257
  %v5259 = vand.u32 %v5258, 4294901760
  %5260 = vmatmul.mubr.f32.gmra.mrb[0].mxu0 %v5259
  %v5261 = vpop.f32.mrb[0].mxu0
  %v5262 = vadd.f32 %v5133, %v5261
  %v5263 = vpop.f32.mrb[0].mxu0
  %5264 = vmatprep.mubr.f32.mxu0 0.0
  %v5265 = vand.u32 %v3272, 4294901760
  %v5266 = vsub.f32 %v3272, %v5265
  %v5267 = vand.u32 %v5266, 4294901760
  %5268 = vmatmul.mubr.f32.gmra.mrb[0].mxu0 %v5267
  %v5269 = vpop.f32.mrb[0].mxu0
  %v5270 = vadd.f32 %v5140, %v5269
  %v5271 = vpop.f32.mrb[0].mxu0
  %5272 = vmatprep.mubr.f32.mxu0 0.0
  %v5273 = vand.u32 %v3761, 4294901760
  %v5274 = vsub.f32 %v3761, %v5273
  %v5275 = vand.u32 %v5274, 4294901760
  %5276 = vmatmul.mubr.f32.gmra.mrb[0].mxu0 %v5275
  %v5277 = vpop.f32.mrb[0].mxu0
  %v5278 = vadd.f32 %v5147, %v5277
  %v5279 = vpop.f32.mrb[0].mxu0
  %5280 = vmatprep.mubr.f32.mxu0 0.0
  %v5281 = vand.u32 %v4250, 4294901760
  %v5282 = vsub.f32 %v4250, %v5281
  %v5283 = vand.u32 %v5282, 4294901760
  %5284 = vmatmul.mubr.f32.gmra.mrb[0].mxu0 %v5283
  %v5285 = vpop.f32.mrb[0].mxu0
  %v5286 = vadd.f32 %v5154, %v5285
  %v5287 = vpop.f32.mrb[0].mxu0
  %5288 = vmatprep.mubr.f32.mxu0 0.0
  %v5289 = vand.u32 %v4751, 4294901760
  %v5290 = vsub.f32 %v4751, %v5289
  %v5291 = vand.u32 %v5290, 4294901760
  %5292 = vmatmul.mubr.f32.gmra.mrb[0].mxu0 %v5291
  %v5293 = vpop.f32.mrb[0].mxu0
  %v5294 = vadd.f32 %v5161, %v5293
  %v5295 = vpop.f32.mrb[0].mxu0
  %5296 = vdwg.mxu0
  %5297 = vmatprep.subr.mxu0 0.0
  %v5298 = vand.u32 %v4739, 4294901760
  %v5299 = vsub.f32 %v4739, %v5298
  %v5300 = vand.u32 %v5299, 4294901760
  %5301 = vmatpush1.msra.mxu0 %v5300
  %5302 = vmatprep.subr.mxu0 0.0
  %v5303 = vand.u32 %v4740, 4294901760
  %v5304 = vsub.f32 %v4740, %v5303
  %v5305 = vand.u32 %v5304, 4294901760
  %5306 = vmatpush1.msra.mxu0 %v5305
  %5307 = vmatprep.subr.mxu0 0.0
  %v5308 = vand.u32 %v4741, 4294901760
  %v5309 = vsub.f32 %v4741, %v5308
  %v5310 = vand.u32 %v5309, 4294901760
  %5311 = vmatpush1.msra.mxu0 %v5310
  %5312 = vmatprep.subr.mxu0 0.0
  %v5313 = vand.u32 %v4742, 4294901760
  %v5314 = vsub.f32 %v4742, %v5313
  %v5315 = vand.u32 %v5314, 4294901760
  %5316 = vmatpush1.msra.mxu0 %v5315
  %5317 = vmatprep.subr.mxu0 0.0
  %5318 = vmatpush1.msra.mxu0 0.0
  %5319 = vmatprep.subr.mxu0 0.0
  %5320 = vmatpush1.msra.mxu0 0.0
  %5321 = vmatprep.subr.mxu0 0.0
  %5322 = vmatpush1.msra.mxu0 0.0
  %5323 = vmatprep.subr.mxu0 0.0
  %5324 = vmatpush1.msra.mxu0 0.0
  %5325 = vmatprep.subr.mxu0 0.0
  %5326 = vmatpush1.msra.mxu0 0.0
  %5327 = vmatprep.subr.mxu0 0.0
  %5328 = vmatpush1.msra.mxu0 0.0
  %5329 = vmatprep.subr.mxu0 0.0
  %5330 = vmatpush1.msra.mxu0 0.0
  %5331 = vmatprep.subr.mxu0 0.0
  %5332 = vmatpush1.msra.mxu0 0.0
  %5333 = vmatprep.subr.mxu0 0.0
  %5334 = vmatpush1.msra.mxu0 0.0
  %5335 = vmatprep.subr.mxu0 0.0
  %5336 = vmatpush1.msra.mxu0 0.0
  %5337 = vmatprep.subr.mxu0 0.0
  %5338 = vmatpush1.msra.mxu0 0.0
  %5339 = vmatprep.subr.mxu0 0.0
  %5340 = vmatpush1.msra.mxu0 0.0
  %5341 = vmatprep.subr.mxu0 0.0
  %5342 = vmatpush1.msra.mxu0 0.0
  %5343 = vmatprep.subr.mxu0 0.0
  %5344 = vmatpush1.msra.mxu0 0.0
  %5345 = vmatprep.subr.mxu0 0.0
  %5346 = vmatpush1.msra.mxu0 0.0
  %5347 = vmatprep.subr.mxu0 0.0
  %5348 = vmatpush1.msra.mxu0 0.0
  %5349 = vmatprep.subr.mxu0 0.0
  %5350 = vmatpush1.msra.mxu0 0.0
  %5351 = vmatprep.subr.mxu0 0.0
  %5352 = vmatpush1.msra.mxu0 0.0
  %5353 = vmatprep.subr.mxu0 0.0
  %5354 = vmatpush1.msra.mxu0 0.0
  %5355 = vmatprep.subr.mxu0 0.0
  %5356 = vmatpush1.msra.mxu0 0.0
  %5357 = vmatprep.subr.mxu0 0.0
  %5358 = vmatpush1.msra.mxu0 0.0
  %5359 = vmatprep.subr.mxu0 0.0
  %5360 = vmatpush1.msra.mxu0 0.0
  %5361 = vmatprep.subr.mxu0 0.0
  %5362 = vmatpush1.msra.mxu0 0.0
  %5363 = vmatprep.subr.mxu0 0.0
  %5364 = vmatpush1.msra.mxu0 0.0
  %5365 = vmatprep.subr.mxu0 0.0
  %5366 = vmatpush1.msra.mxu0 0.0
  %5367 = vmatprep.subr.mxu0 0.0
  %5368 = vmatpush1.msra.mxu0 0.0
  %5369 = vmatprep.subr.mxu0 0.0
  %5370 = vmatpush1.msra.mxu0 0.0
  %5371 = vmatprep.subr.mxu0 0.0
  %5372 = vmatpush1.msra.mxu0 0.0
  %5373 = vmatprep.mubr.f32.mxu0 0.0
  %v5374 = vand.u32 %v1316, 4294901760
  %5375 = vmatmul.mubr.f32.gmra.mrb[0].mxu0 %v5374
  %v5376 = vpop.f32.mrb[0].mxu0
  %v5377 = vadd.f32 %v5238, %v5376
  %v5378 = vpop.f32.mrb[0].mxu0
  %5379 = vmatprep.mubr.f32.mxu0 0.0
  %v5380 = vand.u32 %v1805, 4294901760
  %5381 = vmatmul.mubr.f32.gmra.mrb[0].mxu0 %v5380
  %v5382 = vpop.f32.mrb[0].mxu0
  %v5383 = vadd.f32 %v5246, %v5382
  %v5384 = vpop.f32.mrb[0].mxu0
  %5385 = vmatprep.mubr.f32.mxu0 0.0
  %v5386 = vand.u32 %v2294, 4294901760
  %5387 = vmatmul.mubr.f32.gmra.mrb[0].mxu0 %v5386
  %v5388 = vpop.f32.mrb[0].mxu0
  %v5389 = vadd.f32 %v5254, %v5388
  %v5390 = vpop.f32.mrb[0].mxu0
  %5391 = vmatprep.mubr.f32.mxu0 0.0
  %v5392 = vand.u32 %v2783, 4294901760
  %5393 = vmatmul.mubr.f32.gmra.mrb[0].mxu0 %v5392
  %v5394 = vpop.f32.mrb[0].mxu0
  %v5395 = vadd.f32 %v5262, %v5394
  %v5396 = vpop.f32.mrb[0].mxu0
  %5397 = vmatprep.mubr.f32.mxu0 0.0
  %v5398 = vand.u32 %v3272, 4294901760
  %5399 = vmatmul.mubr.f32.gmra.mrb[0].mxu0 %v5398
  %v5400 = vpop.f32.mrb[0].mxu0
  %v5401 = vadd.f32 %v5270, %v5400
  %v5402 = vpop.f32.mrb[0].mxu0
  %5403 = vmatprep.mubr.f32.mxu0 0.0
  %v5404 = vand.u32 %v3761, 4294901760
  %5405 = vmatmul.mubr.f32.gmra.mrb[0].mxu0 %v5404
  %v5406 = vpop.f32.mrb[0].mxu0
  %v5407 = vadd.f32 %v5278, %v5406
  %v5408 = vpop.f32.mrb[0].mxu0
  %5409 = vmatprep.mubr.f32.mxu0 0.0
  %v5410 = vand.u32 %v4250, 4294901760
  %5411 = vmatmul.mubr.f32.gmra.mrb[0].mxu0 %v5410
  %v5412 = vpop.f32.mrb[0].mxu0
  %v5413 = vadd.f32 %v5286, %v5412
  %v5414 = vpop.f32.mrb[0].mxu0
  %5415 = vmatprep.mubr.f32.mxu0 0.0
  %v5416 = vand.u32 %v4751, 4294901760
  %5417 = vmatmul.mubr.f32.gmra.mrb[0].mxu0 %v5416
  %v5418 = vpop.f32.mrb[0].mxu0
  %v5419 = vadd.f32 %v5294, %v5418
  %v5420 = vpop.f32.mrb[0].mxu0
  %5421 = vdwg.mxu0
  %5422 = vmatprep.subr.mxu0 0.0
  %v5423 = vand.u32 %v4739, 4294901760
  %5424 = vmatpush1.msra.mxu0 %v5423
  %5425 = vmatprep.subr.mxu0 0.0
  %v5426 = vand.u32 %v4740, 4294901760
  %5427 = vmatpush1.msra.mxu0 %v5426
  %5428 = vmatprep.subr.mxu0 0.0
  %v5429 = vand.u32 %v4741, 4294901760
  %5430 = vmatpush1.msra.mxu0 %v5429
  %5431 = vmatprep.subr.mxu0 0.0
  %v5432 = vand.u32 %v4742, 4294901760
  %5433 = vmatpush1.msra.mxu0 %v5432
  %5434 = vmatprep.subr.mxu0 0.0
  %5435 = vmatpush1.msra.mxu0 0.0
  %5436 = vmatprep.subr.mxu0 0.0
  %5437 = vmatpush1.msra.mxu0 0.0
  %5438 = vmatprep.subr.mxu0 0.0
  %5439 = vmatpush1.msra.mxu0 0.0
  %5440 = vmatprep.subr.mxu0 0.0
  %5441 = vmatpush1.msra.mxu0 0.0
  %5442 = vmatprep.subr.mxu0 0.0
  %5443 = vmatpush1.msra.mxu0 0.0
  %5444 = vmatprep.subr.mxu0 0.0
  %5445 = vmatpush1.msra.mxu0 0.0
  %5446 = vmatprep.subr.mxu0 0.0
  %5447 = vmatpush1.msra.mxu0 0.0
  %5448 = vmatprep.subr.mxu0 0.0
  %5449 = vmatpush1.msra.mxu0 0.0
  %5450 = vmatprep.subr.mxu0 0.0
  %5451 = vmatpush1.msra.mxu0 0.0
  %5452 = vmatprep.subr.mxu0 0.0
  %5453 = vmatpush1.msra.mxu0 0.0
  %5454 = vmatprep.subr.mxu0 0.0
  %5455 = vmatpush1.msra.mxu0 0.0
  %5456 = vmatprep.subr.mxu0 0.0
  %5457 = vmatpush1.msra.mxu0 0.0
  %5458 = vmatprep.subr.mxu0 0.0
  %5459 = vmatpush1.msra.mxu0 0.0
  %5460 = vmatprep.subr.mxu0 0.0
  %5461 = vmatpush1.msra.mxu0 0.0
  %5462 = vmatprep.subr.mxu0 0.0
  %5463 = vmatpush1.msra.mxu0 0.0
  %5464 = vmatprep.subr.mxu0 0.0
  %5465 = vmatpush1.msra.mxu0 0.0
  %5466 = vmatprep.subr.mxu0 0.0
  %5467 = vmatpush1.msra.mxu0 0.0
  %5468 = vmatprep.subr.mxu0 0.0
  %5469 = vmatpush1.msra.mxu0 0.0
  %5470 = vmatprep.subr.mxu0 0.0
  %5471 = vmatpush1.msra.mxu0 0.0
  %5472 = vmatprep.subr.mxu0 0.0
  %5473 = vmatpush1.msra.mxu0 0.0
  %5474 = vmatprep.subr.mxu0 0.0
  %5475 = vmatpush1.msra.mxu0 0.0
  %5476 = vmatprep.subr.mxu0 0.0
  %5477 = vmatpush1.msra.mxu0 0.0
  %5478 = vmatprep.subr.mxu0 0.0
  %5479 = vmatpush1.msra.mxu0 0.0
  %5480 = vmatprep.subr.mxu0 0.0
  %5481 = vmatpush1.msra.mxu0 0.0
  %5482 = vmatprep.subr.mxu0 0.0
  %5483 = vmatpush1.msra.mxu0 0.0
  %5484 = vmatprep.subr.mxu0 0.0
  %5485 = vmatpush1.msra.mxu0 0.0
  %5486 = vmatprep.subr.mxu0 0.0
  %5487 = vmatpush1.msra.mxu0 0.0
  %5488 = vmatprep.subr.mxu0 0.0
  %5489 = vmatpush1.msra.mxu0 0.0
  %5490 = vmatprep.mubr.f32.mxu0 0.0
  %v5491 = vand.u32 %v1316, 4294901760
  %5492 = vmatmul.mubr.f32.gmra.mrb[0].mxu0 %v5491
  %v5493 = vpop.f32.mrb[0].mxu0
  %v5494 = vadd.f32 %v5377, %v5493
  %v5495 = vpop.f32.mrb[0].mxu0
  %5496 = vmatprep.mubr.f32.mxu0 0.0
  %v5497 = vand.u32 %v1805, 4294901760
  %5498 = vmatmul.mubr.f32.gmra.mrb[0].mxu0 %v5497
  %v5499 = vpop.f32.mrb[0].mxu0
  %v5500 = vadd.f32 %v5383, %v5499
  %v5501 = vpop.f32.mrb[0].mxu0
  %5502 = vmatprep.mubr.f32.mxu0 0.0
  %v5503 = vand.u32 %v2294, 4294901760
  %5504 = vmatmul.mubr.f32.gmra.mrb[0].mxu0 %v5503
  %v5505 = vpop.f32.mrb[0].mxu0
  %v5506 = vadd.f32 %v5389, %v5505
  %v5507 = vpop.f32.mrb[0].mxu0
  %5508 = vmatprep.mubr.f32.mxu0 0.0
  %v5509 = vand.u32 %v2783, 4294901760
  %5510 = vmatmul.mubr.f32.gmra.mrb[0].mxu0 %v5509
  %v5511 = vpop.f32.mrb[0].mxu0
  %v5512 = vadd.f32 %v5395, %v5511
  %v5513 = vpop.f32.mrb[0].mxu0
  %5514 = vmatprep.mubr.f32.mxu0 0.0
  %v5515 = vand.u32 %v3272, 4294901760
  %5516 = vmatmul.mubr.f32.gmra.mrb[0].mxu0 %v5515
  %v5517 = vpop.f32.mrb[0].mxu0
  %v5518 = vadd.f32 %v5401, %v5517
  %v5519 = vpop.f32.mrb[0].mxu0
  %5520 = vmatprep.mubr.f32.mxu0 0.0
  %v5521 = vand.u32 %v3761, 4294901760
  %5522 = vmatmul.mubr.f32.gmra.mrb[0].mxu0 %v5521
  %v5523 = vpop.f32.mrb[0].mxu0
  %v5524 = vadd.f32 %v5407, %v5523
  %v5525 = vpop.f32.mrb[0].mxu0
  %5526 = vmatprep.mubr.f32.mxu0 0.0
  %v5527 = vand.u32 %v4250, 4294901760
  %5528 = vmatmul.mubr.f32.gmra.mrb[0].mxu0 %v5527
  %v5529 = vpop.f32.mrb[0].mxu0
  %v5530 = vadd.f32 %v5413, %v5529
  %v5531 = vpop.f32.mrb[0].mxu0
  %5532 = vmatprep.mubr.f32.mxu0 0.0
  %v5533 = vand.u32 %v4751, 4294901760
  %5534 = vmatmul.mubr.f32.gmra.mrb[0].mxu0 %v5533
  %v5535 = vpop.f32.mrb[0].mxu0
  %v5536 = vadd.f32 %v5419, %v5535
  %v5537 = vpop.f32.mrb[0].mxu0
  %5538 = vdwg.mxu0
  %5539 = vst.msk [vmem:[%s7] sm:$0xff] %vm44, %v5494
  %5540 = vst.msk [vmem:[%s7 + $0x8] sm:$0xff] %vm44, %v5500
  %5541 = vst.msk [vmem:[%s7 + $0x10] sm:$0xff] %vm44, %v5506
  %5542 = vst.msk [vmem:[%s7 + $0x18] sm:$0xff] %vm44, %v5512
  %5543 = vst.msk [vmem:[%s7 + $0x20] sm:$0xff] %vm44, %v5518
  %5544 = vst.msk [vmem:[%s7 + $0x28] sm:$0xff] %vm44, %v5524
  %5545 = vst.msk [vmem:[%s7 + $0x30] sm:$0xff] %vm44, %v5530
  %5546 = vst.msk [vmem:[%s7 + $0x38] sm:$0xff] %vm44, %v5536
  // Predicated region
  $region30: #{rnn_decoder_forward.1} parent=0 // pred_check
    _
  $region31: #{rnn_decoder_forward.1} parent=0 // pred_check_branch
    %5548 = sbr.rel (0) target = $region33
  $region32: #{rnn_decoder_forward.1} parent=0 // pred_region
    _
  $region33: #{rnn_decoder_forward.1} parent=0 // pred_fallthru
    _
  // Predicated region
  $region34: #{rnn_decoder_forward.1} parent=0 // pred_check
    _
  $region35: #{rnn_decoder_forward.1} parent=0 // pred_check_branch
    %5550 = sbr.rel (0) target = $region37
  $region36: #{rnn_decoder_forward.1} parent=0 // pred_region
    _
  $region37: #{rnn_decoder_forward.1} parent=0 // pred_fallthru
    _
  // Predicated region
  $region38: #{rnn_decoder_forward.1} parent=0 // pred_check
    _
  $region39: #{rnn_decoder_forward.1} parent=0 // pred_check_branch
    %5552 = sbr.rel (0) target = $region41
  $region40: #{rnn_decoder_forward.1} parent=0 // pred_region
    _
  $region41: #{rnn_decoder_forward.1} parent=0 // pred_fallthru
    _
  // Predicated region
  $region42: #{rnn_decoder_forward.1} parent=0 // pred_check
    _
  $region43: #{rnn_decoder_forward.1} parent=0 // pred_check_branch
    %5554 = sbr.rel (0) target = $region45
  $region44: #{rnn_decoder_forward.1} parent=0 // pred_region
    _
  $region45: #{rnn_decoder_forward.1} parent=0 // pred_fallthru
    _

</llo_original>
